<compile_context>
chip_gen: v7x
topology: tpu7x:2x2x1
jax: 0.10.0
libtpu: 0.0.40
codegen_flags: <defaults>
</compile_context>

<pallas_src>
import jax
import jax.numpy as jnp
import numpy as np
from jax.experimental import pallas as pl
from jax.experimental.pallas import tpu as pltpu

POOL = 32  # nn.AvgPool3d(kernel_size=32, stride=32)


def _fused_kernel(x_ref, pw_ref, b1_ref, w2_ref, b2_ref, o_ref):
    # x_ref : (G, Dp, POOL, HW)   this step's G (b,c)-rows, lane dim = H*W (lane-dense)
    # pw_ref: (Dp, HW, out_dim)   composed (spatial-pool . w1) weights, scaled by 1/32^3
    # o_ref : (G, out_dim)        this step's finished output rows
    G = x_ref.shape[0]
    Dp = x_ref.shape[1]
    out_dim = o_ref.shape[1]

    # AvgPool3d + flatten(2) + Linear1 composed:
    #   acc[g,o] = sum_{dp,z,hw} x[g,dp,z,hw] * pw[dp,hw,o]
    acc = jnp.zeros((G, out_dim), jnp.float32)
    for dp in range(Dp):                                   # Dp = D/32, tiny; static unroll
        xz = jnp.sum(x_ref[:, dp, :, :], axis=1)           # VPU: 32-slice depth sum -> (G, HW)
        acc = acc + jnp.dot(xz, pw_ref[dp],                 # MXU, out_dim-wide result
                            preferred_element_type=jnp.float32)

    h = jnp.maximum(acc + b1_ref[...], 0.0)                 # Linear1 bias + ReLU
    y = jnp.dot(h, w2_ref[...], preferred_element_type=jnp.float32) + b2_ref[...]  # Linear2
    ss = jnp.sum(y * y, axis=-1, keepdims=True)             # torch.pow(sum(x^2), 1/2); no eps by design
    o_ref[...] = (y * jax.lax.rsqrt(ss)).astype(o_ref.dtype)


def _vmem_capacity_bytes():
    try:
        return int(pltpu.get_tpu_info().vmem_capacity_bytes)
    except Exception:
        return 64 * 1024 * 1024  # conservative default: v7x per-TensorCore VMEM


def _pick_group(bc, slab_bytes, max_block_bytes):
    """Largest divisor G of bc with G*slab_bytes <= max_block_bytes.

    Prefers G that (a) keeps >= 2 grid steps so the next block's DMA overlaps this
    block's compute, and (b) is a multiple of 8 (or == bc) so the (G, out_dim)
    output block stores land on whole f32 sublane tiles (unmasked stores)."""
    cands = [g for g in range(1, bc + 1)
             if bc % g == 0 and g * slab_bytes <= max_block_bytes]
    if not cands:
        return 1

    def rank(g):
        keeps_overlap = (bc // g >= 2) or (bc == 1)
        aligned_out = (g % 8 == 0) or (g == bc)
        return (keeps_overlap, aligned_out, g)

    return max(cands, key=rank)


@jax.jit
def matric_layer_forward(x, w1, b1, w2, b2):
    B, C, D, H, W = x.shape
    assert D % POOL == 0 and H % POOL == 0 and W % POOL == 0
    Dp, Hp, Wp = D // POOL, H // POOL, W // POOL
    HW = H * W
    HpWp = Hp * Wp
    n_feat = Dp * HpWp
    in_dim, out_dim = w1.shape
    assert n_feat == in_dim, "Linear in_dim must match flattened pooled size"
    BC = B * C

    # pure metadata reshape (no data movement): (B,C,D,H,W) -> (B*C, Dp, POOL, H*W)
    xr = x.reshape(BC, Dp, POOL, HW)

    # Compose (spatial avg-pool -> flatten(2) -> Linear1 weight) into one matrix per
    # depth window:  pw[dp, hw, o] = w1[dp*HpWp + cell(hw), o] / 32^3,
    # where cell(hw) = (h//32)*Wp + (w//32) reproduces torch's d-major/h/w flatten
    # order.  Built from numpy indices at trace time (cached per shape by jit):
    # no one-hot pooling matmuls, no O(G^2) depth-combine matrix, and the in-kernel
    # MXU result is out_dim columns wide instead of HpWp.
    cell = ((np.arange(H)[:, None] // POOL) * Wp + (np.arange(W)[None, :] // POOL))
    cell = cell.reshape(HW).astype(np.int32)
    inv_count = 1.0 / float(POOL * POOL * POOL)
    pw = jnp.take(w1.reshape(Dp, HpWp, out_dim), jnp.asarray(cell), axis=1) * inv_count

    # ---- per-generation VMEM budgeting --------------------------------------
    slab_bytes = Dp * POOL * HW * 4                       # one (b,c) row of x, f32
    vmem_cap = _vmem_capacity_bytes()
    # bigger blocks on v5e/v6e (128 MiB VMEM), smaller on v7x (64 MiB per TC)
    gen_block_cap = (16 << 20) if vmem_cap >= (96 << 20) else (7 << 20)
    # grid-invariant operands are double-buffered by the default pipeline and the
    # out_dim minor dim pads to 128 lanes in VMEM; account for both explicitly.
    lane_pad = -(-out_dim // 128) * 128
    pw_padded_bytes = Dp * HW * lane_pad * 4
    small_const_bytes = 3 * (-(-out_dim // 8) * 8) * lane_pad * 4     # b1, w2, b2
    const_bytes = 2 * (pw_padded_bytes + small_const_bytes)
    budget = int(0.45 * vmem_cap)                         # headroom for compiler scratch
    max_block = min(gen_block_cap, max((budget - const_bytes) // 2, 1 << 20))

    G = _pick_group(BC, slab_bytes, max_block)
    num_steps = BC // G
    block_bytes = G * slab_bytes
    out_padded_bytes = 2 * (-(-G // 8) * 8) * lane_pad * 4
    vmem_limit = int(min(0.9 * vmem_cap,
                         2 * block_bytes + const_bytes + out_padded_bytes + (6 << 20)))

    out = pl.pallas_call(
        _fused_kernel,
        out_shape=jax.ShapeDtypeStruct((BC, out_dim), jnp.float32),
        grid=(num_steps,),
        in_specs=[
            pl.BlockSpec((G, Dp, POOL, HW), lambda i: (i, 0, 0, 0)),
            pl.BlockSpec((Dp, HW, out_dim), lambda i: (0, 0, 0)),
            pl.BlockSpec((1, out_dim), lambda i: (0, 0)),
            pl.BlockSpec((out_dim, out_dim), lambda i: (0, 0)),
            pl.BlockSpec((1, out_dim), lambda i: (0, 0)),
        ],
        out_specs=pl.BlockSpec((G, out_dim), lambda i: (i, 0)),
        # Each step writes only its own output rows -> no cross-step state, so the
        # grid axis is "parallel" (shards across both TensorCores on v7x).
        compiler_params=pltpu.CompilerParams(
            dimension_semantics=("parallel",),
            vmem_limit_bytes=vmem_limit,
        ),
    )(xr, pw, b1.reshape(1, out_dim), w2, b2.reshape(1, out_dim))

    return out.reshape(B, C, out_dim)


def ref_forward(x, w1, b1, w2, b2):
    B, C, D, H, W = x.shape
    p = x.reshape(B, C, D // POOL, POOL, H // POOL, POOL, W // POOL, POOL)
    p = p.mean(axis=(3, 5, 7)).reshape(B, C, -1)
    h = jnp.maximum(p @ w1 + b1, 0.0)
    y = h @ w2 + b2
    n = jnp.sqrt(jnp.sum(y * y, axis=2, keepdims=True))
    return y / n


if __name__ == "__main__":
    key = jax.random.PRNGKey(0)
    kx, k1, k2, k3, k4 = jax.random.split(key, 5)

    # AvgPool3d(kernel_size=32) forces spatial dims >= 32; keep them minimal while
    # still exercising Dp > 1 (two depth windows) and multiple grid steps.
    B, C, D, H, W = 2, 8, 64, 32, 64
    in_dim = (D // POOL) * (H // POOL) * (W // POOL)   # = 4 (must match Linear in_dim)
    out_dim = 16

    x = jax.random.normal(kx, (B, C, D, H, W), dtype=jnp.float32)
    s1 = 1.0 / (in_dim ** 0.5)
    s2 = 1.0 / (out_dim ** 0.5)
    # deterministic synthetic Linear params (stored as x @ W convention)
    w1 = jax.random.uniform(k1, (in_dim, out_dim), jnp.float32, -s1, s1)
    b1 = jax.random.uniform(k2, (out_dim,), jnp.float32, -s1, s1)
    w2 = jax.random.uniform(k3, (out_dim, out_dim), jnp.float32, -s2, s2)
    b2 = jax.random.uniform(k4, (out_dim,), jnp.float32, -s2, s2)

    out = matric_layer_forward(x, w1, b1, w2, b2)
    out = jax.block_until_ready(out)

    ref = ref_forward(x, w1, b1, w2, b2)
    assert out.shape == (B, C, out_dim)
    np.testing.assert_allclose(np.asarray(out), np.asarray(ref), rtol=1e-5, atol=1e-5)
    print("KERNEL_OK")
</pallas_src>

<mosaic_0001>
module attributes {stable_mosaic.version = 11 : i64} {
  func.func @_fused_kernel(%arg0: i32, %arg1: memref<8x2x32x2048xf32, #tpu.memory_space<vmem>>, %arg2: memref<2x2048x16xf32, #tpu.memory_space<vmem>>, %arg3: memref<1x16xf32, #tpu.memory_space<vmem>>, %arg4: memref<16x16xf32, #tpu.memory_space<vmem>>, %arg5: memref<1x16xf32, #tpu.memory_space<vmem>>, %arg6: memref<8x16xf32, #tpu.memory_space<vmem>>) attributes {dimension_semantics = [#tpu.dimension_semantics<parallel>], iteration_bounds = array<i64: 2>, scalar_prefetch = 0 : i64, scratch_operands = 0 : i64, tpu.core_type = #tpu.core_type<tc>, window_params = [{transform_indices = @transform_0, window_bounds = array<i64: 8, 2, 32, 2048>}, {pipeline_mode = #tpu.pipeline_mode<synchronous>, transform_indices = @transform_1, window_bounds = array<i64: 2, 2048, 16>}, {pipeline_mode = #tpu.pipeline_mode<synchronous>, transform_indices = @transform_2, window_bounds = array<i64: 1, 16>}, {pipeline_mode = #tpu.pipeline_mode<synchronous>, transform_indices = @transform_3, window_bounds = array<i64: 16, 16>}, {pipeline_mode = #tpu.pipeline_mode<synchronous>, transform_indices = @transform_4, window_bounds = array<i64: 1, 16>}, {transform_indices = @transform_5, window_bounds = array<i64: 8, 16>}]} {
    %cst = arith.constant 0.000000e+00 : f32
    %0 = vector.broadcast %cst : f32 to vector<8x16xf32>
    %c0 = arith.constant 0 : index
    %c0_0 = arith.constant 0 : index
    %c0_1 = arith.constant 0 : index
    %c0_2 = arith.constant 0 : index
    %1 = vector.load %arg1[%c0, %c0_0, %c0_1, %c0_2] : memref<8x2x32x2048xf32, #tpu.memory_space<vmem>>, vector<8x1x32x2048xf32>
    %2 = vector.shape_cast %1 : vector<8x1x32x2048xf32> to vector<8x32x2048xf32>
    %cst_3 = arith.constant dense<0.000000e+00> : vector<8x2048xf32>
    %3 = vector.multi_reduction <add>, %2, %cst_3 [1] : vector<8x32x2048xf32> to vector<8x2048xf32>
    %c0_4 = arith.constant 0 : index
    %c0_5 = arith.constant 0 : index
    %c0_6 = arith.constant 0 : index
    %4 = vector.load %arg2[%c0_4, %c0_5, %c0_6] : memref<2x2048x16xf32, #tpu.memory_space<vmem>>, vector<1x2048x16xf32>
    %5 = vector.shape_cast %4 : vector<1x2048x16xf32> to vector<2048x16xf32>
    %cst_7 = arith.constant dense<0.000000e+00> : vector<8x16xf32>
    %6 = tpu.matmul %3, %5, %cst_7 {dimension_numbers = #tpu.dot_dimension_numbers<[1], [0], [0], [1], [0, 0, 1, 1], [], []>} : vector<8x2048xf32>, vector<2048x16xf32>, vector<8x16xf32> -> vector<8x16xf32>
    %7 = arith.addf %0, %6 : vector<8x16xf32>
    %c0_8 = arith.constant 0 : index
    %c1 = arith.constant 1 : index
    %c0_9 = arith.constant 0 : index
    %c0_10 = arith.constant 0 : index
    %8 = vector.load %arg1[%c0_8, %c1, %c0_9, %c0_10] : memref<8x2x32x2048xf32, #tpu.memory_space<vmem>>, vector<8x1x32x2048xf32>
    %9 = vector.shape_cast %8 : vector<8x1x32x2048xf32> to vector<8x32x2048xf32>
    %cst_11 = arith.constant dense<0.000000e+00> : vector<8x2048xf32>
    %10 = vector.multi_reduction <add>, %9, %cst_11 [1] : vector<8x32x2048xf32> to vector<8x2048xf32>
    %c1_12 = arith.constant 1 : index
    %c0_13 = arith.constant 0 : index
    %c0_14 = arith.constant 0 : index
    %11 = vector.load %arg2[%c1_12, %c0_13, %c0_14] : memref<2x2048x16xf32, #tpu.memory_space<vmem>>, vector<1x2048x16xf32>
    %12 = vector.shape_cast %11 : vector<1x2048x16xf32> to vector<2048x16xf32>
    %cst_15 = arith.constant dense<0.000000e+00> : vector<8x16xf32>
    %13 = tpu.matmul %10, %12, %cst_15 {dimension_numbers = #tpu.dot_dimension_numbers<[1], [0], [0], [1], [0, 0, 1, 1], [], []>} : vector<8x2048xf32>, vector<2048x16xf32>, vector<8x16xf32> -> vector<8x16xf32>
    %14 = arith.addf %7, %13 : vector<8x16xf32>
    %c0_16 = arith.constant 0 : index
    %c0_17 = arith.constant 0 : index
    %15 = vector.load %arg3[%c0_16, %c0_17] : memref<1x16xf32, #tpu.memory_space<vmem>>, vector<1x16xf32>
    %16 = vector.broadcast %15 : vector<1x16xf32> to vector<8x16xf32>
    %17 = arith.addf %14, %16 : vector<8x16xf32>
    %cst_18 = arith.constant 0.000000e+00 : f32
    %18 = vector.broadcast %cst_18 : f32 to vector<8x16xf32>
    %19 = arith.maximumf %17, %18 : vector<8x16xf32>
    %c0_19 = arith.constant 0 : index
    %c0_20 = arith.constant 0 : index
    %20 = vector.load %arg4[%c0_19, %c0_20] : memref<16x16xf32, #tpu.memory_space<vmem>>, vector<16x16xf32>
    %cst_21 = arith.constant dense<0.000000e+00> : vector<8x16xf32>
    %21 = tpu.matmul %19, %20, %cst_21 {dimension_numbers = #tpu.dot_dimension_numbers<[1], [0], [0], [1], [0, 0, 1, 1], [], []>} : vector<8x16xf32>, vector<16x16xf32>, vector<8x16xf32> -> vector<8x16xf32>
    %c0_22 = arith.constant 0 : index
    %c0_23 = arith.constant 0 : index
    %22 = vector.load %arg5[%c0_22, %c0_23] : memref<1x16xf32, #tpu.memory_space<vmem>>, vector<1x16xf32>
    %23 = vector.broadcast %22 : vector<1x16xf32> to vector<8x16xf32>
    %24 = arith.addf %21, %23 : vector<8x16xf32>
    %25 = arith.mulf %24, %24 : vector<8x16xf32>
    %cst_24 = arith.constant dense<0.000000e+00> : vector<8xf32>
    %26 = vector.multi_reduction <add>, %25, %cst_24 [1] : vector<8x16xf32> to vector<8xf32>
    %27 = vector.shape_cast %26 : vector<8xf32> to vector<8x1xf32>
    %28 = math.rsqrt %27 : vector<8x1xf32>
    %29 = vector.broadcast %28 : vector<8x1xf32> to vector<8x16xf32>
    %30 = arith.mulf %24, %29 : vector<8x16xf32>
    %c0_25 = arith.constant 0 : index
    %c0_26 = arith.constant 0 : index
    %31 = vector.load %arg6[%c0_25, %c0_26] : memref<8x16xf32, #tpu.memory_space<vmem>>, vector<8x16xf32>
    tpu.vector_store %arg6[%c0_25, %c0_26], %30 {strides = array<i32>} : memref<8x16xf32, #tpu.memory_space<vmem>>, vector<8x16xf32>,
    return
  }
  func.func @transform_0(%arg0: i32) -> (i32, i32, i32, i32) {
    %c0_i32 = arith.constant 0 : i32
    %c0_i32_0 = arith.constant 0 : i32
    %c0_i32_1 = arith.constant 0 : i32
    %c0_i32_2 = arith.constant 0 : i32
    return %arg0, %c0_i32, %c0_i32_0, %c0_i32_1 : i32, i32, i32, i32
  }
  func.func @transform_1(%arg0: i32) -> (i32, i32, i32) {
    %c0_i32 = arith.constant 0 : i32
    %c0_i32_0 = arith.constant 0 : i32
    %c0_i32_1 = arith.constant 0 : i32
    %c0_i32_2 = arith.constant 0 : i32
    return %c0_i32, %c0_i32_0, %c0_i32_1 : i32, i32, i32
  }
  func.func @transform_2(%arg0: i32) -> (i32, i32) {
    %c0_i32 = arith.constant 0 : i32
    %c0_i32_0 = arith.constant 0 : i32
    %c0_i32_1 = arith.constant 0 : i32
    return %c0_i32, %c0_i32_0 : i32, i32
  }
  func.func @transform_3(%arg0: i32) -> (i32, i32) {
    %c0_i32 = arith.constant 0 : i32
    %c0_i32_0 = arith.constant 0 : i32
    %c0_i32_1 = arith.constant 0 : i32
    return %c0_i32, %c0_i32_0 : i32, i32
  }
  func.func @transform_4(%arg0: i32) -> (i32, i32) {
    %c0_i32 = arith.constant 0 : i32
    %c0_i32_0 = arith.constant 0 : i32
    %c0_i32_1 = arith.constant 0 : i32
    return %c0_i32, %c0_i32_0 : i32, i32
  }
  func.func @transform_5(%arg0: i32) -> (i32, i32) {
    %c0_i32 = arith.constant 0 : i32
    %c0_i32_0 = arith.constant 0 : i32
    return %arg0, %c0_i32 : i32, i32
  }
}

</mosaic_0001>

<llo_original>
// kernel: matric_layer_forward.1
$region0: #{matric_layer_forward.1}
  #allocation0 [shape = 'u32[]', space=smem, size = 0x4, offset = 0x4, fixed_abs, tag = 'smem constant byte address 0x4 - core index']
  #allocation1 [shape = 'u32[144,128]{1,0:T(1,128)}', space=vmem, size = 0x12000, scoped, tag = 'internal scratch']
  %s0 = inlined_call_operand.vmem [shape: f32[16,2,32,2048], index: 0, kind: input, shape index: {}]
  %s1 = inlined_call_operand.vmem [shape: f32[2,2048,16], index: 1, kind: input, shape index: {}]
  %s2 = inlined_call_operand.vmem [shape: f32[1,16], index: 2, kind: input, shape index: {}]
  %s3 = inlined_call_operand.vmem [shape: f32[16,16], index: 3, kind: input, shape index: {}]
  %s4 = inlined_call_operand.vmem [shape: f32[1,16], index: 4, kind: input, shape index: {}]
  %s5 = inlined_call_operand.hbm [shape: f32[16,16], index: 5, kind: output, shape index: {}]
  %s6 = sld [smem:[#allocation0]]
  $region53: #{matric_layer_forward.1} parent=0
    _
  %s8 = ssub.s32 1, %s6
  %s9 = scalar_select 0, %s8, %s6
  $region1: #{matric_layer_forward.1} parent=0
    #allocation2 [shape = 'u8[8192]{0}', space=vmem, size = 0x2000, scoped, tag = 'output window, operand 0']
    #allocation3 [shape = 's32[2]{0}', space=sflag, size = 0x8, scoped, tag = 'scoped memory for matric_layer_forward.1']
    %10 = vsyncpa [#allocation3], 0
    %s11 = scalar_lea.sflag [#allocation3], 1
    %12 = vsyncpa %s11, 0
    loop: start=0, step=1, limit=4
    $region2: #{matric_layer_forward.1} parent=1 // loop_pre_header
      _
    $region3: #{matric_layer_forward.1} parent=1 // loop_header
      %s14 = sphi 0, %s18
      %p15 = scmp.ge.s32.totalorder %s14, 4
      %s24 = sphi 0, %s26
      %s27 = sphi 0, %s24
      %s28 = sphi 0, %s27
      %s44 = sphi 0, %s28
      %s48 = sphi 0, %s48
      %s50 = sphi 0, %s48
      %s51 = sphi 0, %s50
      %s65 = sphi 0, %s51
      %s69 = sphi 0, %s69
      %s71 = sphi 0, %s69
      %s72 = sphi 0, %s71
      %s86 = sphi 0, %s72
      %s90 = sphi 0, %s90
      %s92 = sphi 0, %s90
      %s93 = sphi 0, %s92
      %s107 = sphi 0, %s93
      %s111 = sphi 0, %s111
      %s113 = sphi 0, %s111
      %s114 = sphi 0, %s113
      %s128 = sphi 0, %s114
      %s134 = sphi 0, %s136
      %s137 = sphi 0, %s134
      %s138 = sphi 0, %s137
      %s154 = sphi 0, %s138
    $region4: #{matric_layer_forward.1} parent=1 // loop_header_branch
      %17 = sbr.rel (%p15) target = $region8
    $region5: #{matric_layer_forward.1} parent=1 // loop_body
      %s19 = ssub.s32 %s14, 1
      %s20 = ssub.s32 %s14, 2
      %s21 = sadd.s32 %s14, 1
      %s22 = ssub.s32 %s14, %s21
      %p23 = scmp.eq.s32.totalorder %s22, 0
      %s25 = sadd.s32 %s24, 1
      %s26 = scalar_select %p23, %s24, %s25
      %p29 = pneg %p23
      %p30 = scmp.eq.s32.totalorder %s14, 1
      %p31 = por %p29, %p30
      %p32 = scmp.ne.s32.totalorder %s24, %s27
      %p33 = scmp.eq.s32.totalorder %s14, 0
      %p34 = por %p32, %p33
      %p35 = scmp.ne.s32.totalorder %s24, %s27
      %p36 = scmp.eq.s32.totalorder %s19, 1
      %p37 = por %p35, %p36
      %p38 = scmp.ne.s32.totalorder %s27, %s28
      %p39 = scmp.eq.s32.totalorder %s19, 0
      %p40 = por %p38, %p39
      %p41 = scmp.ne.s32.totalorder %s27, %s28
      %p42 = scmp.eq.s32.totalorder %s20, 1
      %p43 = por %p41, %p42
      %p45 = scmp.ne.s32.totalorder %s28, %s44
      %p46 = scmp.eq.s32.totalorder %s20, 0
      %p47 = por %p45, %p46
      %s49 = sadd.s32 %s48, 1
      %p52 = scmp.eq.s32.totalorder %s14, 1
      %p53 = scmp.ne.s32.totalorder %s48, %s50
      %p54 = scmp.eq.s32.totalorder %s14, 0
      %p55 = por %p53, %p54
      %p56 = scmp.ne.s32.totalorder %s48, %s50
      %p57 = scmp.eq.s32.totalorder %s19, 1
      %p58 = por %p56, %p57
      %p59 = scmp.ne.s32.totalorder %s50, %s51
      %p60 = scmp.eq.s32.totalorder %s19, 0
      %p61 = por %p59, %p60
      %p62 = scmp.ne.s32.totalorder %s50, %s51
      %p63 = scmp.eq.s32.totalorder %s20, 1
      %p64 = por %p62, %p63
      %p66 = scmp.ne.s32.totalorder %s51, %s65
      %p67 = scmp.eq.s32.totalorder %s20, 0
      %p68 = por %p66, %p67
      %s70 = sadd.s32 %s69, 1
      %p73 = scmp.eq.s32.totalorder %s14, 1
      %p74 = scmp.ne.s32.totalorder %s69, %s71
      %p75 = scmp.eq.s32.totalorder %s14, 0
      %p76 = por %p74, %p75
      %p77 = scmp.ne.s32.totalorder %s69, %s71
      %p78 = scmp.eq.s32.totalorder %s19, 1
      %p79 = por %p77, %p78
      %p80 = scmp.ne.s32.totalorder %s71, %s72
      %p81 = scmp.eq.s32.totalorder %s19, 0
      %p82 = por %p80, %p81
      %p83 = scmp.ne.s32.totalorder %s71, %s72
      %p84 = scmp.eq.s32.totalorder %s20, 1
      %p85 = por %p83, %p84
      %p87 = scmp.ne.s32.totalorder %s72, %s86
      %p88 = scmp.eq.s32.totalorder %s20, 0
      %p89 = por %p87, %p88
      %s91 = sadd.s32 %s90, 1
      %p94 = scmp.eq.s32.totalorder %s14, 1
      %p95 = scmp.ne.s32.totalorder %s90, %s92
      %p96 = scmp.eq.s32.totalorder %s14, 0
      %p97 = por %p95, %p96
      %p98 = scmp.ne.s32.totalorder %s90, %s92
      %p99 = scmp.eq.s32.totalorder %s19, 1
      %p100 = por %p98, %p99
      %p101 = scmp.ne.s32.totalorder %s92, %s93
      %p102 = scmp.eq.s32.totalorder %s19, 0
      %p103 = por %p101, %p102
      %p104 = scmp.ne.s32.totalorder %s92, %s93
      %p105 = scmp.eq.s32.totalorder %s20, 1
      %p106 = por %p104, %p105
      %p108 = scmp.ne.s32.totalorder %s93, %s107
      %p109 = scmp.eq.s32.totalorder %s20, 0
      %p110 = por %p108, %p109
      %s112 = sadd.s32 %s111, 1
      %p115 = scmp.eq.s32.totalorder %s14, 1
      %p116 = scmp.ne.s32.totalorder %s111, %s113
      %p117 = scmp.eq.s32.totalorder %s14, 0
      %p118 = por %p116, %p117
      %p119 = scmp.ne.s32.totalorder %s111, %s113
      %p120 = scmp.eq.s32.totalorder %s19, 1
      %p121 = por %p119, %p120
      %p122 = scmp.ne.s32.totalorder %s113, %s114
      %p123 = scmp.eq.s32.totalorder %s19, 0
      %p124 = por %p122, %p123
      %p125 = scmp.ne.s32.totalorder %s113, %s114
      %p126 = scmp.eq.s32.totalorder %s20, 1
      %p127 = por %p125, %p126
      %p129 = scmp.ne.s32.totalorder %s114, %s128
      %p130 = scmp.eq.s32.totalorder %s20, 0
      %p131 = por %p129, %p130
      %s132 = ssub.s32 %s14, %s21
      %p133 = scmp.eq.s32.totalorder %s132, 0
      %s135 = sadd.s32 %s134, 1
      %s136 = scalar_select %p133, %s134, %s135
      %p139 = pneg %p133
      %p140 = scmp.eq.s32.totalorder %s14, 1
      %p141 = por %p139, %p140
      %p142 = scmp.ne.s32.totalorder %s134, %s137
      %p143 = scmp.eq.s32.totalorder %s14, 0
      %p144 = por %p142, %p143
      %p145 = scmp.ne.s32.totalorder %s134, %s137
      %p146 = scmp.eq.s32.totalorder %s19, 1
      %p147 = por %p145, %p146
      %p148 = scmp.ne.s32.totalorder %s137, %s138
      %p149 = scmp.eq.s32.totalorder %s19, 0
      %p150 = por %p148, %p149
      %p151 = scmp.ne.s32.totalorder %s137, %s138
      %p152 = scmp.eq.s32.totalorder %s20, 1
      %p153 = por %p151, %p152
      %p155 = scmp.ne.s32.totalorder %s138, %s154
      %p156 = scmp.eq.s32.totalorder %s20, 0
      %p157 = por %p155, %p156
      %p158 = scmp.le.s32.totalorder 1, %s14
      %p159 = scmp.lt.s32.totalorder %s14, 3
      %p160 = pnand %p158, %p159
      %p161 = pneg %p160
      // Predicated region
      $region9: #{matric_layer_forward.1} parent=5 // pred_check
        _
      $region10: #{matric_layer_forward.1} parent=5 // pred_check_branch
        %163 = sbr.rel (%p160) target = $region12
      $region11: #{matric_layer_forward.1} parent=5 // pred_region
        %s164 = ssub.s32 %s14, 1
        // Predicated region
        $region13: #{matric_layer_forward.1} parent=11 // pred_check
          %p165 = pneg %p61
        $region14: #{matric_layer_forward.1} parent=11 // pred_check_branch
          %167 = sbr.rel (%p165) target = $region16
        $region15: #{matric_layer_forward.1} parent=11 // pred_region
          _
        $region16: #{matric_layer_forward.1} parent=11 // pred_fallthru
          _
        // Predicated region
        $region17: #{matric_layer_forward.1} parent=11 // pred_check
          %p168 = pneg %p82
        $region18: #{matric_layer_forward.1} parent=11 // pred_check_branch
          %170 = sbr.rel (%p168) target = $region20
        $region19: #{matric_layer_forward.1} parent=11 // pred_region
          _
        $region20: #{matric_layer_forward.1} parent=11 // pred_fallthru
          _
        // Predicated region
        $region21: #{matric_layer_forward.1} parent=11 // pred_check
          %p171 = pneg %p103
        $region22: #{matric_layer_forward.1} parent=11 // pred_check_branch
          %173 = sbr.rel (%p171) target = $region24
        $region23: #{matric_layer_forward.1} parent=11 // pred_region
          _
        $region24: #{matric_layer_forward.1} parent=11 // pred_fallthru
          _
        // Predicated region
        $region25: #{matric_layer_forward.1} parent=11 // pred_check
          %p174 = pneg %p124
        $region26: #{matric_layer_forward.1} parent=11 // pred_check_branch
          %176 = sbr.rel (%p174) target = $region28
        $region27: #{matric_layer_forward.1} parent=11 // pred_region
          _
        $region28: #{matric_layer_forward.1} parent=11 // pred_fallthru
          _
      $region12: #{matric_layer_forward.1} parent=5 // pred_fallthru
        _
      %p177 = scmp.lt.s32.totalorder %s14, 2
      // Predicated region
      $region29: #{matric_layer_forward.1} parent=5 // pred_check
        %p178 = pneg %p177
      $region30: #{matric_layer_forward.1} parent=5 // pred_check_branch
        %180 = sbr.rel (%p178) target = $region32
      $region31: #{matric_layer_forward.1} parent=5 // pred_region
        // Predicated region
        $region33: #{matric_layer_forward.1} parent=31 // pred_check
          %p181 = pneg %p34
        $region34: #{matric_layer_forward.1} parent=31 // pred_check_branch
          %183 = sbr.rel (%p181) target = $region36
        $region35: #{matric_layer_forward.1} parent=31 // pred_region
          %s184 = smul.u32 8, %s14
          %p185 = scmp.lt.s32.totalorder %s184, 15
          %s186 = scalar_select %p185, %s184, 15
          %s187 = smul.addr %s186, 128
          %s188 = smul.addr %s187, 8
          %s189 = scalar_lea.vmem %s0, %s188
          %s190 = smul.u32 8, %s14
        $region36: #{matric_layer_forward.1} parent=31 // pred_fallthru
          _
      $region32: #{matric_layer_forward.1} parent=5 // pred_fallthru
        _
      %p191 = scmp.le.s32.totalorder 1, %s14
      %p192 = scmp.lt.s32.totalorder %s14, 3
      %p193 = pnand %p191, %p192
      %p194 = pneg %p193
      // Predicated region
      $region37: #{matric_layer_forward.1} parent=5 // pred_check
        _
      $region38: #{matric_layer_forward.1} parent=5 // pred_check_branch
        %196 = sbr.rel (%p193) target = $region40
      $region39: #{matric_layer_forward.1} parent=5 // pred_region
        %s197 = ssub.s32 %s14, 1
        %s198 = smul.u32 8, %s19
        %p199 = scmp.lt.s32.totalorder %s198, 15
        %s200 = scalar_select %p199, %s198, 15
        %s201 = smul.addr %s200, 128
        %s202 = smul.addr %s201, 8
        %s203 = scalar_lea.vmem %s0, %s202
        %p204 = pneg %p40
        %p205 = pneg %p37
        %p206 = pneg %p61
        %p207 = pneg %p58
        %p208 = pneg %p82
        %p209 = pneg %p79
        %p210 = pneg %p103
        %p211 = pneg %p100
        %p212 = pneg %p124
        %p213 = pneg %p121
        %p214 = pneg %p150
        %p215 = pneg %p147
        %s216 = sand.u32 %s137, 1
        %s217 = scalar_lea.sflag [#allocation3], %s216
        %s218 = sand.u32 %s137, 1
        %s219 = smul.addr %s218, 8
        %s220 = scalar_lea.vmem [#allocation2], %s219
        %s221 = smul.u32 8, %s19
        %p222 = scmp.lt.s32.totalorder %s221, 15
        %s223 = scalar_select %p222, %s221, 15
        %s224 = smul.addr %s223, 128
        %s225 = smul.addr %s224, 8
        %s226 = scalar_lea.vmem %s0, %s225
        %s227 = smul.u32 8, %s19
        %v228 = vld [vmem:[%s226] sm:$0xff]
        %v229 = vld [vmem:[%s226 + $0x8] sm:$0xff]
        %v230 = vld [vmem:[%s226 + $0x10] sm:$0xff]
        %v231 = vld [vmem:[%s226 + $0x18] sm:$0xff]
        %v232 = vld [vmem:[%s226 + $0x20] sm:$0xff]
        %v233 = vld [vmem:[%s226 + $0x28] sm:$0xff]
        %v234 = vld [vmem:[%s226 + $0x30] sm:$0xff]
        %v235 = vld [vmem:[%s226 + $0x38] sm:$0xff]
        %v236 = vld [vmem:[%s226 + $0x40] sm:$0xff]
        %v237 = vld [vmem:[%s226 + $0x48] sm:$0xff]
        %v238 = vld [vmem:[%s226 + $0x50] sm:$0xff]
        %v239 = vld [vmem:[%s226 + $0x58] sm:$0xff]
        %v240 = vld [vmem:[%s226 + $0x60] sm:$0xff]
        %v241 = vld [vmem:[%s226 + $0x68] sm:$0xff]
        %v242 = vld [vmem:[%s226 + $0x70] sm:$0xff]
        %v243 = vld [vmem:[%s226 + $0x78] sm:$0xff]
        %v244 = vld [vmem:[%s226 + $0x80] sm:$0xff]
        %v245 = vld [vmem:[%s226 + $0x88] sm:$0xff]
        %v246 = vld [vmem:[%s226 + $0x90] sm:$0xff]
        %v247 = vld [vmem:[%s226 + $0x98] sm:$0xff]
        %v248 = vld [vmem:[%s226 + $0xa0] sm:$0xff]
        %v249 = vld [vmem:[%s226 + $0xa8] sm:$0xff]
        %v250 = vld [vmem:[%s226 + $0xb0] sm:$0xff]
        %v251 = vld [vmem:[%s226 + $0xb8] sm:$0xff]
        %v252 = vld [vmem:[%s226 + $0xc0] sm:$0xff]
        %v253 = vld [vmem:[%s226 + $0xc8] sm:$0xff]
        %v254 = vld [vmem:[%s226 + $0xd0] sm:$0xff]
        %v255 = vld [vmem:[%s226 + $0xd8] sm:$0xff]
        %v256 = vld [vmem:[%s226 + $0xe0] sm:$0xff]
        %v257 = vld [vmem:[%s226 + $0xe8] sm:$0xff]
        %v258 = vld [vmem:[%s226 + $0xf0] sm:$0xff]
        %v259 = vld [vmem:[%s226 + $0xf8] sm:$0xff]
        %v260 = vld [vmem:[%s226 + $0x100] sm:$0xff]
        %v261 = vld [vmem:[%s226 + $0x108] sm:$0xff]
        %v262 = vld [vmem:[%s226 + $0x110] sm:$0xff]
        %v263 = vld [vmem:[%s226 + $0x118] sm:$0xff]
        %v264 = vld [vmem:[%s226 + $0x120] sm:$0xff]
        %v265 = vld [vmem:[%s226 + $0x128] sm:$0xff]
        %v266 = vld [vmem:[%s226 + $0x130] sm:$0xff]
        %v267 = vld [vmem:[%s226 + $0x138] sm:$0xff]
        %v268 = vld [vmem:[%s226 + $0x140] sm:$0xff]
        %v269 = vld [vmem:[%s226 + $0x148] sm:$0xff]
        %v270 = vld [vmem:[%s226 + $0x150] sm:$0xff]
        %v271 = vld [vmem:[%s226 + $0x158] sm:$0xff]
        %v272 = vld [vmem:[%s226 + $0x160] sm:$0xff]
        %v273 = vld [vmem:[%s226 + $0x168] sm:$0xff]
        %v274 = vld [vmem:[%s226 + $0x170] sm:$0xff]
        %v275 = vld [vmem:[%s226 + $0x178] sm:$0xff]
        %v276 = vld [vmem:[%s226 + $0x180] sm:$0xff]
        %v277 = vld [vmem:[%s226 + $0x188] sm:$0xff]
        %v278 = vld [vmem:[%s226 + $0x190] sm:$0xff]
        %v279 = vld [vmem:[%s226 + $0x198] sm:$0xff]
        %v280 = vld [vmem:[%s226 + $0x1a0] sm:$0xff]
        %v281 = vld [vmem:[%s226 + $0x1a8] sm:$0xff]
        %v282 = vld [vmem:[%s226 + $0x1b0] sm:$0xff]
        %v283 = vld [vmem:[%s226 + $0x1b8] sm:$0xff]
        %v284 = vld [vmem:[%s226 + $0x1c0] sm:$0xff]
        %v285 = vld [vmem:[%s226 + $0x1c8] sm:$0xff]
        %v286 = vld [vmem:[%s226 + $0x1d0] sm:$0xff]
        %v287 = vld [vmem:[%s226 + $0x1d8] sm:$0xff]
        %v288 = vld [vmem:[%s226 + $0x1e0] sm:$0xff]
        %v289 = vld [vmem:[%s226 + $0x1e8] sm:$0xff]
        %v290 = vld [vmem:[%s226 + $0x1f0] sm:$0xff]
        %v291 = vld [vmem:[%s226 + $0x1f8] sm:$0xff]
        %v292 = vld [vmem:[%s226 + $0x400] sm:$0xff]
        %v293 = vld [vmem:[%s226 + $0x408] sm:$0xff]
        %v294 = vld [vmem:[%s226 + $0x410] sm:$0xff]
        %v295 = vld [vmem:[%s226 + $0x418] sm:$0xff]
        %v296 = vld [vmem:[%s226 + $0x420] sm:$0xff]
        %v297 = vld [vmem:[%s226 + $0x428] sm:$0xff]
        %v298 = vld [vmem:[%s226 + $0x430] sm:$0xff]
        %v299 = vld [vmem:[%s226 + $0x438] sm:$0xff]
        %v300 = vld [vmem:[%s226 + $0x440] sm:$0xff]
        %v301 = vld [vmem:[%s226 + $0x448] sm:$0xff]
        %v302 = vld [vmem:[%s226 + $0x450] sm:$0xff]
        %v303 = vld [vmem:[%s226 + $0x458] sm:$0xff]
        %v304 = vld [vmem:[%s226 + $0x460] sm:$0xff]
        %v305 = vld [vmem:[%s226 + $0x468] sm:$0xff]
        %v306 = vld [vmem:[%s226 + $0x470] sm:$0xff]
        %v307 = vld [vmem:[%s226 + $0x478] sm:$0xff]
        %v308 = vld [vmem:[%s226 + $0x480] sm:$0xff]
        %v309 = vld [vmem:[%s226 + $0x488] sm:$0xff]
        %v310 = vld [vmem:[%s226 + $0x490] sm:$0xff]
        %v311 = vld [vmem:[%s226 + $0x498] sm:$0xff]
        %v312 = vld [vmem:[%s226 + $0x4a0] sm:$0xff]
        %v313 = vld [vmem:[%s226 + $0x4a8] sm:$0xff]
        %v314 = vld [vmem:[%s226 + $0x4b0] sm:$0xff]
        %v315 = vld [vmem:[%s226 + $0x4b8] sm:$0xff]
        %v316 = vld [vmem:[%s226 + $0x4c0] sm:$0xff]
        %v317 = vld [vmem:[%s226 + $0x4c8] sm:$0xff]
        %v318 = vld [vmem:[%s226 + $0x4d0] sm:$0xff]
        %v319 = vld [vmem:[%s226 + $0x4d8] sm:$0xff]
        %v320 = vld [vmem:[%s226 + $0x4e0] sm:$0xff]
        %v321 = vld [vmem:[%s226 + $0x4e8] sm:$0xff]
        %v322 = vld [vmem:[%s226 + $0x4f0] sm:$0xff]
        %v323 = vld [vmem:[%s226 + $0x4f8] sm:$0xff]
        %v324 = vld [vmem:[%s226 + $0x500] sm:$0xff]
        %v325 = vld [vmem:[%s226 + $0x508] sm:$0xff]
        %v326 = vld [vmem:[%s226 + $0x510] sm:$0xff]
        %v327 = vld [vmem:[%s226 + $0x518] sm:$0xff]
        %v328 = vld [vmem:[%s226 + $0x520] sm:$0xff]
        %v329 = vld [vmem:[%s226 + $0x528] sm:$0xff]
        %v330 = vld [vmem:[%s226 + $0x530] sm:$0xff]
        %v331 = vld [vmem:[%s226 + $0x538] sm:$0xff]
        %v332 = vld [vmem:[%s226 + $0x540] sm:$0xff]
        %v333 = vld [vmem:[%s226 + $0x548] sm:$0xff]
        %v334 = vld [vmem:[%s226 + $0x550] sm:$0xff]
        %v335 = vld [vmem:[%s226 + $0x558] sm:$0xff]
        %v336 = vld [vmem:[%s226 + $0x560] sm:$0xff]
        %v337 = vld [vmem:[%s226 + $0x568] sm:$0xff]
        %v338 = vld [vmem:[%s226 + $0x570] sm:$0xff]
        %v339 = vld [vmem:[%s226 + $0x578] sm:$0xff]
        %v340 = vld [vmem:[%s226 + $0x580] sm:$0xff]
        %v341 = vld [vmem:[%s226 + $0x588] sm:$0xff]
        %v342 = vld [vmem:[%s226 + $0x590] sm:$0xff]
        %v343 = vld [vmem:[%s226 + $0x598] sm:$0xff]
        %v344 = vld [vmem:[%s226 + $0x5a0] sm:$0xff]
        %v345 = vld [vmem:[%s226 + $0x5a8] sm:$0xff]
        %v346 = vld [vmem:[%s226 + $0x5b0] sm:$0xff]
        %v347 = vld [vmem:[%s226 + $0x5b8] sm:$0xff]
        %v348 = vld [vmem:[%s226 + $0x5c0] sm:$0xff]
        %v349 = vld [vmem:[%s226 + $0x5c8] sm:$0xff]
        %v350 = vld [vmem:[%s226 + $0x5d0] sm:$0xff]
        %v351 = vld [vmem:[%s226 + $0x5d8] sm:$0xff]
        %v352 = vld [vmem:[%s226 + $0x5e0] sm:$0xff]
        %v353 = vld [vmem:[%s226 + $0x5e8] sm:$0xff]
        %v354 = vld [vmem:[%s226 + $0x5f0] sm:$0xff]
        %v355 = vld [vmem:[%s226 + $0x5f8] sm:$0xff]
        %v356 = vld [vmem:[%s226 + $0x800] sm:$0xff]
        %v357 = vld [vmem:[%s226 + $0x808] sm:$0xff]
        %v358 = vld [vmem:[%s226 + $0x810] sm:$0xff]
        %v359 = vld [vmem:[%s226 + $0x818] sm:$0xff]
        %v360 = vld [vmem:[%s226 + $0x820] sm:$0xff]
        %v361 = vld [vmem:[%s226 + $0x828] sm:$0xff]
        %v362 = vld [vmem:[%s226 + $0x830] sm:$0xff]
        %v363 = vld [vmem:[%s226 + $0x838] sm:$0xff]
        %v364 = vld [vmem:[%s226 + $0x840] sm:$0xff]
        %v365 = vld [vmem:[%s226 + $0x848] sm:$0xff]
        %v366 = vld [vmem:[%s226 + $0x850] sm:$0xff]
        %v367 = vld [vmem:[%s226 + $0x858] sm:$0xff]
        %v368 = vld [vmem:[%s226 + $0x860] sm:$0xff]
        %v369 = vld [vmem:[%s226 + $0x868] sm:$0xff]
        %v370 = vld [vmem:[%s226 + $0x870] sm:$0xff]
        %v371 = vld [vmem:[%s226 + $0x878] sm:$0xff]
        %v372 = vld [vmem:[%s226 + $0x880] sm:$0xff]
        %v373 = vld [vmem:[%s226 + $0x888] sm:$0xff]
        %v374 = vld [vmem:[%s226 + $0x890] sm:$0xff]
        %v375 = vld [vmem:[%s226 + $0x898] sm:$0xff]
        %v376 = vld [vmem:[%s226 + $0x8a0] sm:$0xff]
        %v377 = vld [vmem:[%s226 + $0x8a8] sm:$0xff]
        %v378 = vld [vmem:[%s226 + $0x8b0] sm:$0xff]
        %v379 = vld [vmem:[%s226 + $0x8b8] sm:$0xff]
        %v380 = vld [vmem:[%s226 + $0x8c0] sm:$0xff]
        %v381 = vld [vmem:[%s226 + $0x8c8] sm:$0xff]
        %v382 = vld [vmem:[%s226 + $0x8d0] sm:$0xff]
        %v383 = vld [vmem:[%s226 + $0x8d8] sm:$0xff]
        %v384 = vld [vmem:[%s226 + $0x8e0] sm:$0xff]
        %v385 = vld [vmem:[%s226 + $0x8e8] sm:$0xff]
        %v386 = vld [vmem:[%s226 + $0x8f0] sm:$0xff]
        %v387 = vld [vmem:[%s226 + $0x8f8] sm:$0xff]
        %v388 = vld [vmem:[%s226 + $0x900] sm:$0xff]
        %v389 = vld [vmem:[%s226 + $0x908] sm:$0xff]
        %v390 = vld [vmem:[%s226 + $0x910] sm:$0xff]
        %v391 = vld [vmem:[%s226 + $0x918] sm:$0xff]
        %v392 = vld [vmem:[%s226 + $0x920] sm:$0xff]
        %v393 = vld [vmem:[%s226 + $0x928] sm:$0xff]
        %v394 = vld [vmem:[%s226 + $0x930] sm:$0xff]
        %v395 = vld [vmem:[%s226 + $0x938] sm:$0xff]
        %v396 = vld [vmem:[%s226 + $0x940] sm:$0xff]
        %v397 = vld [vmem:[%s226 + $0x948] sm:$0xff]
        %v398 = vld [vmem:[%s226 + $0x950] sm:$0xff]
        %v399 = vld [vmem:[%s226 + $0x958] sm:$0xff]
        %v400 = vld [vmem:[%s226 + $0x960] sm:$0xff]
        %v401 = vld [vmem:[%s226 + $0x968] sm:$0xff]
        %v402 = vld [vmem:[%s226 + $0x970] sm:$0xff]
        %v403 = vld [vmem:[%s226 + $0x978] sm:$0xff]
        %v404 = vld [vmem:[%s226 + $0x980] sm:$0xff]
        %v405 = vld [vmem:[%s226 + $0x988] sm:$0xff]
        %v406 = vld [vmem:[%s226 + $0x990] sm:$0xff]
        %v407 = vld [vmem:[%s226 + $0x998] sm:$0xff]
        %v408 = vld [vmem:[%s226 + $0x9a0] sm:$0xff]
        %v409 = vld [vmem:[%s226 + $0x9a8] sm:$0xff]
        %v410 = vld [vmem:[%s226 + $0x9b0] sm:$0xff]
        %v411 = vld [vmem:[%s226 + $0x9b8] sm:$0xff]
        %v412 = vld [vmem:[%s226 + $0x9c0] sm:$0xff]
        %v413 = vld [vmem:[%s226 + $0x9c8] sm:$0xff]
        %v414 = vld [vmem:[%s226 + $0x9d0] sm:$0xff]
        %v415 = vld [vmem:[%s226 + $0x9d8] sm:$0xff]
        %v416 = vld [vmem:[%s226 + $0x9e0] sm:$0xff]
        %v417 = vld [vmem:[%s226 + $0x9e8] sm:$0xff]
        %v418 = vld [vmem:[%s226 + $0x9f0] sm:$0xff]
        %v419 = vld [vmem:[%s226 + $0x9f8] sm:$0xff]
        %v420 = vld [vmem:[%s226 + $0xc00] sm:$0xff]
        %v421 = vld [vmem:[%s226 + $0xc08] sm:$0xff]
        %v422 = vld [vmem:[%s226 + $0xc10] sm:$0xff]
        %v423 = vld [vmem:[%s226 + $0xc18] sm:$0xff]
        %v424 = vld [vmem:[%s226 + $0xc20] sm:$0xff]
        %v425 = vld [vmem:[%s226 + $0xc28] sm:$0xff]
        %v426 = vld [vmem:[%s226 + $0xc30] sm:$0xff]
        %v427 = vld [vmem:[%s226 + $0xc38] sm:$0xff]
        %v428 = vld [vmem:[%s226 + $0xc40] sm:$0xff]
        %v429 = vld [vmem:[%s226 + $0xc48] sm:$0xff]
        %v430 = vld [vmem:[%s226 + $0xc50] sm:$0xff]
        %v431 = vld [vmem:[%s226 + $0xc58] sm:$0xff]
        %v432 = vld [vmem:[%s226 + $0xc60] sm:$0xff]
        %v433 = vld [vmem:[%s226 + $0xc68] sm:$0xff]
        %v434 = vld [vmem:[%s226 + $0xc70] sm:$0xff]
        %v435 = vld [vmem:[%s226 + $0xc78] sm:$0xff]
        %v436 = vld [vmem:[%s226 + $0xc80] sm:$0xff]
        %v437 = vld [vmem:[%s226 + $0xc88] sm:$0xff]
        %v438 = vld [vmem:[%s226 + $0xc90] sm:$0xff]
        %v439 = vld [vmem:[%s226 + $0xc98] sm:$0xff]
        %v440 = vld [vmem:[%s226 + $0xca0] sm:$0xff]
        %v441 = vld [vmem:[%s226 + $0xca8] sm:$0xff]
        %v442 = vld [vmem:[%s226 + $0xcb0] sm:$0xff]
        %v443 = vld [vmem:[%s226 + $0xcb8] sm:$0xff]
        %v444 = vld [vmem:[%s226 + $0xcc0] sm:$0xff]
        %v445 = vld [vmem:[%s226 + $0xcc8] sm:$0xff]
        %v446 = vld [vmem:[%s226 + $0xcd0] sm:$0xff]
        %v447 = vld [vmem:[%s226 + $0xcd8] sm:$0xff]
        %v448 = vld [vmem:[%s226 + $0xce0] sm:$0xff]
        %v449 = vld [vmem:[%s226 + $0xce8] sm:$0xff]
        %v450 = vld [vmem:[%s226 + $0xcf0] sm:$0xff]
        %v451 = vld [vmem:[%s226 + $0xcf8] sm:$0xff]
        %v452 = vld [vmem:[%s226 + $0xd00] sm:$0xff]
        %v453 = vld [vmem:[%s226 + $0xd08] sm:$0xff]
        %v454 = vld [vmem:[%s226 + $0xd10] sm:$0xff]
        %v455 = vld [vmem:[%s226 + $0xd18] sm:$0xff]
        %v456 = vld [vmem:[%s226 + $0xd20] sm:$0xff]
        %v457 = vld [vmem:[%s226 + $0xd28] sm:$0xff]
        %v458 = vld [vmem:[%s226 + $0xd30] sm:$0xff]
        %v459 = vld [vmem:[%s226 + $0xd38] sm:$0xff]
        %v460 = vld [vmem:[%s226 + $0xd40] sm:$0xff]
        %v461 = vld [vmem:[%s226 + $0xd48] sm:$0xff]
        %v462 = vld [vmem:[%s226 + $0xd50] sm:$0xff]
        %v463 = vld [vmem:[%s226 + $0xd58] sm:$0xff]
        %v464 = vld [vmem:[%s226 + $0xd60] sm:$0xff]
        %v465 = vld [vmem:[%s226 + $0xd68] sm:$0xff]
        %v466 = vld [vmem:[%s226 + $0xd70] sm:$0xff]
        %v467 = vld [vmem:[%s226 + $0xd78] sm:$0xff]
        %v468 = vld [vmem:[%s226 + $0xd80] sm:$0xff]
        %v469 = vld [vmem:[%s226 + $0xd88] sm:$0xff]
        %v470 = vld [vmem:[%s226 + $0xd90] sm:$0xff]
        %v471 = vld [vmem:[%s226 + $0xd98] sm:$0xff]
        %v472 = vld [vmem:[%s226 + $0xda0] sm:$0xff]
        %v473 = vld [vmem:[%s226 + $0xda8] sm:$0xff]
        %v474 = vld [vmem:[%s226 + $0xdb0] sm:$0xff]
        %v475 = vld [vmem:[%s226 + $0xdb8] sm:$0xff]
        %v476 = vld [vmem:[%s226 + $0xdc0] sm:$0xff]
        %v477 = vld [vmem:[%s226 + $0xdc8] sm:$0xff]
        %v478 = vld [vmem:[%s226 + $0xdd0] sm:$0xff]
        %v479 = vld [vmem:[%s226 + $0xdd8] sm:$0xff]
        %v480 = vld [vmem:[%s226 + $0xde0] sm:$0xff]
        %v481 = vld [vmem:[%s226 + $0xde8] sm:$0xff]
        %v482 = vld [vmem:[%s226 + $0xdf0] sm:$0xff]
        %v483 = vld [vmem:[%s226 + $0xdf8] sm:$0xff]
        %v484 = vld [vmem:[%s226 + $0x1000] sm:$0xff]
        %v485 = vld [vmem:[%s226 + $0x1008] sm:$0xff]
        %v486 = vld [vmem:[%s226 + $0x1010] sm:$0xff]
        %v487 = vld [vmem:[%s226 + $0x1018] sm:$0xff]
        %v488 = vld [vmem:[%s226 + $0x1020] sm:$0xff]
        %v489 = vld [vmem:[%s226 + $0x1028] sm:$0xff]
        %v490 = vld [vmem:[%s226 + $0x1030] sm:$0xff]
        %v491 = vld [vmem:[%s226 + $0x1038] sm:$0xff]
        %v492 = vld [vmem:[%s226 + $0x1040] sm:$0xff]
        %v493 = vld [vmem:[%s226 + $0x1048] sm:$0xff]
        %v494 = vld [vmem:[%s226 + $0x1050] sm:$0xff]
        %v495 = vld [vmem:[%s226 + $0x1058] sm:$0xff]
        %v496 = vld [vmem:[%s226 + $0x1060] sm:$0xff]
        %v497 = vld [vmem:[%s226 + $0x1068] sm:$0xff]
        %v498 = vld [vmem:[%s226 + $0x1070] sm:$0xff]
        %v499 = vld [vmem:[%s226 + $0x1078] sm:$0xff]
        %v500 = vld [vmem:[%s226 + $0x1080] sm:$0xff]
        %v501 = vld [vmem:[%s226 + $0x1088] sm:$0xff]
        %v502 = vld [vmem:[%s226 + $0x1090] sm:$0xff]
        %v503 = vld [vmem:[%s226 + $0x1098] sm:$0xff]
        %v504 = vld [vmem:[%s226 + $0x10a0] sm:$0xff]
        %v505 = vld [vmem:[%s226 + $0x10a8] sm:$0xff]
        %v506 = vld [vmem:[%s226 + $0x10b0] sm:$0xff]
        %v507 = vld [vmem:[%s226 + $0x10b8] sm:$0xff]
        %v508 = vld [vmem:[%s226 + $0x10c0] sm:$0xff]
        %v509 = vld [vmem:[%s226 + $0x10c8] sm:$0xff]
        %v510 = vld [vmem:[%s226 + $0x10d0] sm:$0xff]
        %v511 = vld [vmem:[%s226 + $0x10d8] sm:$0xff]
        %v512 = vld [vmem:[%s226 + $0x10e0] sm:$0xff]
        %v513 = vld [vmem:[%s226 + $0x10e8] sm:$0xff]
        %v514 = vld [vmem:[%s226 + $0x10f0] sm:$0xff]
        %v515 = vld [vmem:[%s226 + $0x10f8] sm:$0xff]
        %v516 = vld [vmem:[%s226 + $0x1100] sm:$0xff]
        %v517 = vld [vmem:[%s226 + $0x1108] sm:$0xff]
        %v518 = vld [vmem:[%s226 + $0x1110] sm:$0xff]
        %v519 = vld [vmem:[%s226 + $0x1118] sm:$0xff]
        %v520 = vld [vmem:[%s226 + $0x1120] sm:$0xff]
        %v521 = vld [vmem:[%s226 + $0x1128] sm:$0xff]
        %v522 = vld [vmem:[%s226 + $0x1130] sm:$0xff]
        %v523 = vld [vmem:[%s226 + $0x1138] sm:$0xff]
        %v524 = vld [vmem:[%s226 + $0x1140] sm:$0xff]
        %v525 = vld [vmem:[%s226 + $0x1148] sm:$0xff]
        %v526 = vld [vmem:[%s226 + $0x1150] sm:$0xff]
        %v527 = vld [vmem:[%s226 + $0x1158] sm:$0xff]
        %v528 = vld [vmem:[%s226 + $0x1160] sm:$0xff]
        %v529 = vld [vmem:[%s226 + $0x1168] sm:$0xff]
        %v530 = vld [vmem:[%s226 + $0x1170] sm:$0xff]
        %v531 = vld [vmem:[%s226 + $0x1178] sm:$0xff]
        %v532 = vld [vmem:[%s226 + $0x1180] sm:$0xff]
        %v533 = vld [vmem:[%s226 + $0x1188] sm:$0xff]
        %v534 = vld [vmem:[%s226 + $0x1190] sm:$0xff]
        %v535 = vld [vmem:[%s226 + $0x1198] sm:$0xff]
        %v536 = vld [vmem:[%s226 + $0x11a0] sm:$0xff]
        %v537 = vld [vmem:[%s226 + $0x11a8] sm:$0xff]
        %v538 = vld [vmem:[%s226 + $0x11b0] sm:$0xff]
        %v539 = vld [vmem:[%s226 + $0x11b8] sm:$0xff]
        %v540 = vld [vmem:[%s226 + $0x11c0] sm:$0xff]
        %v541 = vld [vmem:[%s226 + $0x11c8] sm:$0xff]
        %v542 = vld [vmem:[%s226 + $0x11d0] sm:$0xff]
        %v543 = vld [vmem:[%s226 + $0x11d8] sm:$0xff]
        %v544 = vld [vmem:[%s226 + $0x11e0] sm:$0xff]
        %v545 = vld [vmem:[%s226 + $0x11e8] sm:$0xff]
        %v546 = vld [vmem:[%s226 + $0x11f0] sm:$0xff]
        %v547 = vld [vmem:[%s226 + $0x11f8] sm:$0xff]
        %v548 = vld [vmem:[%s226 + $0x1400] sm:$0xff]
        %v549 = vld [vmem:[%s226 + $0x1408] sm:$0xff]
        %v550 = vld [vmem:[%s226 + $0x1410] sm:$0xff]
        %v551 = vld [vmem:[%s226 + $0x1418] sm:$0xff]
        %v552 = vld [vmem:[%s226 + $0x1420] sm:$0xff]
        %v553 = vld [vmem:[%s226 + $0x1428] sm:$0xff]
        %v554 = vld [vmem:[%s226 + $0x1430] sm:$0xff]
        %v555 = vld [vmem:[%s226 + $0x1438] sm:$0xff]
        %v556 = vld [vmem:[%s226 + $0x1440] sm:$0xff]
        %v557 = vld [vmem:[%s226 + $0x1448] sm:$0xff]
        %v558 = vld [vmem:[%s226 + $0x1450] sm:$0xff]
        %v559 = vld [vmem:[%s226 + $0x1458] sm:$0xff]
        %v560 = vld [vmem:[%s226 + $0x1460] sm:$0xff]
        %v561 = vld [vmem:[%s226 + $0x1468] sm:$0xff]
        %v562 = vld [vmem:[%s226 + $0x1470] sm:$0xff]
        %v563 = vld [vmem:[%s226 + $0x1478] sm:$0xff]
        %v564 = vld [vmem:[%s226 + $0x1480] sm:$0xff]
        %v565 = vld [vmem:[%s226 + $0x1488] sm:$0xff]
        %v566 = vld [vmem:[%s226 + $0x1490] sm:$0xff]
        %v567 = vld [vmem:[%s226 + $0x1498] sm:$0xff]
        %v568 = vld [vmem:[%s226 + $0x14a0] sm:$0xff]
        %v569 = vld [vmem:[%s226 + $0x14a8] sm:$0xff]
        %v570 = vld [vmem:[%s226 + $0x14b0] sm:$0xff]
        %v571 = vld [vmem:[%s226 + $0x14b8] sm:$0xff]
        %v572 = vld [vmem:[%s226 + $0x14c0] sm:$0xff]
        %v573 = vld [vmem:[%s226 + $0x14c8] sm:$0xff]
        %v574 = vld [vmem:[%s226 + $0x14d0] sm:$0xff]
        %v575 = vld [vmem:[%s226 + $0x14d8] sm:$0xff]
        %v576 = vld [vmem:[%s226 + $0x14e0] sm:$0xff]
        %v577 = vld [vmem:[%s226 + $0x14e8] sm:$0xff]
        %v578 = vld [vmem:[%s226 + $0x14f0] sm:$0xff]
        %v579 = vld [vmem:[%s226 + $0x14f8] sm:$0xff]
        %v580 = vld [vmem:[%s226 + $0x1500] sm:$0xff]
        %v581 = vld [vmem:[%s226 + $0x1508] sm:$0xff]
        %v582 = vld [vmem:[%s226 + $0x1510] sm:$0xff]
        %v583 = vld [vmem:[%s226 + $0x1518] sm:$0xff]
        %v584 = vld [vmem:[%s226 + $0x1520] sm:$0xff]
        %v585 = vld [vmem:[%s226 + $0x1528] sm:$0xff]
        %v586 = vld [vmem:[%s226 + $0x1530] sm:$0xff]
        %v587 = vld [vmem:[%s226 + $0x1538] sm:$0xff]
        %v588 = vld [vmem:[%s226 + $0x1540] sm:$0xff]
        %v589 = vld [vmem:[%s226 + $0x1548] sm:$0xff]
        %v590 = vld [vmem:[%s226 + $0x1550] sm:$0xff]
        %v591 = vld [vmem:[%s226 + $0x1558] sm:$0xff]
        %v592 = vld [vmem:[%s226 + $0x1560] sm:$0xff]
        %v593 = vld [vmem:[%s226 + $0x1568] sm:$0xff]
        %v594 = vld [vmem:[%s226 + $0x1570] sm:$0xff]
        %v595 = vld [vmem:[%s226 + $0x1578] sm:$0xff]
        %v596 = vld [vmem:[%s226 + $0x1580] sm:$0xff]
        %v597 = vld [vmem:[%s226 + $0x1588] sm:$0xff]
        %v598 = vld [vmem:[%s226 + $0x1590] sm:$0xff]
        %v599 = vld [vmem:[%s226 + $0x1598] sm:$0xff]
        %v600 = vld [vmem:[%s226 + $0x15a0] sm:$0xff]
        %v601 = vld [vmem:[%s226 + $0x15a8] sm:$0xff]
        %v602 = vld [vmem:[%s226 + $0x15b0] sm:$0xff]
        %v603 = vld [vmem:[%s226 + $0x15b8] sm:$0xff]
        %v604 = vld [vmem:[%s226 + $0x15c0] sm:$0xff]
        %v605 = vld [vmem:[%s226 + $0x15c8] sm:$0xff]
        %v606 = vld [vmem:[%s226 + $0x15d0] sm:$0xff]
        %v607 = vld [vmem:[%s226 + $0x15d8] sm:$0xff]
        %v608 = vld [vmem:[%s226 + $0x15e0] sm:$0xff]
        %v609 = vld [vmem:[%s226 + $0x15e8] sm:$0xff]
        %v610 = vld [vmem:[%s226 + $0x15f0] sm:$0xff]
        %v611 = vld [vmem:[%s226 + $0x15f8] sm:$0xff]
        %v612 = vld [vmem:[%s226 + $0x1800] sm:$0xff]
        %v613 = vld [vmem:[%s226 + $0x1808] sm:$0xff]
        %v614 = vld [vmem:[%s226 + $0x1810] sm:$0xff]
        %v615 = vld [vmem:[%s226 + $0x1818] sm:$0xff]
        %v616 = vld [vmem:[%s226 + $0x1820] sm:$0xff]
        %v617 = vld [vmem:[%s226 + $0x1828] sm:$0xff]
        %v618 = vld [vmem:[%s226 + $0x1830] sm:$0xff]
        %v619 = vld [vmem:[%s226 + $0x1838] sm:$0xff]
        %v620 = vld [vmem:[%s226 + $0x1840] sm:$0xff]
        %v621 = vld [vmem:[%s226 + $0x1848] sm:$0xff]
        %v622 = vld [vmem:[%s226 + $0x1850] sm:$0xff]
        %v623 = vld [vmem:[%s226 + $0x1858] sm:$0xff]
        %v624 = vld [vmem:[%s226 + $0x1860] sm:$0xff]
        %v625 = vld [vmem:[%s226 + $0x1868] sm:$0xff]
        %v626 = vld [vmem:[%s226 + $0x1870] sm:$0xff]
        %v627 = vld [vmem:[%s226 + $0x1878] sm:$0xff]
        %v628 = vld [vmem:[%s226 + $0x1880] sm:$0xff]
        %v629 = vld [vmem:[%s226 + $0x1888] sm:$0xff]
        %v630 = vld [vmem:[%s226 + $0x1890] sm:$0xff]
        %v631 = vld [vmem:[%s226 + $0x1898] sm:$0xff]
        %v632 = vld [vmem:[%s226 + $0x18a0] sm:$0xff]
        %v633 = vld [vmem:[%s226 + $0x18a8] sm:$0xff]
        %v634 = vld [vmem:[%s226 + $0x18b0] sm:$0xff]
        %v635 = vld [vmem:[%s226 + $0x18b8] sm:$0xff]
        %v636 = vld [vmem:[%s226 + $0x18c0] sm:$0xff]
        %v637 = vld [vmem:[%s226 + $0x18c8] sm:$0xff]
        %v638 = vld [vmem:[%s226 + $0x18d0] sm:$0xff]
        %v639 = vld [vmem:[%s226 + $0x18d8] sm:$0xff]
        %v640 = vld [vmem:[%s226 + $0x18e0] sm:$0xff]
        %v641 = vld [vmem:[%s226 + $0x18e8] sm:$0xff]
        %v642 = vld [vmem:[%s226 + $0x18f0] sm:$0xff]
        %v643 = vld [vmem:[%s226 + $0x18f8] sm:$0xff]
        %v644 = vld [vmem:[%s226 + $0x1900] sm:$0xff]
        %v645 = vld [vmem:[%s226 + $0x1908] sm:$0xff]
        %v646 = vld [vmem:[%s226 + $0x1910] sm:$0xff]
        %v647 = vld [vmem:[%s226 + $0x1918] sm:$0xff]
        %v648 = vld [vmem:[%s226 + $0x1920] sm:$0xff]
        %v649 = vld [vmem:[%s226 + $0x1928] sm:$0xff]
        %v650 = vld [vmem:[%s226 + $0x1930] sm:$0xff]
        %v651 = vld [vmem:[%s226 + $0x1938] sm:$0xff]
        %v652 = vld [vmem:[%s226 + $0x1940] sm:$0xff]
        %v653 = vld [vmem:[%s226 + $0x1948] sm:$0xff]
        %v654 = vld [vmem:[%s226 + $0x1950] sm:$0xff]
        %v655 = vld [vmem:[%s226 + $0x1958] sm:$0xff]
        %v656 = vld [vmem:[%s226 + $0x1960] sm:$0xff]
        %v657 = vld [vmem:[%s226 + $0x1968] sm:$0xff]
        %v658 = vld [vmem:[%s226 + $0x1970] sm:$0xff]
        %v659 = vld [vmem:[%s226 + $0x1978] sm:$0xff]
        %v660 = vld [vmem:[%s226 + $0x1980] sm:$0xff]
        %v661 = vld [vmem:[%s226 + $0x1988] sm:$0xff]
        %v662 = vld [vmem:[%s226 + $0x1990] sm:$0xff]
        %v663 = vld [vmem:[%s226 + $0x1998] sm:$0xff]
        %v664 = vld [vmem:[%s226 + $0x19a0] sm:$0xff]
        %v665 = vld [vmem:[%s226 + $0x19a8] sm:$0xff]
        %v666 = vld [vmem:[%s226 + $0x19b0] sm:$0xff]
        %v667 = vld [vmem:[%s226 + $0x19b8] sm:$0xff]
        %v668 = vld [vmem:[%s226 + $0x19c0] sm:$0xff]
        %v669 = vld [vmem:[%s226 + $0x19c8] sm:$0xff]
        %v670 = vld [vmem:[%s226 + $0x19d0] sm:$0xff]
        %v671 = vld [vmem:[%s226 + $0x19d8] sm:$0xff]
        %v672 = vld [vmem:[%s226 + $0x19e0] sm:$0xff]
        %v673 = vld [vmem:[%s226 + $0x19e8] sm:$0xff]
        %v674 = vld [vmem:[%s226 + $0x19f0] sm:$0xff]
        %v675 = vld [vmem:[%s226 + $0x19f8] sm:$0xff]
        %v676 = vld [vmem:[%s226 + $0x1c00] sm:$0xff]
        %v677 = vld [vmem:[%s226 + $0x1c08] sm:$0xff]
        %v678 = vld [vmem:[%s226 + $0x1c10] sm:$0xff]
        %v679 = vld [vmem:[%s226 + $0x1c18] sm:$0xff]
        %v680 = vld [vmem:[%s226 + $0x1c20] sm:$0xff]
        %v681 = vld [vmem:[%s226 + $0x1c28] sm:$0xff]
        %v682 = vld [vmem:[%s226 + $0x1c30] sm:$0xff]
        %v683 = vld [vmem:[%s226 + $0x1c38] sm:$0xff]
        %v684 = vld [vmem:[%s226 + $0x1c40] sm:$0xff]
        %v685 = vld [vmem:[%s226 + $0x1c48] sm:$0xff]
        %v686 = vld [vmem:[%s226 + $0x1c50] sm:$0xff]
        %v687 = vld [vmem:[%s226 + $0x1c58] sm:$0xff]
        %v688 = vld [vmem:[%s226 + $0x1c60] sm:$0xff]
        %v689 = vld [vmem:[%s226 + $0x1c68] sm:$0xff]
        %v690 = vld [vmem:[%s226 + $0x1c70] sm:$0xff]
        %v691 = vld [vmem:[%s226 + $0x1c78] sm:$0xff]
        %v692 = vld [vmem:[%s226 + $0x1c80] sm:$0xff]
        %v693 = vld [vmem:[%s226 + $0x1c88] sm:$0xff]
        %v694 = vld [vmem:[%s226 + $0x1c90] sm:$0xff]
        %v695 = vld [vmem:[%s226 + $0x1c98] sm:$0xff]
        %v696 = vld [vmem:[%s226 + $0x1ca0] sm:$0xff]
        %v697 = vld [vmem:[%s226 + $0x1ca8] sm:$0xff]
        %v698 = vld [vmem:[%s226 + $0x1cb0] sm:$0xff]
        %v699 = vld [vmem:[%s226 + $0x1cb8] sm:$0xff]
        %v700 = vld [vmem:[%s226 + $0x1cc0] sm:$0xff]
        %v701 = vld [vmem:[%s226 + $0x1cc8] sm:$0xff]
        %v702 = vld [vmem:[%s226 + $0x1cd0] sm:$0xff]
        %v703 = vld [vmem:[%s226 + $0x1cd8] sm:$0xff]
        %v704 = vld [vmem:[%s226 + $0x1ce0] sm:$0xff]
        %v705 = vld [vmem:[%s226 + $0x1ce8] sm:$0xff]
        %v706 = vld [vmem:[%s226 + $0x1cf0] sm:$0xff]
        %v707 = vld [vmem:[%s226 + $0x1cf8] sm:$0xff]
        %v708 = vld [vmem:[%s226 + $0x1d00] sm:$0xff]
        %v709 = vld [vmem:[%s226 + $0x1d08] sm:$0xff]
        %v710 = vld [vmem:[%s226 + $0x1d10] sm:$0xff]
        %v711 = vld [vmem:[%s226 + $0x1d18] sm:$0xff]
        %v712 = vld [vmem:[%s226 + $0x1d20] sm:$0xff]
        %v713 = vld [vmem:[%s226 + $0x1d28] sm:$0xff]
        %v714 = vld [vmem:[%s226 + $0x1d30] sm:$0xff]
        %v715 = vld [vmem:[%s226 + $0x1d38] sm:$0xff]
        %v716 = vld [vmem:[%s226 + $0x1d40] sm:$0xff]
        %v717 = vld [vmem:[%s226 + $0x1d48] sm:$0xff]
        %v718 = vld [vmem:[%s226 + $0x1d50] sm:$0xff]
        %v719 = vld [vmem:[%s226 + $0x1d58] sm:$0xff]
        %v720 = vld [vmem:[%s226 + $0x1d60] sm:$0xff]
        %v721 = vld [vmem:[%s226 + $0x1d68] sm:$0xff]
        %v722 = vld [vmem:[%s226 + $0x1d70] sm:$0xff]
        %v723 = vld [vmem:[%s226 + $0x1d78] sm:$0xff]
        %v724 = vld [vmem:[%s226 + $0x1d80] sm:$0xff]
        %v725 = vld [vmem:[%s226 + $0x1d88] sm:$0xff]
        %v726 = vld [vmem:[%s226 + $0x1d90] sm:$0xff]
        %v727 = vld [vmem:[%s226 + $0x1d98] sm:$0xff]
        %v728 = vld [vmem:[%s226 + $0x1da0] sm:$0xff]
        %v729 = vld [vmem:[%s226 + $0x1da8] sm:$0xff]
        %v730 = vld [vmem:[%s226 + $0x1db0] sm:$0xff]
        %v731 = vld [vmem:[%s226 + $0x1db8] sm:$0xff]
        %v732 = vld [vmem:[%s226 + $0x1dc0] sm:$0xff]
        %v733 = vld [vmem:[%s226 + $0x1dc8] sm:$0xff]
        %v734 = vld [vmem:[%s226 + $0x1dd0] sm:$0xff]
        %v735 = vld [vmem:[%s226 + $0x1dd8] sm:$0xff]
        %v736 = vld [vmem:[%s226 + $0x1de0] sm:$0xff]
        %v737 = vld [vmem:[%s226 + $0x1de8] sm:$0xff]
        %v738 = vld [vmem:[%s226 + $0x1df0] sm:$0xff]
        %v739 = vld [vmem:[%s226 + $0x1df8] sm:$0xff]
        %v740 = vadd.f32 %v228, %v244
        %v741 = vadd.f32 %v740, %v260
        %v742 = vadd.f32 %v741, %v276
        %v743 = vrot.slane %v742, 4
        %v744 = vadd.f32 %v742, %v743
        %v745 = vrot.slane %v744, 2
        %v746 = vadd.f32 %v744, %v745
        %v747 = vrot.slane %v746, 1
        %v748 = vadd.f32 %v746, %v747
        %v749 = vadd.f32 %v229, %v245
        %v750 = vadd.f32 %v749, %v261
        %v751 = vadd.f32 %v750, %v277
        %v752 = vrot.slane %v751, 4
        %v753 = vadd.f32 %v751, %v752
        %v754 = vrot.slane %v753, 2
        %v755 = vadd.f32 %v753, %v754
        %v756 = vrot.slane %v755, 1
        %v757 = vadd.f32 %v755, %v756
        %v758 = vadd.f32 %v230, %v246
        %v759 = vadd.f32 %v758, %v262
        %v760 = vadd.f32 %v759, %v278
        %v761 = vrot.slane %v760, 4
        %v762 = vadd.f32 %v760, %v761
        %v763 = vrot.slane %v762, 2
        %v764 = vadd.f32 %v762, %v763
        %v765 = vrot.slane %v764, 1
        %v766 = vadd.f32 %v764, %v765
        %v767 = vadd.f32 %v231, %v247
        %v768 = vadd.f32 %v767, %v263
        %v769 = vadd.f32 %v768, %v279
        %v770 = vrot.slane %v769, 4
        %v771 = vadd.f32 %v769, %v770
        %v772 = vrot.slane %v771, 2
        %v773 = vadd.f32 %v771, %v772
        %v774 = vrot.slane %v773, 1
        %v775 = vadd.f32 %v773, %v774
        %v776 = vadd.f32 %v232, %v248
        %v777 = vadd.f32 %v776, %v264
        %v778 = vadd.f32 %v777, %v280
        %v779 = vrot.slane %v778, 4
        %v780 = vadd.f32 %v778, %v779
        %v781 = vrot.slane %v780, 2
        %v782 = vadd.f32 %v780, %v781
        %v783 = vrot.slane %v782, 1
        %v784 = vadd.f32 %v782, %v783
        %v785 = vadd.f32 %v233, %v249
        %v786 = vadd.f32 %v785, %v265
        %v787 = vadd.f32 %v786, %v281
        %v788 = vrot.slane %v787, 4
        %v789 = vadd.f32 %v787, %v788
        %v790 = vrot.slane %v789, 2
        %v791 = vadd.f32 %v789, %v790
        %v792 = vrot.slane %v791, 1
        %v793 = vadd.f32 %v791, %v792
        %v794 = vadd.f32 %v234, %v250
        %v795 = vadd.f32 %v794, %v266
        %v796 = vadd.f32 %v795, %v282
        %v797 = vrot.slane %v796, 4
        %v798 = vadd.f32 %v796, %v797
        %v799 = vrot.slane %v798, 2
        %v800 = vadd.f32 %v798, %v799
        %v801 = vrot.slane %v800, 1
        %v802 = vadd.f32 %v800, %v801
        %v803 = vadd.f32 %v235, %v251
        %v804 = vadd.f32 %v803, %v267
        %v805 = vadd.f32 %v804, %v283
        %v806 = vrot.slane %v805, 4
        %v807 = vadd.f32 %v805, %v806
        %v808 = vrot.slane %v807, 2
        %v809 = vadd.f32 %v807, %v808
        %v810 = vrot.slane %v809, 1
        %v811 = vadd.f32 %v809, %v810
        %v812 = vadd.f32 %v236, %v252
        %v813 = vadd.f32 %v812, %v268
        %v814 = vadd.f32 %v813, %v284
        %v815 = vrot.slane %v814, 4
        %v816 = vadd.f32 %v814, %v815
        %v817 = vrot.slane %v816, 2
        %v818 = vadd.f32 %v816, %v817
        %v819 = vrot.slane %v818, 1
        %v820 = vadd.f32 %v818, %v819
        %v821 = vadd.f32 %v237, %v253
        %v822 = vadd.f32 %v821, %v269
        %v823 = vadd.f32 %v822, %v285
        %v824 = vrot.slane %v823, 4
        %v825 = vadd.f32 %v823, %v824
        %v826 = vrot.slane %v825, 2
        %v827 = vadd.f32 %v825, %v826
        %v828 = vrot.slane %v827, 1
        %v829 = vadd.f32 %v827, %v828
        %v830 = vadd.f32 %v238, %v254
        %v831 = vadd.f32 %v830, %v270
        %v832 = vadd.f32 %v831, %v286
        %v833 = vrot.slane %v832, 4
        %v834 = vadd.f32 %v832, %v833
        %v835 = vrot.slane %v834, 2
        %v836 = vadd.f32 %v834, %v835
        %v837 = vrot.slane %v836, 1
        %v838 = vadd.f32 %v836, %v837
        %v839 = vadd.f32 %v239, %v255
        %v840 = vadd.f32 %v839, %v271
        %v841 = vadd.f32 %v840, %v287
        %v842 = vrot.slane %v841, 4
        %v843 = vadd.f32 %v841, %v842
        %v844 = vrot.slane %v843, 2
        %v845 = vadd.f32 %v843, %v844
        %v846 = vrot.slane %v845, 1
        %v847 = vadd.f32 %v845, %v846
        %v848 = vadd.f32 %v240, %v256
        %v849 = vadd.f32 %v848, %v272
        %v850 = vadd.f32 %v849, %v288
        %v851 = vrot.slane %v850, 4
        %v852 = vadd.f32 %v850, %v851
        %v853 = vrot.slane %v852, 2
        %v854 = vadd.f32 %v852, %v853
        %v855 = vrot.slane %v854, 1
        %v856 = vadd.f32 %v854, %v855
        %v857 = vadd.f32 %v241, %v257
        %v858 = vadd.f32 %v857, %v273
        %v859 = vadd.f32 %v858, %v289
        %v860 = vrot.slane %v859, 4
        %v861 = vadd.f32 %v859, %v860
        %v862 = vrot.slane %v861, 2
        %v863 = vadd.f32 %v861, %v862
        %v864 = vrot.slane %v863, 1
        %v865 = vadd.f32 %v863, %v864
        %v866 = vadd.f32 %v242, %v258
        %v867 = vadd.f32 %v866, %v274
        %v868 = vadd.f32 %v867, %v290
        %v869 = vrot.slane %v868, 4
        %v870 = vadd.f32 %v868, %v869
        %v871 = vrot.slane %v870, 2
        %v872 = vadd.f32 %v870, %v871
        %v873 = vrot.slane %v872, 1
        %v874 = vadd.f32 %v872, %v873
        %v875 = vadd.f32 %v243, %v259
        %v876 = vadd.f32 %v875, %v275
        %v877 = vadd.f32 %v876, %v291
        %v878 = vrot.slane %v877, 4
        %v879 = vadd.f32 %v877, %v878
        %v880 = vrot.slane %v879, 2
        %v881 = vadd.f32 %v879, %v880
        %v882 = vrot.slane %v881, 1
        %v883 = vadd.f32 %v881, %v882
        %v884 = vadd.f32 %v292, %v308
        %v885 = vadd.f32 %v884, %v324
        %v886 = vadd.f32 %v885, %v340
        %v887 = vrot.slane %v886, 4
        %v888 = vadd.f32 %v886, %v887
        %v889 = vrot.slane %v888, 2
        %v890 = vadd.f32 %v888, %v889
        %v891 = vrot.slane %v890, 1
        %v892 = vadd.f32 %v890, %v891
        %v893 = vadd.f32 %v293, %v309
        %v894 = vadd.f32 %v893, %v325
        %v895 = vadd.f32 %v894, %v341
        %v896 = vrot.slane %v895, 4
        %v897 = vadd.f32 %v895, %v896
        %v898 = vrot.slane %v897, 2
        %v899 = vadd.f32 %v897, %v898
        %v900 = vrot.slane %v899, 1
        %v901 = vadd.f32 %v899, %v900
        %v902 = vadd.f32 %v294, %v310
        %v903 = vadd.f32 %v902, %v326
        %v904 = vadd.f32 %v903, %v342
        %v905 = vrot.slane %v904, 4
        %v906 = vadd.f32 %v904, %v905
        %v907 = vrot.slane %v906, 2
        %v908 = vadd.f32 %v906, %v907
        %v909 = vrot.slane %v908, 1
        %v910 = vadd.f32 %v908, %v909
        %v911 = vadd.f32 %v295, %v311
        %v912 = vadd.f32 %v911, %v327
        %v913 = vadd.f32 %v912, %v343
        %v914 = vrot.slane %v913, 4
        %v915 = vadd.f32 %v913, %v914
        %v916 = vrot.slane %v915, 2
        %v917 = vadd.f32 %v915, %v916
        %v918 = vrot.slane %v917, 1
        %v919 = vadd.f32 %v917, %v918
        %v920 = vadd.f32 %v296, %v312
        %v921 = vadd.f32 %v920, %v328
        %v922 = vadd.f32 %v921, %v344
        %v923 = vrot.slane %v922, 4
        %v924 = vadd.f32 %v922, %v923
        %v925 = vrot.slane %v924, 2
        %v926 = vadd.f32 %v924, %v925
        %v927 = vrot.slane %v926, 1
        %v928 = vadd.f32 %v926, %v927
        %v929 = vadd.f32 %v297, %v313
        %v930 = vadd.f32 %v929, %v329
        %v931 = vadd.f32 %v930, %v345
        %v932 = vrot.slane %v931, 4
        %v933 = vadd.f32 %v931, %v932
        %v934 = vrot.slane %v933, 2
        %v935 = vadd.f32 %v933, %v934
        %v936 = vrot.slane %v935, 1
        %v937 = vadd.f32 %v935, %v936
        %v938 = vadd.f32 %v298, %v314
        %v939 = vadd.f32 %v938, %v330
        %v940 = vadd.f32 %v939, %v346
        %v941 = vrot.slane %v940, 4
        %v942 = vadd.f32 %v940, %v941
        %v943 = vrot.slane %v942, 2
        %v944 = vadd.f32 %v942, %v943
        %v945 = vrot.slane %v944, 1
        %v946 = vadd.f32 %v944, %v945
        %v947 = vadd.f32 %v299, %v315
        %v948 = vadd.f32 %v947, %v331
        %v949 = vadd.f32 %v948, %v347
        %v950 = vrot.slane %v949, 4
        %v951 = vadd.f32 %v949, %v950
        %v952 = vrot.slane %v951, 2
        %v953 = vadd.f32 %v951, %v952
        %v954 = vrot.slane %v953, 1
        %v955 = vadd.f32 %v953, %v954
        %v956 = vadd.f32 %v300, %v316
        %v957 = vadd.f32 %v956, %v332
        %v958 = vadd.f32 %v957, %v348
        %v959 = vrot.slane %v958, 4
        %v960 = vadd.f32 %v958, %v959
        %v961 = vrot.slane %v960, 2
        %v962 = vadd.f32 %v960, %v961
        %v963 = vrot.slane %v962, 1
        %v964 = vadd.f32 %v962, %v963
        %v965 = vadd.f32 %v301, %v317
        %v966 = vadd.f32 %v965, %v333
        %v967 = vadd.f32 %v966, %v349
        %v968 = vrot.slane %v967, 4
        %v969 = vadd.f32 %v967, %v968
        %v970 = vrot.slane %v969, 2
        %v971 = vadd.f32 %v969, %v970
        %v972 = vrot.slane %v971, 1
        %v973 = vadd.f32 %v971, %v972
        %v974 = vadd.f32 %v302, %v318
        %v975 = vadd.f32 %v974, %v334
        %v976 = vadd.f32 %v975, %v350
        %v977 = vrot.slane %v976, 4
        %v978 = vadd.f32 %v976, %v977
        %v979 = vrot.slane %v978, 2
        %v980 = vadd.f32 %v978, %v979
        %v981 = vrot.slane %v980, 1
        %v982 = vadd.f32 %v980, %v981
        %v983 = vadd.f32 %v303, %v319
        %v984 = vadd.f32 %v983, %v335
        %v985 = vadd.f32 %v984, %v351
        %v986 = vrot.slane %v985, 4
        %v987 = vadd.f32 %v985, %v986
        %v988 = vrot.slane %v987, 2
        %v989 = vadd.f32 %v987, %v988
        %v990 = vrot.slane %v989, 1
        %v991 = vadd.f32 %v989, %v990
        %v992 = vadd.f32 %v304, %v320
        %v993 = vadd.f32 %v992, %v336
        %v994 = vadd.f32 %v993, %v352
        %v995 = vrot.slane %v994, 4
        %v996 = vadd.f32 %v994, %v995
        %v997 = vrot.slane %v996, 2
        %v998 = vadd.f32 %v996, %v997
        %v999 = vrot.slane %v998, 1
        %v1000 = vadd.f32 %v998, %v999
        %v1001 = vadd.f32 %v305, %v321
        %v1002 = vadd.f32 %v1001, %v337
        %v1003 = vadd.f32 %v1002, %v353
        %v1004 = vrot.slane %v1003, 4
        %v1005 = vadd.f32 %v1003, %v1004
        %v1006 = vrot.slane %v1005, 2
        %v1007 = vadd.f32 %v1005, %v1006
        %v1008 = vrot.slane %v1007, 1
        %v1009 = vadd.f32 %v1007, %v1008
        %v1010 = vadd.f32 %v306, %v322
        %v1011 = vadd.f32 %v1010, %v338
        %v1012 = vadd.f32 %v1011, %v354
        %v1013 = vrot.slane %v1012, 4
        %v1014 = vadd.f32 %v1012, %v1013
        %v1015 = vrot.slane %v1014, 2
        %v1016 = vadd.f32 %v1014, %v1015
        %v1017 = vrot.slane %v1016, 1
        %v1018 = vadd.f32 %v1016, %v1017
        %v1019 = vadd.f32 %v307, %v323
        %v1020 = vadd.f32 %v1019, %v339
        %v1021 = vadd.f32 %v1020, %v355
        %v1022 = vrot.slane %v1021, 4
        %v1023 = vadd.f32 %v1021, %v1022
        %v1024 = vrot.slane %v1023, 2
        %v1025 = vadd.f32 %v1023, %v1024
        %v1026 = vrot.slane %v1025, 1
        %v1027 = vadd.f32 %v1025, %v1026
        %v1028 = vadd.f32 %v356, %v372
        %v1029 = vadd.f32 %v1028, %v388
        %v1030 = vadd.f32 %v1029, %v404
        %v1031 = vrot.slane %v1030, 4
        %v1032 = vadd.f32 %v1030, %v1031
        %v1033 = vrot.slane %v1032, 2
        %v1034 = vadd.f32 %v1032, %v1033
        %v1035 = vrot.slane %v1034, 1
        %v1036 = vadd.f32 %v1034, %v1035
        %v1037 = vadd.f32 %v357, %v373
        %v1038 = vadd.f32 %v1037, %v389
        %v1039 = vadd.f32 %v1038, %v405
        %v1040 = vrot.slane %v1039, 4
        %v1041 = vadd.f32 %v1039, %v1040
        %v1042 = vrot.slane %v1041, 2
        %v1043 = vadd.f32 %v1041, %v1042
        %v1044 = vrot.slane %v1043, 1
        %v1045 = vadd.f32 %v1043, %v1044
        %v1046 = vadd.f32 %v358, %v374
        %v1047 = vadd.f32 %v1046, %v390
        %v1048 = vadd.f32 %v1047, %v406
        %v1049 = vrot.slane %v1048, 4
        %v1050 = vadd.f32 %v1048, %v1049
        %v1051 = vrot.slane %v1050, 2
        %v1052 = vadd.f32 %v1050, %v1051
        %v1053 = vrot.slane %v1052, 1
        %v1054 = vadd.f32 %v1052, %v1053
        %v1055 = vadd.f32 %v359, %v375
        %v1056 = vadd.f32 %v1055, %v391
        %v1057 = vadd.f32 %v1056, %v407
        %v1058 = vrot.slane %v1057, 4
        %v1059 = vadd.f32 %v1057, %v1058
        %v1060 = vrot.slane %v1059, 2
        %v1061 = vadd.f32 %v1059, %v1060
        %v1062 = vrot.slane %v1061, 1
        %v1063 = vadd.f32 %v1061, %v1062
        %v1064 = vadd.f32 %v360, %v376
        %v1065 = vadd.f32 %v1064, %v392
        %v1066 = vadd.f32 %v1065, %v408
        %v1067 = vrot.slane %v1066, 4
        %v1068 = vadd.f32 %v1066, %v1067
        %v1069 = vrot.slane %v1068, 2
        %v1070 = vadd.f32 %v1068, %v1069
        %v1071 = vrot.slane %v1070, 1
        %v1072 = vadd.f32 %v1070, %v1071
        %v1073 = vadd.f32 %v361, %v377
        %v1074 = vadd.f32 %v1073, %v393
        %v1075 = vadd.f32 %v1074, %v409
        %v1076 = vrot.slane %v1075, 4
        %v1077 = vadd.f32 %v1075, %v1076
        %v1078 = vrot.slane %v1077, 2
        %v1079 = vadd.f32 %v1077, %v1078
        %v1080 = vrot.slane %v1079, 1
        %v1081 = vadd.f32 %v1079, %v1080
        %v1082 = vadd.f32 %v362, %v378
        %v1083 = vadd.f32 %v1082, %v394
        %v1084 = vadd.f32 %v1083, %v410
        %v1085 = vrot.slane %v1084, 4
        %v1086 = vadd.f32 %v1084, %v1085
        %v1087 = vrot.slane %v1086, 2
        %v1088 = vadd.f32 %v1086, %v1087
        %v1089 = vrot.slane %v1088, 1
        %v1090 = vadd.f32 %v1088, %v1089
        %v1091 = vadd.f32 %v363, %v379
        %v1092 = vadd.f32 %v1091, %v395
        %v1093 = vadd.f32 %v1092, %v411
        %v1094 = vrot.slane %v1093, 4
        %v1095 = vadd.f32 %v1093, %v1094
        %v1096 = vrot.slane %v1095, 2
        %v1097 = vadd.f32 %v1095, %v1096
        %v1098 = vrot.slane %v1097, 1
        %v1099 = vadd.f32 %v1097, %v1098
        %v1100 = vadd.f32 %v364, %v380
        %v1101 = vadd.f32 %v1100, %v396
        %v1102 = vadd.f32 %v1101, %v412
        %v1103 = vrot.slane %v1102, 4
        %v1104 = vadd.f32 %v1102, %v1103
        %v1105 = vrot.slane %v1104, 2
        %v1106 = vadd.f32 %v1104, %v1105
        %v1107 = vrot.slane %v1106, 1
        %v1108 = vadd.f32 %v1106, %v1107
        %v1109 = vadd.f32 %v365, %v381
        %v1110 = vadd.f32 %v1109, %v397
        %v1111 = vadd.f32 %v1110, %v413
        %v1112 = vrot.slane %v1111, 4
        %v1113 = vadd.f32 %v1111, %v1112
        %v1114 = vrot.slane %v1113, 2
        %v1115 = vadd.f32 %v1113, %v1114
        %v1116 = vrot.slane %v1115, 1
        %v1117 = vadd.f32 %v1115, %v1116
        %v1118 = vadd.f32 %v366, %v382
        %v1119 = vadd.f32 %v1118, %v398
        %v1120 = vadd.f32 %v1119, %v414
        %v1121 = vrot.slane %v1120, 4
        %v1122 = vadd.f32 %v1120, %v1121
        %v1123 = vrot.slane %v1122, 2
        %v1124 = vadd.f32 %v1122, %v1123
        %v1125 = vrot.slane %v1124, 1
        %v1126 = vadd.f32 %v1124, %v1125
        %v1127 = vadd.f32 %v367, %v383
        %v1128 = vadd.f32 %v1127, %v399
        %v1129 = vadd.f32 %v1128, %v415
        %v1130 = vrot.slane %v1129, 4
        %v1131 = vadd.f32 %v1129, %v1130
        %v1132 = vrot.slane %v1131, 2
        %v1133 = vadd.f32 %v1131, %v1132
        %v1134 = vrot.slane %v1133, 1
        %v1135 = vadd.f32 %v1133, %v1134
        %v1136 = vadd.f32 %v368, %v384
        %v1137 = vadd.f32 %v1136, %v400
        %v1138 = vadd.f32 %v1137, %v416
        %v1139 = vrot.slane %v1138, 4
        %v1140 = vadd.f32 %v1138, %v1139
        %v1141 = vrot.slane %v1140, 2
        %v1142 = vadd.f32 %v1140, %v1141
        %v1143 = vrot.slane %v1142, 1
        %v1144 = vadd.f32 %v1142, %v1143
        %v1145 = vadd.f32 %v369, %v385
        %v1146 = vadd.f32 %v1145, %v401
        %v1147 = vadd.f32 %v1146, %v417
        %v1148 = vrot.slane %v1147, 4
        %v1149 = vadd.f32 %v1147, %v1148
        %v1150 = vrot.slane %v1149, 2
        %v1151 = vadd.f32 %v1149, %v1150
        %v1152 = vrot.slane %v1151, 1
        %v1153 = vadd.f32 %v1151, %v1152
        %v1154 = vadd.f32 %v370, %v386
        %v1155 = vadd.f32 %v1154, %v402
        %v1156 = vadd.f32 %v1155, %v418
        %v1157 = vrot.slane %v1156, 4
        %v1158 = vadd.f32 %v1156, %v1157
        %v1159 = vrot.slane %v1158, 2
        %v1160 = vadd.f32 %v1158, %v1159
        %v1161 = vrot.slane %v1160, 1
        %v1162 = vadd.f32 %v1160, %v1161
        %v1163 = vadd.f32 %v371, %v387
        %v1164 = vadd.f32 %v1163, %v403
        %v1165 = vadd.f32 %v1164, %v419
        %v1166 = vrot.slane %v1165, 4
        %v1167 = vadd.f32 %v1165, %v1166
        %v1168 = vrot.slane %v1167, 2
        %v1169 = vadd.f32 %v1167, %v1168
        %v1170 = vrot.slane %v1169, 1
        %v1171 = vadd.f32 %v1169, %v1170
        %v1172 = vadd.f32 %v420, %v436
        %v1173 = vadd.f32 %v1172, %v452
        %v1174 = vadd.f32 %v1173, %v468
        %v1175 = vrot.slane %v1174, 4
        %v1176 = vadd.f32 %v1174, %v1175
        %v1177 = vrot.slane %v1176, 2
        %v1178 = vadd.f32 %v1176, %v1177
        %v1179 = vrot.slane %v1178, 1
        %v1180 = vadd.f32 %v1178, %v1179
        %v1181 = vadd.f32 %v421, %v437
        %v1182 = vadd.f32 %v1181, %v453
        %v1183 = vadd.f32 %v1182, %v469
        %v1184 = vrot.slane %v1183, 4
        %v1185 = vadd.f32 %v1183, %v1184
        %v1186 = vrot.slane %v1185, 2
        %v1187 = vadd.f32 %v1185, %v1186
        %v1188 = vrot.slane %v1187, 1
        %v1189 = vadd.f32 %v1187, %v1188
        %v1190 = vadd.f32 %v422, %v438
        %v1191 = vadd.f32 %v1190, %v454
        %v1192 = vadd.f32 %v1191, %v470
        %v1193 = vrot.slane %v1192, 4
        %v1194 = vadd.f32 %v1192, %v1193
        %v1195 = vrot.slane %v1194, 2
        %v1196 = vadd.f32 %v1194, %v1195
        %v1197 = vrot.slane %v1196, 1
        %v1198 = vadd.f32 %v1196, %v1197
        %v1199 = vadd.f32 %v423, %v439
        %v1200 = vadd.f32 %v1199, %v455
        %v1201 = vadd.f32 %v1200, %v471
        %v1202 = vrot.slane %v1201, 4
        %v1203 = vadd.f32 %v1201, %v1202
        %v1204 = vrot.slane %v1203, 2
        %v1205 = vadd.f32 %v1203, %v1204
        %v1206 = vrot.slane %v1205, 1
        %v1207 = vadd.f32 %v1205, %v1206
        %v1208 = vadd.f32 %v424, %v440
        %v1209 = vadd.f32 %v1208, %v456
        %v1210 = vadd.f32 %v1209, %v472
        %v1211 = vrot.slane %v1210, 4
        %v1212 = vadd.f32 %v1210, %v1211
        %v1213 = vrot.slane %v1212, 2
        %v1214 = vadd.f32 %v1212, %v1213
        %v1215 = vrot.slane %v1214, 1
        %v1216 = vadd.f32 %v1214, %v1215
        %v1217 = vadd.f32 %v425, %v441
        %v1218 = vadd.f32 %v1217, %v457
        %v1219 = vadd.f32 %v1218, %v473
        %v1220 = vrot.slane %v1219, 4
        %v1221 = vadd.f32 %v1219, %v1220
        %v1222 = vrot.slane %v1221, 2
        %v1223 = vadd.f32 %v1221, %v1222
        %v1224 = vrot.slane %v1223, 1
        %v1225 = vadd.f32 %v1223, %v1224
        %v1226 = vadd.f32 %v426, %v442
        %v1227 = vadd.f32 %v1226, %v458
        %v1228 = vadd.f32 %v1227, %v474
        %v1229 = vrot.slane %v1228, 4
        %v1230 = vadd.f32 %v1228, %v1229
        %v1231 = vrot.slane %v1230, 2
        %v1232 = vadd.f32 %v1230, %v1231
        %v1233 = vrot.slane %v1232, 1
        %v1234 = vadd.f32 %v1232, %v1233
        %v1235 = vadd.f32 %v427, %v443
        %v1236 = vadd.f32 %v1235, %v459
        %v1237 = vadd.f32 %v1236, %v475
        %v1238 = vrot.slane %v1237, 4
        %v1239 = vadd.f32 %v1237, %v1238
        %v1240 = vrot.slane %v1239, 2
        %v1241 = vadd.f32 %v1239, %v1240
        %v1242 = vrot.slane %v1241, 1
        %v1243 = vadd.f32 %v1241, %v1242
        %v1244 = vadd.f32 %v428, %v444
        %v1245 = vadd.f32 %v1244, %v460
        %v1246 = vadd.f32 %v1245, %v476
        %v1247 = vrot.slane %v1246, 4
        %v1248 = vadd.f32 %v1246, %v1247
        %v1249 = vrot.slane %v1248, 2
        %v1250 = vadd.f32 %v1248, %v1249
        %v1251 = vrot.slane %v1250, 1
        %v1252 = vadd.f32 %v1250, %v1251
        %v1253 = vadd.f32 %v429, %v445
        %v1254 = vadd.f32 %v1253, %v461
        %v1255 = vadd.f32 %v1254, %v477
        %v1256 = vrot.slane %v1255, 4
        %v1257 = vadd.f32 %v1255, %v1256
        %v1258 = vrot.slane %v1257, 2
        %v1259 = vadd.f32 %v1257, %v1258
        %v1260 = vrot.slane %v1259, 1
        %v1261 = vadd.f32 %v1259, %v1260
        %v1262 = vadd.f32 %v430, %v446
        %v1263 = vadd.f32 %v1262, %v462
        %v1264 = vadd.f32 %v1263, %v478
        %v1265 = vrot.slane %v1264, 4
        %v1266 = vadd.f32 %v1264, %v1265
        %v1267 = vrot.slane %v1266, 2
        %v1268 = vadd.f32 %v1266, %v1267
        %v1269 = vrot.slane %v1268, 1
        %v1270 = vadd.f32 %v1268, %v1269
        %v1271 = vadd.f32 %v431, %v447
        %v1272 = vadd.f32 %v1271, %v463
        %v1273 = vadd.f32 %v1272, %v479
        %v1274 = vrot.slane %v1273, 4
        %v1275 = vadd.f32 %v1273, %v1274
        %v1276 = vrot.slane %v1275, 2
        %v1277 = vadd.f32 %v1275, %v1276
        %v1278 = vrot.slane %v1277, 1
        %v1279 = vadd.f32 %v1277, %v1278
        %v1280 = vadd.f32 %v432, %v448
        %v1281 = vadd.f32 %v1280, %v464
        %v1282 = vadd.f32 %v1281, %v480
        %v1283 = vrot.slane %v1282, 4
        %v1284 = vadd.f32 %v1282, %v1283
        %v1285 = vrot.slane %v1284, 2
        %v1286 = vadd.f32 %v1284, %v1285
        %v1287 = vrot.slane %v1286, 1
        %v1288 = vadd.f32 %v1286, %v1287
        %v1289 = vadd.f32 %v433, %v449
        %v1290 = vadd.f32 %v1289, %v465
        %v1291 = vadd.f32 %v1290, %v481
        %v1292 = vrot.slane %v1291, 4
        %v1293 = vadd.f32 %v1291, %v1292
        %v1294 = vrot.slane %v1293, 2
        %v1295 = vadd.f32 %v1293, %v1294
        %v1296 = vrot.slane %v1295, 1
        %v1297 = vadd.f32 %v1295, %v1296
        %v1298 = vadd.f32 %v434, %v450
        %v1299 = vadd.f32 %v1298, %v466
        %v1300 = vadd.f32 %v1299, %v482
        %v1301 = vrot.slane %v1300, 4
        %v1302 = vadd.f32 %v1300, %v1301
        %v1303 = vrot.slane %v1302, 2
        %v1304 = vadd.f32 %v1302, %v1303
        %v1305 = vrot.slane %v1304, 1
        %v1306 = vadd.f32 %v1304, %v1305
        %v1307 = vadd.f32 %v435, %v451
        %v1308 = vadd.f32 %v1307, %v467
        %v1309 = vadd.f32 %v1308, %v483
        %v1310 = vrot.slane %v1309, 4
        %v1311 = vadd.f32 %v1309, %v1310
        %v1312 = vrot.slane %v1311, 2
        %v1313 = vadd.f32 %v1311, %v1312
        %v1314 = vrot.slane %v1313, 1
        %v1315 = vadd.f32 %v1313, %v1314
        %v1316 = vadd.f32 %v484, %v500
        %v1317 = vadd.f32 %v1316, %v516
        %v1318 = vadd.f32 %v1317, %v532
        %v1319 = vrot.slane %v1318, 4
        %v1320 = vadd.f32 %v1318, %v1319
        %v1321 = vrot.slane %v1320, 2
        %v1322 = vadd.f32 %v1320, %v1321
        %v1323 = vrot.slane %v1322, 1
        %v1324 = vadd.f32 %v1322, %v1323
        %v1325 = vadd.f32 %v485, %v501
        %v1326 = vadd.f32 %v1325, %v517
        %v1327 = vadd.f32 %v1326, %v533
        %v1328 = vrot.slane %v1327, 4
        %v1329 = vadd.f32 %v1327, %v1328
        %v1330 = vrot.slane %v1329, 2
        %v1331 = vadd.f32 %v1329, %v1330
        %v1332 = vrot.slane %v1331, 1
        %v1333 = vadd.f32 %v1331, %v1332
        %v1334 = vadd.f32 %v486, %v502
        %v1335 = vadd.f32 %v1334, %v518
        %v1336 = vadd.f32 %v1335, %v534
        %v1337 = vrot.slane %v1336, 4
        %v1338 = vadd.f32 %v1336, %v1337
        %v1339 = vrot.slane %v1338, 2
        %v1340 = vadd.f32 %v1338, %v1339
        %v1341 = vrot.slane %v1340, 1
        %v1342 = vadd.f32 %v1340, %v1341
        %v1343 = vadd.f32 %v487, %v503
        %v1344 = vadd.f32 %v1343, %v519
        %v1345 = vadd.f32 %v1344, %v535
        %v1346 = vrot.slane %v1345, 4
        %v1347 = vadd.f32 %v1345, %v1346
        %v1348 = vrot.slane %v1347, 2
        %v1349 = vadd.f32 %v1347, %v1348
        %v1350 = vrot.slane %v1349, 1
        %v1351 = vadd.f32 %v1349, %v1350
        %v1352 = vadd.f32 %v488, %v504
        %v1353 = vadd.f32 %v1352, %v520
        %v1354 = vadd.f32 %v1353, %v536
        %v1355 = vrot.slane %v1354, 4
        %v1356 = vadd.f32 %v1354, %v1355
        %v1357 = vrot.slane %v1356, 2
        %v1358 = vadd.f32 %v1356, %v1357
        %v1359 = vrot.slane %v1358, 1
        %v1360 = vadd.f32 %v1358, %v1359
        %v1361 = vadd.f32 %v489, %v505
        %v1362 = vadd.f32 %v1361, %v521
        %v1363 = vadd.f32 %v1362, %v537
        %v1364 = vrot.slane %v1363, 4
        %v1365 = vadd.f32 %v1363, %v1364
        %v1366 = vrot.slane %v1365, 2
        %v1367 = vadd.f32 %v1365, %v1366
        %v1368 = vrot.slane %v1367, 1
        %v1369 = vadd.f32 %v1367, %v1368
        %v1370 = vadd.f32 %v490, %v506
        %v1371 = vadd.f32 %v1370, %v522
        %v1372 = vadd.f32 %v1371, %v538
        %v1373 = vrot.slane %v1372, 4
        %v1374 = vadd.f32 %v1372, %v1373
        %v1375 = vrot.slane %v1374, 2
        %v1376 = vadd.f32 %v1374, %v1375
        %v1377 = vrot.slane %v1376, 1
        %v1378 = vadd.f32 %v1376, %v1377
        %v1379 = vadd.f32 %v491, %v507
        %v1380 = vadd.f32 %v1379, %v523
        %v1381 = vadd.f32 %v1380, %v539
        %v1382 = vrot.slane %v1381, 4
        %v1383 = vadd.f32 %v1381, %v1382
        %v1384 = vrot.slane %v1383, 2
        %v1385 = vadd.f32 %v1383, %v1384
        %v1386 = vrot.slane %v1385, 1
        %v1387 = vadd.f32 %v1385, %v1386
        %v1388 = vadd.f32 %v492, %v508
        %v1389 = vadd.f32 %v1388, %v524
        %v1390 = vadd.f32 %v1389, %v540
        %v1391 = vrot.slane %v1390, 4
        %v1392 = vadd.f32 %v1390, %v1391
        %v1393 = vrot.slane %v1392, 2
        %v1394 = vadd.f32 %v1392, %v1393
        %v1395 = vrot.slane %v1394, 1
        %v1396 = vadd.f32 %v1394, %v1395
        %v1397 = vadd.f32 %v493, %v509
        %v1398 = vadd.f32 %v1397, %v525
        %v1399 = vadd.f32 %v1398, %v541
        %v1400 = vrot.slane %v1399, 4
        %v1401 = vadd.f32 %v1399, %v1400
        %v1402 = vrot.slane %v1401, 2
        %v1403 = vadd.f32 %v1401, %v1402
        %v1404 = vrot.slane %v1403, 1
        %v1405 = vadd.f32 %v1403, %v1404
        %v1406 = vadd.f32 %v494, %v510
        %v1407 = vadd.f32 %v1406, %v526
        %v1408 = vadd.f32 %v1407, %v542
        %v1409 = vrot.slane %v1408, 4
        %v1410 = vadd.f32 %v1408, %v1409
        %v1411 = vrot.slane %v1410, 2
        %v1412 = vadd.f32 %v1410, %v1411
        %v1413 = vrot.slane %v1412, 1
        %v1414 = vadd.f32 %v1412, %v1413
        %v1415 = vadd.f32 %v495, %v511
        %v1416 = vadd.f32 %v1415, %v527
        %v1417 = vadd.f32 %v1416, %v543
        %v1418 = vrot.slane %v1417, 4
        %v1419 = vadd.f32 %v1417, %v1418
        %v1420 = vrot.slane %v1419, 2
        %v1421 = vadd.f32 %v1419, %v1420
        %v1422 = vrot.slane %v1421, 1
        %v1423 = vadd.f32 %v1421, %v1422
        %v1424 = vadd.f32 %v496, %v512
        %v1425 = vadd.f32 %v1424, %v528
        %v1426 = vadd.f32 %v1425, %v544
        %v1427 = vrot.slane %v1426, 4
        %v1428 = vadd.f32 %v1426, %v1427
        %v1429 = vrot.slane %v1428, 2
        %v1430 = vadd.f32 %v1428, %v1429
        %v1431 = vrot.slane %v1430, 1
        %v1432 = vadd.f32 %v1430, %v1431
        %v1433 = vadd.f32 %v497, %v513
        %v1434 = vadd.f32 %v1433, %v529
        %v1435 = vadd.f32 %v1434, %v545
        %v1436 = vrot.slane %v1435, 4
        %v1437 = vadd.f32 %v1435, %v1436
        %v1438 = vrot.slane %v1437, 2
        %v1439 = vadd.f32 %v1437, %v1438
        %v1440 = vrot.slane %v1439, 1
        %v1441 = vadd.f32 %v1439, %v1440
        %v1442 = vadd.f32 %v498, %v514
        %v1443 = vadd.f32 %v1442, %v530
        %v1444 = vadd.f32 %v1443, %v546
        %v1445 = vrot.slane %v1444, 4
        %v1446 = vadd.f32 %v1444, %v1445
        %v1447 = vrot.slane %v1446, 2
        %v1448 = vadd.f32 %v1446, %v1447
        %v1449 = vrot.slane %v1448, 1
        %v1450 = vadd.f32 %v1448, %v1449
        %v1451 = vadd.f32 %v499, %v515
        %v1452 = vadd.f32 %v1451, %v531
        %v1453 = vadd.f32 %v1452, %v547
        %v1454 = vrot.slane %v1453, 4
        %v1455 = vadd.f32 %v1453, %v1454
        %v1456 = vrot.slane %v1455, 2
        %v1457 = vadd.f32 %v1455, %v1456
        %v1458 = vrot.slane %v1457, 1
        %v1459 = vadd.f32 %v1457, %v1458
        %v1460 = vadd.f32 %v548, %v564
        %v1461 = vadd.f32 %v1460, %v580
        %v1462 = vadd.f32 %v1461, %v596
        %v1463 = vrot.slane %v1462, 4
        %v1464 = vadd.f32 %v1462, %v1463
        %v1465 = vrot.slane %v1464, 2
        %v1466 = vadd.f32 %v1464, %v1465
        %v1467 = vrot.slane %v1466, 1
        %v1468 = vadd.f32 %v1466, %v1467
        %v1469 = vadd.f32 %v549, %v565
        %v1470 = vadd.f32 %v1469, %v581
        %v1471 = vadd.f32 %v1470, %v597
        %v1472 = vrot.slane %v1471, 4
        %v1473 = vadd.f32 %v1471, %v1472
        %v1474 = vrot.slane %v1473, 2
        %v1475 = vadd.f32 %v1473, %v1474
        %v1476 = vrot.slane %v1475, 1
        %v1477 = vadd.f32 %v1475, %v1476
        %v1478 = vadd.f32 %v550, %v566
        %v1479 = vadd.f32 %v1478, %v582
        %v1480 = vadd.f32 %v1479, %v598
        %v1481 = vrot.slane %v1480, 4
        %v1482 = vadd.f32 %v1480, %v1481
        %v1483 = vrot.slane %v1482, 2
        %v1484 = vadd.f32 %v1482, %v1483
        %v1485 = vrot.slane %v1484, 1
        %v1486 = vadd.f32 %v1484, %v1485
        %v1487 = vadd.f32 %v551, %v567
        %v1488 = vadd.f32 %v1487, %v583
        %v1489 = vadd.f32 %v1488, %v599
        %v1490 = vrot.slane %v1489, 4
        %v1491 = vadd.f32 %v1489, %v1490
        %v1492 = vrot.slane %v1491, 2
        %v1493 = vadd.f32 %v1491, %v1492
        %v1494 = vrot.slane %v1493, 1
        %v1495 = vadd.f32 %v1493, %v1494
        %v1496 = vadd.f32 %v552, %v568
        %v1497 = vadd.f32 %v1496, %v584
        %v1498 = vadd.f32 %v1497, %v600
        %v1499 = vrot.slane %v1498, 4
        %v1500 = vadd.f32 %v1498, %v1499
        %v1501 = vrot.slane %v1500, 2
        %v1502 = vadd.f32 %v1500, %v1501
        %v1503 = vrot.slane %v1502, 1
        %v1504 = vadd.f32 %v1502, %v1503
        %v1505 = vadd.f32 %v553, %v569
        %v1506 = vadd.f32 %v1505, %v585
        %v1507 = vadd.f32 %v1506, %v601
        %v1508 = vrot.slane %v1507, 4
        %v1509 = vadd.f32 %v1507, %v1508
        %v1510 = vrot.slane %v1509, 2
        %v1511 = vadd.f32 %v1509, %v1510
        %v1512 = vrot.slane %v1511, 1
        %v1513 = vadd.f32 %v1511, %v1512
        %v1514 = vadd.f32 %v554, %v570
        %v1515 = vadd.f32 %v1514, %v586
        %v1516 = vadd.f32 %v1515, %v602
        %v1517 = vrot.slane %v1516, 4
        %v1518 = vadd.f32 %v1516, %v1517
        %v1519 = vrot.slane %v1518, 2
        %v1520 = vadd.f32 %v1518, %v1519
        %v1521 = vrot.slane %v1520, 1
        %v1522 = vadd.f32 %v1520, %v1521
        %v1523 = vadd.f32 %v555, %v571
        %v1524 = vadd.f32 %v1523, %v587
        %v1525 = vadd.f32 %v1524, %v603
        %v1526 = vrot.slane %v1525, 4
        %v1527 = vadd.f32 %v1525, %v1526
        %v1528 = vrot.slane %v1527, 2
        %v1529 = vadd.f32 %v1527, %v1528
        %v1530 = vrot.slane %v1529, 1
        %v1531 = vadd.f32 %v1529, %v1530
        %v1532 = vadd.f32 %v556, %v572
        %v1533 = vadd.f32 %v1532, %v588
        %v1534 = vadd.f32 %v1533, %v604
        %v1535 = vrot.slane %v1534, 4
        %v1536 = vadd.f32 %v1534, %v1535
        %v1537 = vrot.slane %v1536, 2
        %v1538 = vadd.f32 %v1536, %v1537
        %v1539 = vrot.slane %v1538, 1
        %v1540 = vadd.f32 %v1538, %v1539
        %v1541 = vadd.f32 %v557, %v573
        %v1542 = vadd.f32 %v1541, %v589
        %v1543 = vadd.f32 %v1542, %v605
        %v1544 = vrot.slane %v1543, 4
        %v1545 = vadd.f32 %v1543, %v1544
        %v1546 = vrot.slane %v1545, 2
        %v1547 = vadd.f32 %v1545, %v1546
        %v1548 = vrot.slane %v1547, 1
        %v1549 = vadd.f32 %v1547, %v1548
        %v1550 = vadd.f32 %v558, %v574
        %v1551 = vadd.f32 %v1550, %v590
        %v1552 = vadd.f32 %v1551, %v606
        %v1553 = vrot.slane %v1552, 4
        %v1554 = vadd.f32 %v1552, %v1553
        %v1555 = vrot.slane %v1554, 2
        %v1556 = vadd.f32 %v1554, %v1555
        %v1557 = vrot.slane %v1556, 1
        %v1558 = vadd.f32 %v1556, %v1557
        %v1559 = vadd.f32 %v559, %v575
        %v1560 = vadd.f32 %v1559, %v591
        %v1561 = vadd.f32 %v1560, %v607
        %v1562 = vrot.slane %v1561, 4
        %v1563 = vadd.f32 %v1561, %v1562
        %v1564 = vrot.slane %v1563, 2
        %v1565 = vadd.f32 %v1563, %v1564
        %v1566 = vrot.slane %v1565, 1
        %v1567 = vadd.f32 %v1565, %v1566
        %v1568 = vadd.f32 %v560, %v576
        %v1569 = vadd.f32 %v1568, %v592
        %v1570 = vadd.f32 %v1569, %v608
        %v1571 = vrot.slane %v1570, 4
        %v1572 = vadd.f32 %v1570, %v1571
        %v1573 = vrot.slane %v1572, 2
        %v1574 = vadd.f32 %v1572, %v1573
        %v1575 = vrot.slane %v1574, 1
        %v1576 = vadd.f32 %v1574, %v1575
        %v1577 = vadd.f32 %v561, %v577
        %v1578 = vadd.f32 %v1577, %v593
        %v1579 = vadd.f32 %v1578, %v609
        %v1580 = vrot.slane %v1579, 4
        %v1581 = vadd.f32 %v1579, %v1580
        %v1582 = vrot.slane %v1581, 2
        %v1583 = vadd.f32 %v1581, %v1582
        %v1584 = vrot.slane %v1583, 1
        %v1585 = vadd.f32 %v1583, %v1584
        %v1586 = vadd.f32 %v562, %v578
        %v1587 = vadd.f32 %v1586, %v594
        %v1588 = vadd.f32 %v1587, %v610
        %v1589 = vrot.slane %v1588, 4
        %v1590 = vadd.f32 %v1588, %v1589
        %v1591 = vrot.slane %v1590, 2
        %v1592 = vadd.f32 %v1590, %v1591
        %v1593 = vrot.slane %v1592, 1
        %v1594 = vadd.f32 %v1592, %v1593
        %v1595 = vadd.f32 %v563, %v579
        %v1596 = vadd.f32 %v1595, %v595
        %v1597 = vadd.f32 %v1596, %v611
        %v1598 = vrot.slane %v1597, 4
        %v1599 = vadd.f32 %v1597, %v1598
        %v1600 = vrot.slane %v1599, 2
        %v1601 = vadd.f32 %v1599, %v1600
        %v1602 = vrot.slane %v1601, 1
        %v1603 = vadd.f32 %v1601, %v1602
        %v1604 = vadd.f32 %v612, %v628
        %v1605 = vadd.f32 %v1604, %v644
        %v1606 = vadd.f32 %v1605, %v660
        %v1607 = vrot.slane %v1606, 4
        %v1608 = vadd.f32 %v1606, %v1607
        %v1609 = vrot.slane %v1608, 2
        %v1610 = vadd.f32 %v1608, %v1609
        %v1611 = vrot.slane %v1610, 1
        %v1612 = vadd.f32 %v1610, %v1611
        %v1613 = vadd.f32 %v613, %v629
        %v1614 = vadd.f32 %v1613, %v645
        %v1615 = vadd.f32 %v1614, %v661
        %v1616 = vrot.slane %v1615, 4
        %v1617 = vadd.f32 %v1615, %v1616
        %v1618 = vrot.slane %v1617, 2
        %v1619 = vadd.f32 %v1617, %v1618
        %v1620 = vrot.slane %v1619, 1
        %v1621 = vadd.f32 %v1619, %v1620
        %v1622 = vadd.f32 %v614, %v630
        %v1623 = vadd.f32 %v1622, %v646
        %v1624 = vadd.f32 %v1623, %v662
        %v1625 = vrot.slane %v1624, 4
        %v1626 = vadd.f32 %v1624, %v1625
        %v1627 = vrot.slane %v1626, 2
        %v1628 = vadd.f32 %v1626, %v1627
        %v1629 = vrot.slane %v1628, 1
        %v1630 = vadd.f32 %v1628, %v1629
        %v1631 = vadd.f32 %v615, %v631
        %v1632 = vadd.f32 %v1631, %v647
        %v1633 = vadd.f32 %v1632, %v663
        %v1634 = vrot.slane %v1633, 4
        %v1635 = vadd.f32 %v1633, %v1634
        %v1636 = vrot.slane %v1635, 2
        %v1637 = vadd.f32 %v1635, %v1636
        %v1638 = vrot.slane %v1637, 1
        %v1639 = vadd.f32 %v1637, %v1638
        %v1640 = vadd.f32 %v616, %v632
        %v1641 = vadd.f32 %v1640, %v648
        %v1642 = vadd.f32 %v1641, %v664
        %v1643 = vrot.slane %v1642, 4
        %v1644 = vadd.f32 %v1642, %v1643
        %v1645 = vrot.slane %v1644, 2
        %v1646 = vadd.f32 %v1644, %v1645
        %v1647 = vrot.slane %v1646, 1
        %v1648 = vadd.f32 %v1646, %v1647
        %v1649 = vadd.f32 %v617, %v633
        %v1650 = vadd.f32 %v1649, %v649
        %v1651 = vadd.f32 %v1650, %v665
        %v1652 = vrot.slane %v1651, 4
        %v1653 = vadd.f32 %v1651, %v1652
        %v1654 = vrot.slane %v1653, 2
        %v1655 = vadd.f32 %v1653, %v1654
        %v1656 = vrot.slane %v1655, 1
        %v1657 = vadd.f32 %v1655, %v1656
        %v1658 = vadd.f32 %v618, %v634
        %v1659 = vadd.f32 %v1658, %v650
        %v1660 = vadd.f32 %v1659, %v666
        %v1661 = vrot.slane %v1660, 4
        %v1662 = vadd.f32 %v1660, %v1661
        %v1663 = vrot.slane %v1662, 2
        %v1664 = vadd.f32 %v1662, %v1663
        %v1665 = vrot.slane %v1664, 1
        %v1666 = vadd.f32 %v1664, %v1665
        %v1667 = vadd.f32 %v619, %v635
        %v1668 = vadd.f32 %v1667, %v651
        %v1669 = vadd.f32 %v1668, %v667
        %v1670 = vrot.slane %v1669, 4
        %v1671 = vadd.f32 %v1669, %v1670
        %v1672 = vrot.slane %v1671, 2
        %v1673 = vadd.f32 %v1671, %v1672
        %v1674 = vrot.slane %v1673, 1
        %v1675 = vadd.f32 %v1673, %v1674
        %v1676 = vadd.f32 %v620, %v636
        %v1677 = vadd.f32 %v1676, %v652
        %v1678 = vadd.f32 %v1677, %v668
        %v1679 = vrot.slane %v1678, 4
        %v1680 = vadd.f32 %v1678, %v1679
        %v1681 = vrot.slane %v1680, 2
        %v1682 = vadd.f32 %v1680, %v1681
        %v1683 = vrot.slane %v1682, 1
        %v1684 = vadd.f32 %v1682, %v1683
        %v1685 = vadd.f32 %v621, %v637
        %v1686 = vadd.f32 %v1685, %v653
        %v1687 = vadd.f32 %v1686, %v669
        %v1688 = vrot.slane %v1687, 4
        %v1689 = vadd.f32 %v1687, %v1688
        %v1690 = vrot.slane %v1689, 2
        %v1691 = vadd.f32 %v1689, %v1690
        %v1692 = vrot.slane %v1691, 1
        %v1693 = vadd.f32 %v1691, %v1692
        %v1694 = vadd.f32 %v622, %v638
        %v1695 = vadd.f32 %v1694, %v654
        %v1696 = vadd.f32 %v1695, %v670
        %v1697 = vrot.slane %v1696, 4
        %v1698 = vadd.f32 %v1696, %v1697
        %v1699 = vrot.slane %v1698, 2
        %v1700 = vadd.f32 %v1698, %v1699
        %v1701 = vrot.slane %v1700, 1
        %v1702 = vadd.f32 %v1700, %v1701
        %v1703 = vadd.f32 %v623, %v639
        %v1704 = vadd.f32 %v1703, %v655
        %v1705 = vadd.f32 %v1704, %v671
        %v1706 = vrot.slane %v1705, 4
        %v1707 = vadd.f32 %v1705, %v1706
        %v1708 = vrot.slane %v1707, 2
        %v1709 = vadd.f32 %v1707, %v1708
        %v1710 = vrot.slane %v1709, 1
        %v1711 = vadd.f32 %v1709, %v1710
        %v1712 = vadd.f32 %v624, %v640
        %v1713 = vadd.f32 %v1712, %v656
        %v1714 = vadd.f32 %v1713, %v672
        %v1715 = vrot.slane %v1714, 4
        %v1716 = vadd.f32 %v1714, %v1715
        %v1717 = vrot.slane %v1716, 2
        %v1718 = vadd.f32 %v1716, %v1717
        %v1719 = vrot.slane %v1718, 1
        %v1720 = vadd.f32 %v1718, %v1719
        %v1721 = vadd.f32 %v625, %v641
        %v1722 = vadd.f32 %v1721, %v657
        %v1723 = vadd.f32 %v1722, %v673
        %v1724 = vrot.slane %v1723, 4
        %v1725 = vadd.f32 %v1723, %v1724
        %v1726 = vrot.slane %v1725, 2
        %v1727 = vadd.f32 %v1725, %v1726
        %v1728 = vrot.slane %v1727, 1
        %v1729 = vadd.f32 %v1727, %v1728
        %v1730 = vadd.f32 %v626, %v642
        %v1731 = vadd.f32 %v1730, %v658
        %v1732 = vadd.f32 %v1731, %v674
        %v1733 = vrot.slane %v1732, 4
        %v1734 = vadd.f32 %v1732, %v1733
        %v1735 = vrot.slane %v1734, 2
        %v1736 = vadd.f32 %v1734, %v1735
        %v1737 = vrot.slane %v1736, 1
        %v1738 = vadd.f32 %v1736, %v1737
        %v1739 = vadd.f32 %v627, %v643
        %v1740 = vadd.f32 %v1739, %v659
        %v1741 = vadd.f32 %v1740, %v675
        %v1742 = vrot.slane %v1741, 4
        %v1743 = vadd.f32 %v1741, %v1742
        %v1744 = vrot.slane %v1743, 2
        %v1745 = vadd.f32 %v1743, %v1744
        %v1746 = vrot.slane %v1745, 1
        %v1747 = vadd.f32 %v1745, %v1746
        %v1748 = vadd.f32 %v676, %v692
        %v1749 = vadd.f32 %v1748, %v708
        %v1750 = vadd.f32 %v1749, %v724
        %v1751 = vrot.slane %v1750, 4
        %v1752 = vadd.f32 %v1750, %v1751
        %v1753 = vrot.slane %v1752, 2
        %v1754 = vadd.f32 %v1752, %v1753
        %v1755 = vrot.slane %v1754, 1
        %v1756 = vadd.f32 %v1754, %v1755
        %v1757 = vadd.f32 %v677, %v693
        %v1758 = vadd.f32 %v1757, %v709
        %v1759 = vadd.f32 %v1758, %v725
        %v1760 = vrot.slane %v1759, 4
        %v1761 = vadd.f32 %v1759, %v1760
        %v1762 = vrot.slane %v1761, 2
        %v1763 = vadd.f32 %v1761, %v1762
        %v1764 = vrot.slane %v1763, 1
        %v1765 = vadd.f32 %v1763, %v1764
        %v1766 = vadd.f32 %v678, %v694
        %v1767 = vadd.f32 %v1766, %v710
        %v1768 = vadd.f32 %v1767, %v726
        %v1769 = vrot.slane %v1768, 4
        %v1770 = vadd.f32 %v1768, %v1769
        %v1771 = vrot.slane %v1770, 2
        %v1772 = vadd.f32 %v1770, %v1771
        %v1773 = vrot.slane %v1772, 1
        %v1774 = vadd.f32 %v1772, %v1773
        %v1775 = vadd.f32 %v679, %v695
        %v1776 = vadd.f32 %v1775, %v711
        %v1777 = vadd.f32 %v1776, %v727
        %v1778 = vrot.slane %v1777, 4
        %v1779 = vadd.f32 %v1777, %v1778
        %v1780 = vrot.slane %v1779, 2
        %v1781 = vadd.f32 %v1779, %v1780
        %v1782 = vrot.slane %v1781, 1
        %v1783 = vadd.f32 %v1781, %v1782
        %v1784 = vadd.f32 %v680, %v696
        %v1785 = vadd.f32 %v1784, %v712
        %v1786 = vadd.f32 %v1785, %v728
        %v1787 = vrot.slane %v1786, 4
        %v1788 = vadd.f32 %v1786, %v1787
        %v1789 = vrot.slane %v1788, 2
        %v1790 = vadd.f32 %v1788, %v1789
        %v1791 = vrot.slane %v1790, 1
        %v1792 = vadd.f32 %v1790, %v1791
        %v1793 = vadd.f32 %v681, %v697
        %v1794 = vadd.f32 %v1793, %v713
        %v1795 = vadd.f32 %v1794, %v729
        %v1796 = vrot.slane %v1795, 4
        %v1797 = vadd.f32 %v1795, %v1796
        %v1798 = vrot.slane %v1797, 2
        %v1799 = vadd.f32 %v1797, %v1798
        %v1800 = vrot.slane %v1799, 1
        %v1801 = vadd.f32 %v1799, %v1800
        %v1802 = vadd.f32 %v682, %v698
        %v1803 = vadd.f32 %v1802, %v714
        %v1804 = vadd.f32 %v1803, %v730
        %v1805 = vrot.slane %v1804, 4
        %v1806 = vadd.f32 %v1804, %v1805
        %v1807 = vrot.slane %v1806, 2
        %v1808 = vadd.f32 %v1806, %v1807
        %v1809 = vrot.slane %v1808, 1
        %v1810 = vadd.f32 %v1808, %v1809
        %v1811 = vadd.f32 %v683, %v699
        %v1812 = vadd.f32 %v1811, %v715
        %v1813 = vadd.f32 %v1812, %v731
        %v1814 = vrot.slane %v1813, 4
        %v1815 = vadd.f32 %v1813, %v1814
        %v1816 = vrot.slane %v1815, 2
        %v1817 = vadd.f32 %v1815, %v1816
        %v1818 = vrot.slane %v1817, 1
        %v1819 = vadd.f32 %v1817, %v1818
        %v1820 = vadd.f32 %v684, %v700
        %v1821 = vadd.f32 %v1820, %v716
        %v1822 = vadd.f32 %v1821, %v732
        %v1823 = vrot.slane %v1822, 4
        %v1824 = vadd.f32 %v1822, %v1823
        %v1825 = vrot.slane %v1824, 2
        %v1826 = vadd.f32 %v1824, %v1825
        %v1827 = vrot.slane %v1826, 1
        %v1828 = vadd.f32 %v1826, %v1827
        %v1829 = vadd.f32 %v685, %v701
        %v1830 = vadd.f32 %v1829, %v717
        %v1831 = vadd.f32 %v1830, %v733
        %v1832 = vrot.slane %v1831, 4
        %v1833 = vadd.f32 %v1831, %v1832
        %v1834 = vrot.slane %v1833, 2
        %v1835 = vadd.f32 %v1833, %v1834
        %v1836 = vrot.slane %v1835, 1
        %v1837 = vadd.f32 %v1835, %v1836
        %v1838 = vadd.f32 %v686, %v702
        %v1839 = vadd.f32 %v1838, %v718
        %v1840 = vadd.f32 %v1839, %v734
        %v1841 = vrot.slane %v1840, 4
        %v1842 = vadd.f32 %v1840, %v1841
        %v1843 = vrot.slane %v1842, 2
        %v1844 = vadd.f32 %v1842, %v1843
        %v1845 = vrot.slane %v1844, 1
        %v1846 = vadd.f32 %v1844, %v1845
        %v1847 = vadd.f32 %v687, %v703
        %v1848 = vadd.f32 %v1847, %v719
        %v1849 = vadd.f32 %v1848, %v735
        %v1850 = vrot.slane %v1849, 4
        %v1851 = vadd.f32 %v1849, %v1850
        %v1852 = vrot.slane %v1851, 2
        %v1853 = vadd.f32 %v1851, %v1852
        %v1854 = vrot.slane %v1853, 1
        %v1855 = vadd.f32 %v1853, %v1854
        %v1856 = vadd.f32 %v688, %v704
        %v1857 = vadd.f32 %v1856, %v720
        %v1858 = vadd.f32 %v1857, %v736
        %v1859 = vrot.slane %v1858, 4
        %v1860 = vadd.f32 %v1858, %v1859
        %v1861 = vrot.slane %v1860, 2
        %v1862 = vadd.f32 %v1860, %v1861
        %v1863 = vrot.slane %v1862, 1
        %v1864 = vadd.f32 %v1862, %v1863
        %v1865 = vadd.f32 %v689, %v705
        %v1866 = vadd.f32 %v1865, %v721
        %v1867 = vadd.f32 %v1866, %v737
        %v1868 = vrot.slane %v1867, 4
        %v1869 = vadd.f32 %v1867, %v1868
        %v1870 = vrot.slane %v1869, 2
        %v1871 = vadd.f32 %v1869, %v1870
        %v1872 = vrot.slane %v1871, 1
        %v1873 = vadd.f32 %v1871, %v1872
        %v1874 = vadd.f32 %v690, %v706
        %v1875 = vadd.f32 %v1874, %v722
        %v1876 = vadd.f32 %v1875, %v738
        %v1877 = vrot.slane %v1876, 4
        %v1878 = vadd.f32 %v1876, %v1877
        %v1879 = vrot.slane %v1878, 2
        %v1880 = vadd.f32 %v1878, %v1879
        %v1881 = vrot.slane %v1880, 1
        %v1882 = vadd.f32 %v1880, %v1881
        %v1883 = vadd.f32 %v691, %v707
        %v1884 = vadd.f32 %v1883, %v723
        %v1885 = vadd.f32 %v1884, %v739
        %v1886 = vrot.slane %v1885, 4
        %v1887 = vadd.f32 %v1885, %v1886
        %v1888 = vrot.slane %v1887, 2
        %v1889 = vadd.f32 %v1887, %v1888
        %v1890 = vrot.slane %v1889, 1
        %v1891 = vadd.f32 %v1889, %v1890
        %v1892 = vld [vmem:[%s1] sm:$0xff]
        %v1893 = vld [vmem:[%s1 + $0x8] sm:$0xff]
        %v1894 = vld [vmem:[%s1 + $0x10] sm:$0xff]
        %v1895 = vld [vmem:[%s1 + $0x18] sm:$0xff]
        %v1896 = vld [vmem:[%s1 + $0x20] sm:$0xff]
        %v1897 = vld [vmem:[%s1 + $0x28] sm:$0xff]
        %v1898 = vld [vmem:[%s1 + $0x30] sm:$0xff]
        %v1899 = vld [vmem:[%s1 + $0x38] sm:$0xff]
        %v1900 = vld [vmem:[%s1 + $0x40] sm:$0xff]
        %v1901 = vld [vmem:[%s1 + $0x48] sm:$0xff]
        %v1902 = vld [vmem:[%s1 + $0x50] sm:$0xff]
        %v1903 = vld [vmem:[%s1 + $0x58] sm:$0xff]
        %v1904 = vld [vmem:[%s1 + $0x60] sm:$0xff]
        %v1905 = vld [vmem:[%s1 + $0x68] sm:$0xff]
        %v1906 = vld [vmem:[%s1 + $0x70] sm:$0xff]
        %v1907 = vld [vmem:[%s1 + $0x78] sm:$0xff]
        %v1908 = vld [vmem:[%s1 + $0x80] sm:$0xff]
        %v1909 = vld [vmem:[%s1 + $0x88] sm:$0xff]
        %v1910 = vld [vmem:[%s1 + $0x90] sm:$0xff]
        %v1911 = vld [vmem:[%s1 + $0x98] sm:$0xff]
        %v1912 = vld [vmem:[%s1 + $0xa0] sm:$0xff]
        %v1913 = vld [vmem:[%s1 + $0xa8] sm:$0xff]
        %v1914 = vld [vmem:[%s1 + $0xb0] sm:$0xff]
        %v1915 = vld [vmem:[%s1 + $0xb8] sm:$0xff]
        %v1916 = vld [vmem:[%s1 + $0xc0] sm:$0xff]
        %v1917 = vld [vmem:[%s1 + $0xc8] sm:$0xff]
        %v1918 = vld [vmem:[%s1 + $0xd0] sm:$0xff]
        %v1919 = vld [vmem:[%s1 + $0xd8] sm:$0xff]
        %v1920 = vld [vmem:[%s1 + $0xe0] sm:$0xff]
        %v1921 = vld [vmem:[%s1 + $0xe8] sm:$0xff]
        %v1922 = vld [vmem:[%s1 + $0xf0] sm:$0xff]
        %v1923 = vld [vmem:[%s1 + $0xf8] sm:$0xff]
        %v1924 = vld [vmem:[%s1 + $0x100] sm:$0xff]
        %v1925 = vld [vmem:[%s1 + $0x108] sm:$0xff]
        %v1926 = vld [vmem:[%s1 + $0x110] sm:$0xff]
        %v1927 = vld [vmem:[%s1 + $0x118] sm:$0xff]
        %v1928 = vld [vmem:[%s1 + $0x120] sm:$0xff]
        %v1929 = vld [vmem:[%s1 + $0x128] sm:$0xff]
        %v1930 = vld [vmem:[%s1 + $0x130] sm:$0xff]
        %v1931 = vld [vmem:[%s1 + $0x138] sm:$0xff]
        %v1932 = vld [vmem:[%s1 + $0x140] sm:$0xff]
        %v1933 = vld [vmem:[%s1 + $0x148] sm:$0xff]
        %v1934 = vld [vmem:[%s1 + $0x150] sm:$0xff]
        %v1935 = vld [vmem:[%s1 + $0x158] sm:$0xff]
        %v1936 = vld [vmem:[%s1 + $0x160] sm:$0xff]
        %v1937 = vld [vmem:[%s1 + $0x168] sm:$0xff]
        %v1938 = vld [vmem:[%s1 + $0x170] sm:$0xff]
        %v1939 = vld [vmem:[%s1 + $0x178] sm:$0xff]
        %v1940 = vld [vmem:[%s1 + $0x180] sm:$0xff]
        %v1941 = vld [vmem:[%s1 + $0x188] sm:$0xff]
        %v1942 = vld [vmem:[%s1 + $0x190] sm:$0xff]
        %v1943 = vld [vmem:[%s1 + $0x198] sm:$0xff]
        %v1944 = vld [vmem:[%s1 + $0x1a0] sm:$0xff]
        %v1945 = vld [vmem:[%s1 + $0x1a8] sm:$0xff]
        %v1946 = vld [vmem:[%s1 + $0x1b0] sm:$0xff]
        %v1947 = vld [vmem:[%s1 + $0x1b8] sm:$0xff]
        %v1948 = vld [vmem:[%s1 + $0x1c0] sm:$0xff]
        %v1949 = vld [vmem:[%s1 + $0x1c8] sm:$0xff]
        %v1950 = vld [vmem:[%s1 + $0x1d0] sm:$0xff]
        %v1951 = vld [vmem:[%s1 + $0x1d8] sm:$0xff]
        %v1952 = vld [vmem:[%s1 + $0x1e0] sm:$0xff]
        %v1953 = vld [vmem:[%s1 + $0x1e8] sm:$0xff]
        %v1954 = vld [vmem:[%s1 + $0x1f0] sm:$0xff]
        %v1955 = vld [vmem:[%s1 + $0x1f8] sm:$0xff]
        %v1956 = vld [vmem:[%s1 + $0x200] sm:$0xff]
        %v1957 = vld [vmem:[%s1 + $0x208] sm:$0xff]
        %v1958 = vld [vmem:[%s1 + $0x210] sm:$0xff]
        %v1959 = vld [vmem:[%s1 + $0x218] sm:$0xff]
        %v1960 = vld [vmem:[%s1 + $0x220] sm:$0xff]
        %v1961 = vld [vmem:[%s1 + $0x228] sm:$0xff]
        %v1962 = vld [vmem:[%s1 + $0x230] sm:$0xff]
        %v1963 = vld [vmem:[%s1 + $0x238] sm:$0xff]
        %v1964 = vld [vmem:[%s1 + $0x240] sm:$0xff]
        %v1965 = vld [vmem:[%s1 + $0x248] sm:$0xff]
        %v1966 = vld [vmem:[%s1 + $0x250] sm:$0xff]
        %v1967 = vld [vmem:[%s1 + $0x258] sm:$0xff]
        %v1968 = vld [vmem:[%s1 + $0x260] sm:$0xff]
        %v1969 = vld [vmem:[%s1 + $0x268] sm:$0xff]
        %v1970 = vld [vmem:[%s1 + $0x270] sm:$0xff]
        %v1971 = vld [vmem:[%s1 + $0x278] sm:$0xff]
        %v1972 = vld [vmem:[%s1 + $0x280] sm:$0xff]
        %v1973 = vld [vmem:[%s1 + $0x288] sm:$0xff]
        %v1974 = vld [vmem:[%s1 + $0x290] sm:$0xff]
        %v1975 = vld [vmem:[%s1 + $0x298] sm:$0xff]
        %v1976 = vld [vmem:[%s1 + $0x2a0] sm:$0xff]
        %v1977 = vld [vmem:[%s1 + $0x2a8] sm:$0xff]
        %v1978 = vld [vmem:[%s1 + $0x2b0] sm:$0xff]
        %v1979 = vld [vmem:[%s1 + $0x2b8] sm:$0xff]
        %v1980 = vld [vmem:[%s1 + $0x2c0] sm:$0xff]
        %v1981 = vld [vmem:[%s1 + $0x2c8] sm:$0xff]
        %v1982 = vld [vmem:[%s1 + $0x2d0] sm:$0xff]
        %v1983 = vld [vmem:[%s1 + $0x2d8] sm:$0xff]
        %v1984 = vld [vmem:[%s1 + $0x2e0] sm:$0xff]
        %v1985 = vld [vmem:[%s1 + $0x2e8] sm:$0xff]
        %v1986 = vld [vmem:[%s1 + $0x2f0] sm:$0xff]
        %v1987 = vld [vmem:[%s1 + $0x2f8] sm:$0xff]
        %v1988 = vld [vmem:[%s1 + $0x300] sm:$0xff]
        %v1989 = vld [vmem:[%s1 + $0x308] sm:$0xff]
        %v1990 = vld [vmem:[%s1 + $0x310] sm:$0xff]
        %v1991 = vld [vmem:[%s1 + $0x318] sm:$0xff]
        %v1992 = vld [vmem:[%s1 + $0x320] sm:$0xff]
        %v1993 = vld [vmem:[%s1 + $0x328] sm:$0xff]
        %v1994 = vld [vmem:[%s1 + $0x330] sm:$0xff]
        %v1995 = vld [vmem:[%s1 + $0x338] sm:$0xff]
        %v1996 = vld [vmem:[%s1 + $0x340] sm:$0xff]
        %v1997 = vld [vmem:[%s1 + $0x348] sm:$0xff]
        %v1998 = vld [vmem:[%s1 + $0x350] sm:$0xff]
        %v1999 = vld [vmem:[%s1 + $0x358] sm:$0xff]
        %v2000 = vld [vmem:[%s1 + $0x360] sm:$0xff]
        %v2001 = vld [vmem:[%s1 + $0x368] sm:$0xff]
        %v2002 = vld [vmem:[%s1 + $0x370] sm:$0xff]
        %v2003 = vld [vmem:[%s1 + $0x378] sm:$0xff]
        %v2004 = vld [vmem:[%s1 + $0x380] sm:$0xff]
        %v2005 = vld [vmem:[%s1 + $0x388] sm:$0xff]
        %v2006 = vld [vmem:[%s1 + $0x390] sm:$0xff]
        %v2007 = vld [vmem:[%s1 + $0x398] sm:$0xff]
        %v2008 = vld [vmem:[%s1 + $0x3a0] sm:$0xff]
        %v2009 = vld [vmem:[%s1 + $0x3a8] sm:$0xff]
        %v2010 = vld [vmem:[%s1 + $0x3b0] sm:$0xff]
        %v2011 = vld [vmem:[%s1 + $0x3b8] sm:$0xff]
        %v2012 = vld [vmem:[%s1 + $0x3c0] sm:$0xff]
        %v2013 = vld [vmem:[%s1 + $0x3c8] sm:$0xff]
        %v2014 = vld [vmem:[%s1 + $0x3d0] sm:$0xff]
        %v2015 = vld [vmem:[%s1 + $0x3d8] sm:$0xff]
        %v2016 = vld [vmem:[%s1 + $0x3e0] sm:$0xff]
        %v2017 = vld [vmem:[%s1 + $0x3e8] sm:$0xff]
        %v2018 = vld [vmem:[%s1 + $0x3f0] sm:$0xff]
        %v2019 = vld [vmem:[%s1 + $0x3f8] sm:$0xff]
        %v2020 = vld [vmem:[%s1 + $0x400] sm:$0xff]
        %v2021 = vld [vmem:[%s1 + $0x408] sm:$0xff]
        %v2022 = vld [vmem:[%s1 + $0x410] sm:$0xff]
        %v2023 = vld [vmem:[%s1 + $0x418] sm:$0xff]
        %v2024 = vld [vmem:[%s1 + $0x420] sm:$0xff]
        %v2025 = vld [vmem:[%s1 + $0x428] sm:$0xff]
        %v2026 = vld [vmem:[%s1 + $0x430] sm:$0xff]
        %v2027 = vld [vmem:[%s1 + $0x438] sm:$0xff]
        %v2028 = vld [vmem:[%s1 + $0x440] sm:$0xff]
        %v2029 = vld [vmem:[%s1 + $0x448] sm:$0xff]
        %v2030 = vld [vmem:[%s1 + $0x450] sm:$0xff]
        %v2031 = vld [vmem:[%s1 + $0x458] sm:$0xff]
        %v2032 = vld [vmem:[%s1 + $0x460] sm:$0xff]
        %v2033 = vld [vmem:[%s1 + $0x468] sm:$0xff]
        %v2034 = vld [vmem:[%s1 + $0x470] sm:$0xff]
        %v2035 = vld [vmem:[%s1 + $0x478] sm:$0xff]
        %v2036 = vld [vmem:[%s1 + $0x480] sm:$0xff]
        %v2037 = vld [vmem:[%s1 + $0x488] sm:$0xff]
        %v2038 = vld [vmem:[%s1 + $0x490] sm:$0xff]
        %v2039 = vld [vmem:[%s1 + $0x498] sm:$0xff]
        %v2040 = vld [vmem:[%s1 + $0x4a0] sm:$0xff]
        %v2041 = vld [vmem:[%s1 + $0x4a8] sm:$0xff]
        %v2042 = vld [vmem:[%s1 + $0x4b0] sm:$0xff]
        %v2043 = vld [vmem:[%s1 + $0x4b8] sm:$0xff]
        %v2044 = vld [vmem:[%s1 + $0x4c0] sm:$0xff]
        %v2045 = vld [vmem:[%s1 + $0x4c8] sm:$0xff]
        %v2046 = vld [vmem:[%s1 + $0x4d0] sm:$0xff]
        %v2047 = vld [vmem:[%s1 + $0x4d8] sm:$0xff]
        %v2048 = vld [vmem:[%s1 + $0x4e0] sm:$0xff]
        %v2049 = vld [vmem:[%s1 + $0x4e8] sm:$0xff]
        %v2050 = vld [vmem:[%s1 + $0x4f0] sm:$0xff]
        %v2051 = vld [vmem:[%s1 + $0x4f8] sm:$0xff]
        %v2052 = vld [vmem:[%s1 + $0x500] sm:$0xff]
        %v2053 = vld [vmem:[%s1 + $0x508] sm:$0xff]
        %v2054 = vld [vmem:[%s1 + $0x510] sm:$0xff]
        %v2055 = vld [vmem:[%s1 + $0x518] sm:$0xff]
        %v2056 = vld [vmem:[%s1 + $0x520] sm:$0xff]
        %v2057 = vld [vmem:[%s1 + $0x528] sm:$0xff]
        %v2058 = vld [vmem:[%s1 + $0x530] sm:$0xff]
        %v2059 = vld [vmem:[%s1 + $0x538] sm:$0xff]
        %v2060 = vld [vmem:[%s1 + $0x540] sm:$0xff]
        %v2061 = vld [vmem:[%s1 + $0x548] sm:$0xff]
        %v2062 = vld [vmem:[%s1 + $0x550] sm:$0xff]
        %v2063 = vld [vmem:[%s1 + $0x558] sm:$0xff]
        %v2064 = vld [vmem:[%s1 + $0x560] sm:$0xff]
        %v2065 = vld [vmem:[%s1 + $0x568] sm:$0xff]
        %v2066 = vld [vmem:[%s1 + $0x570] sm:$0xff]
        %v2067 = vld [vmem:[%s1 + $0x578] sm:$0xff]
        %v2068 = vld [vmem:[%s1 + $0x580] sm:$0xff]
        %v2069 = vld [vmem:[%s1 + $0x588] sm:$0xff]
        %v2070 = vld [vmem:[%s1 + $0x590] sm:$0xff]
        %v2071 = vld [vmem:[%s1 + $0x598] sm:$0xff]
        %v2072 = vld [vmem:[%s1 + $0x5a0] sm:$0xff]
        %v2073 = vld [vmem:[%s1 + $0x5a8] sm:$0xff]
        %v2074 = vld [vmem:[%s1 + $0x5b0] sm:$0xff]
        %v2075 = vld [vmem:[%s1 + $0x5b8] sm:$0xff]
        %v2076 = vld [vmem:[%s1 + $0x5c0] sm:$0xff]
        %v2077 = vld [vmem:[%s1 + $0x5c8] sm:$0xff]
        %v2078 = vld [vmem:[%s1 + $0x5d0] sm:$0xff]
        %v2079 = vld [vmem:[%s1 + $0x5d8] sm:$0xff]
        %v2080 = vld [vmem:[%s1 + $0x5e0] sm:$0xff]
        %v2081 = vld [vmem:[%s1 + $0x5e8] sm:$0xff]
        %v2082 = vld [vmem:[%s1 + $0x5f0] sm:$0xff]
        %v2083 = vld [vmem:[%s1 + $0x5f8] sm:$0xff]
        %v2084 = vld [vmem:[%s1 + $0x600] sm:$0xff]
        %v2085 = vld [vmem:[%s1 + $0x608] sm:$0xff]
        %v2086 = vld [vmem:[%s1 + $0x610] sm:$0xff]
        %v2087 = vld [vmem:[%s1 + $0x618] sm:$0xff]
        %v2088 = vld [vmem:[%s1 + $0x620] sm:$0xff]
        %v2089 = vld [vmem:[%s1 + $0x628] sm:$0xff]
        %v2090 = vld [vmem:[%s1 + $0x630] sm:$0xff]
        %v2091 = vld [vmem:[%s1 + $0x638] sm:$0xff]
        %v2092 = vld [vmem:[%s1 + $0x640] sm:$0xff]
        %v2093 = vld [vmem:[%s1 + $0x648] sm:$0xff]
        %v2094 = vld [vmem:[%s1 + $0x650] sm:$0xff]
        %v2095 = vld [vmem:[%s1 + $0x658] sm:$0xff]
        %v2096 = vld [vmem:[%s1 + $0x660] sm:$0xff]
        %v2097 = vld [vmem:[%s1 + $0x668] sm:$0xff]
        %v2098 = vld [vmem:[%s1 + $0x670] sm:$0xff]
        %v2099 = vld [vmem:[%s1 + $0x678] sm:$0xff]
        %v2100 = vld [vmem:[%s1 + $0x680] sm:$0xff]
        %v2101 = vld [vmem:[%s1 + $0x688] sm:$0xff]
        %v2102 = vld [vmem:[%s1 + $0x690] sm:$0xff]
        %v2103 = vld [vmem:[%s1 + $0x698] sm:$0xff]
        %v2104 = vld [vmem:[%s1 + $0x6a0] sm:$0xff]
        %v2105 = vld [vmem:[%s1 + $0x6a8] sm:$0xff]
        %v2106 = vld [vmem:[%s1 + $0x6b0] sm:$0xff]
        %v2107 = vld [vmem:[%s1 + $0x6b8] sm:$0xff]
        %v2108 = vld [vmem:[%s1 + $0x6c0] sm:$0xff]
        %v2109 = vld [vmem:[%s1 + $0x6c8] sm:$0xff]
        %v2110 = vld [vmem:[%s1 + $0x6d0] sm:$0xff]
        %v2111 = vld [vmem:[%s1 + $0x6d8] sm:$0xff]
        %v2112 = vld [vmem:[%s1 + $0x6e0] sm:$0xff]
        %v2113 = vld [vmem:[%s1 + $0x6e8] sm:$0xff]
        %v2114 = vld [vmem:[%s1 + $0x6f0] sm:$0xff]
        %v2115 = vld [vmem:[%s1 + $0x6f8] sm:$0xff]
        %v2116 = vld [vmem:[%s1 + $0x700] sm:$0xff]
        %v2117 = vld [vmem:[%s1 + $0x708] sm:$0xff]
        %v2118 = vld [vmem:[%s1 + $0x710] sm:$0xff]
        %v2119 = vld [vmem:[%s1 + $0x718] sm:$0xff]
        %v2120 = vld [vmem:[%s1 + $0x720] sm:$0xff]
        %v2121 = vld [vmem:[%s1 + $0x728] sm:$0xff]
        %v2122 = vld [vmem:[%s1 + $0x730] sm:$0xff]
        %v2123 = vld [vmem:[%s1 + $0x738] sm:$0xff]
        %v2124 = vld [vmem:[%s1 + $0x740] sm:$0xff]
        %v2125 = vld [vmem:[%s1 + $0x748] sm:$0xff]
        %v2126 = vld [vmem:[%s1 + $0x750] sm:$0xff]
        %v2127 = vld [vmem:[%s1 + $0x758] sm:$0xff]
        %v2128 = vld [vmem:[%s1 + $0x760] sm:$0xff]
        %v2129 = vld [vmem:[%s1 + $0x768] sm:$0xff]
        %v2130 = vld [vmem:[%s1 + $0x770] sm:$0xff]
        %v2131 = vld [vmem:[%s1 + $0x778] sm:$0xff]
        %v2132 = vld [vmem:[%s1 + $0x780] sm:$0xff]
        %v2133 = vld [vmem:[%s1 + $0x788] sm:$0xff]
        %v2134 = vld [vmem:[%s1 + $0x790] sm:$0xff]
        %v2135 = vld [vmem:[%s1 + $0x798] sm:$0xff]
        %v2136 = vld [vmem:[%s1 + $0x7a0] sm:$0xff]
        %v2137 = vld [vmem:[%s1 + $0x7a8] sm:$0xff]
        %v2138 = vld [vmem:[%s1 + $0x7b0] sm:$0xff]
        %v2139 = vld [vmem:[%s1 + $0x7b8] sm:$0xff]
        %v2140 = vld [vmem:[%s1 + $0x7c0] sm:$0xff]
        %v2141 = vld [vmem:[%s1 + $0x7c8] sm:$0xff]
        %v2142 = vld [vmem:[%s1 + $0x7d0] sm:$0xff]
        %v2143 = vld [vmem:[%s1 + $0x7d8] sm:$0xff]
        %v2144 = vld [vmem:[%s1 + $0x7e0] sm:$0xff]
        %v2145 = vld [vmem:[%s1 + $0x7e8] sm:$0xff]
        %v2146 = vld [vmem:[%s1 + $0x7f0] sm:$0xff]
        %v2147 = vld [vmem:[%s1 + $0x7f8] sm:$0xff]
        %s2148 = scalar_lea.vmem %s226, 512
        %v2149 = vld [vmem:[%s2148] sm:$0xff]
        %v2150 = vld [vmem:[%s2148 + $0x8] sm:$0xff]
        %v2151 = vld [vmem:[%s2148 + $0x10] sm:$0xff]
        %v2152 = vld [vmem:[%s2148 + $0x18] sm:$0xff]
        %v2153 = vld [vmem:[%s2148 + $0x20] sm:$0xff]
        %v2154 = vld [vmem:[%s2148 + $0x28] sm:$0xff]
        %v2155 = vld [vmem:[%s2148 + $0x30] sm:$0xff]
        %v2156 = vld [vmem:[%s2148 + $0x38] sm:$0xff]
        %v2157 = vld [vmem:[%s2148 + $0x40] sm:$0xff]
        %v2158 = vld [vmem:[%s2148 + $0x48] sm:$0xff]
        %v2159 = vld [vmem:[%s2148 + $0x50] sm:$0xff]
        %v2160 = vld [vmem:[%s2148 + $0x58] sm:$0xff]
        %v2161 = vld [vmem:[%s2148 + $0x60] sm:$0xff]
        %v2162 = vld [vmem:[%s2148 + $0x68] sm:$0xff]
        %v2163 = vld [vmem:[%s2148 + $0x70] sm:$0xff]
        %v2164 = vld [vmem:[%s2148 + $0x78] sm:$0xff]
        %v2165 = vld [vmem:[%s2148 + $0x80] sm:$0xff]
        %v2166 = vld [vmem:[%s2148 + $0x88] sm:$0xff]
        %v2167 = vld [vmem:[%s2148 + $0x90] sm:$0xff]
        %v2168 = vld [vmem:[%s2148 + $0x98] sm:$0xff]
        %v2169 = vld [vmem:[%s2148 + $0xa0] sm:$0xff]
        %v2170 = vld [vmem:[%s2148 + $0xa8] sm:$0xff]
        %v2171 = vld [vmem:[%s2148 + $0xb0] sm:$0xff]
        %v2172 = vld [vmem:[%s2148 + $0xb8] sm:$0xff]
        %v2173 = vld [vmem:[%s2148 + $0xc0] sm:$0xff]
        %v2174 = vld [vmem:[%s2148 + $0xc8] sm:$0xff]
        %v2175 = vld [vmem:[%s2148 + $0xd0] sm:$0xff]
        %v2176 = vld [vmem:[%s2148 + $0xd8] sm:$0xff]
        %v2177 = vld [vmem:[%s2148 + $0xe0] sm:$0xff]
        %v2178 = vld [vmem:[%s2148 + $0xe8] sm:$0xff]
        %v2179 = vld [vmem:[%s2148 + $0xf0] sm:$0xff]
        %v2180 = vld [vmem:[%s2148 + $0xf8] sm:$0xff]
        %v2181 = vld [vmem:[%s2148 + $0x100] sm:$0xff]
        %v2182 = vld [vmem:[%s2148 + $0x108] sm:$0xff]
        %v2183 = vld [vmem:[%s2148 + $0x110] sm:$0xff]
        %v2184 = vld [vmem:[%s2148 + $0x118] sm:$0xff]
        %v2185 = vld [vmem:[%s2148 + $0x120] sm:$0xff]
        %v2186 = vld [vmem:[%s2148 + $0x128] sm:$0xff]
        %v2187 = vld [vmem:[%s2148 + $0x130] sm:$0xff]
        %v2188 = vld [vmem:[%s2148 + $0x138] sm:$0xff]
        %v2189 = vld [vmem:[%s2148 + $0x140] sm:$0xff]
        %v2190 = vld [vmem:[%s2148 + $0x148] sm:$0xff]
        %v2191 = vld [vmem:[%s2148 + $0x150] sm:$0xff]
        %v2192 = vld [vmem:[%s2148 + $0x158] sm:$0xff]
        %v2193 = vld [vmem:[%s2148 + $0x160] sm:$0xff]
        %v2194 = vld [vmem:[%s2148 + $0x168] sm:$0xff]
        %v2195 = vld [vmem:[%s2148 + $0x170] sm:$0xff]
        %v2196 = vld [vmem:[%s2148 + $0x178] sm:$0xff]
        %v2197 = vld [vmem:[%s2148 + $0x180] sm:$0xff]
        %v2198 = vld [vmem:[%s2148 + $0x188] sm:$0xff]
        %v2199 = vld [vmem:[%s2148 + $0x190] sm:$0xff]
        %v2200 = vld [vmem:[%s2148 + $0x198] sm:$0xff]
        %v2201 = vld [vmem:[%s2148 + $0x1a0] sm:$0xff]
        %v2202 = vld [vmem:[%s2148 + $0x1a8] sm:$0xff]
        %v2203 = vld [vmem:[%s2148 + $0x1b0] sm:$0xff]
        %v2204 = vld [vmem:[%s2148 + $0x1b8] sm:$0xff]
        %v2205 = vld [vmem:[%s2148 + $0x1c0] sm:$0xff]
        %v2206 = vld [vmem:[%s2148 + $0x1c8] sm:$0xff]
        %v2207 = vld [vmem:[%s2148 + $0x1d0] sm:$0xff]
        %v2208 = vld [vmem:[%s2148 + $0x1d8] sm:$0xff]
        %v2209 = vld [vmem:[%s2148 + $0x1e0] sm:$0xff]
        %v2210 = vld [vmem:[%s2148 + $0x1e8] sm:$0xff]
        %v2211 = vld [vmem:[%s2148 + $0x1f0] sm:$0xff]
        %v2212 = vld [vmem:[%s2148 + $0x1f8] sm:$0xff]
        %v2213 = vld [vmem:[%s2148 + $0x400] sm:$0xff]
        %v2214 = vld [vmem:[%s2148 + $0x408] sm:$0xff]
        %v2215 = vld [vmem:[%s2148 + $0x410] sm:$0xff]
        %v2216 = vld [vmem:[%s2148 + $0x418] sm:$0xff]
        %v2217 = vld [vmem:[%s2148 + $0x420] sm:$0xff]
        %v2218 = vld [vmem:[%s2148 + $0x428] sm:$0xff]
        %v2219 = vld [vmem:[%s2148 + $0x430] sm:$0xff]
        %v2220 = vld [vmem:[%s2148 + $0x438] sm:$0xff]
        %v2221 = vld [vmem:[%s2148 + $0x440] sm:$0xff]
        %v2222 = vld [vmem:[%s2148 + $0x448] sm:$0xff]
        %v2223 = vld [vmem:[%s2148 + $0x450] sm:$0xff]
        %v2224 = vld [vmem:[%s2148 + $0x458] sm:$0xff]
        %v2225 = vld [vmem:[%s2148 + $0x460] sm:$0xff]
        %v2226 = vld [vmem:[%s2148 + $0x468] sm:$0xff]
        %v2227 = vld [vmem:[%s2148 + $0x470] sm:$0xff]
        %v2228 = vld [vmem:[%s2148 + $0x478] sm:$0xff]
        %v2229 = vld [vmem:[%s2148 + $0x480] sm:$0xff]
        %v2230 = vld [vmem:[%s2148 + $0x488] sm:$0xff]
        %v2231 = vld [vmem:[%s2148 + $0x490] sm:$0xff]
        %v2232 = vld [vmem:[%s2148 + $0x498] sm:$0xff]
        %v2233 = vld [vmem:[%s2148 + $0x4a0] sm:$0xff]
        %v2234 = vld [vmem:[%s2148 + $0x4a8] sm:$0xff]
        %v2235 = vld [vmem:[%s2148 + $0x4b0] sm:$0xff]
        %v2236 = vld [vmem:[%s2148 + $0x4b8] sm:$0xff]
        %v2237 = vld [vmem:[%s2148 + $0x4c0] sm:$0xff]
        %v2238 = vld [vmem:[%s2148 + $0x4c8] sm:$0xff]
        %v2239 = vld [vmem:[%s2148 + $0x4d0] sm:$0xff]
        %v2240 = vld [vmem:[%s2148 + $0x4d8] sm:$0xff]
        %v2241 = vld [vmem:[%s2148 + $0x4e0] sm:$0xff]
        %v2242 = vld [vmem:[%s2148 + $0x4e8] sm:$0xff]
        %v2243 = vld [vmem:[%s2148 + $0x4f0] sm:$0xff]
        %v2244 = vld [vmem:[%s2148 + $0x4f8] sm:$0xff]
        %v2245 = vld [vmem:[%s2148 + $0x500] sm:$0xff]
        %v2246 = vld [vmem:[%s2148 + $0x508] sm:$0xff]
        %v2247 = vld [vmem:[%s2148 + $0x510] sm:$0xff]
        %v2248 = vld [vmem:[%s2148 + $0x518] sm:$0xff]
        %v2249 = vld [vmem:[%s2148 + $0x520] sm:$0xff]
        %v2250 = vld [vmem:[%s2148 + $0x528] sm:$0xff]
        %v2251 = vld [vmem:[%s2148 + $0x530] sm:$0xff]
        %v2252 = vld [vmem:[%s2148 + $0x538] sm:$0xff]
        %v2253 = vld [vmem:[%s2148 + $0x540] sm:$0xff]
        %v2254 = vld [vmem:[%s2148 + $0x548] sm:$0xff]
        %v2255 = vld [vmem:[%s2148 + $0x550] sm:$0xff]
        %v2256 = vld [vmem:[%s2148 + $0x558] sm:$0xff]
        %v2257 = vld [vmem:[%s2148 + $0x560] sm:$0xff]
        %v2258 = vld [vmem:[%s2148 + $0x568] sm:$0xff]
        %v2259 = vld [vmem:[%s2148 + $0x570] sm:$0xff]
        %v2260 = vld [vmem:[%s2148 + $0x578] sm:$0xff]
        %v2261 = vld [vmem:[%s2148 + $0x580] sm:$0xff]
        %v2262 = vld [vmem:[%s2148 + $0x588] sm:$0xff]
        %v2263 = vld [vmem:[%s2148 + $0x590] sm:$0xff]
        %v2264 = vld [vmem:[%s2148 + $0x598] sm:$0xff]
        %v2265 = vld [vmem:[%s2148 + $0x5a0] sm:$0xff]
        %v2266 = vld [vmem:[%s2148 + $0x5a8] sm:$0xff]
        %v2267 = vld [vmem:[%s2148 + $0x5b0] sm:$0xff]
        %v2268 = vld [vmem:[%s2148 + $0x5b8] sm:$0xff]
        %v2269 = vld [vmem:[%s2148 + $0x5c0] sm:$0xff]
        %v2270 = vld [vmem:[%s2148 + $0x5c8] sm:$0xff]
        %v2271 = vld [vmem:[%s2148 + $0x5d0] sm:$0xff]
        %v2272 = vld [vmem:[%s2148 + $0x5d8] sm:$0xff]
        %v2273 = vld [vmem:[%s2148 + $0x5e0] sm:$0xff]
        %v2274 = vld [vmem:[%s2148 + $0x5e8] sm:$0xff]
        %v2275 = vld [vmem:[%s2148 + $0x5f0] sm:$0xff]
        %v2276 = vld [vmem:[%s2148 + $0x5f8] sm:$0xff]
        %v2277 = vld [vmem:[%s2148 + $0x800] sm:$0xff]
        %v2278 = vld [vmem:[%s2148 + $0x808] sm:$0xff]
        %v2279 = vld [vmem:[%s2148 + $0x810] sm:$0xff]
        %v2280 = vld [vmem:[%s2148 + $0x818] sm:$0xff]
        %v2281 = vld [vmem:[%s2148 + $0x820] sm:$0xff]
        %v2282 = vld [vmem:[%s2148 + $0x828] sm:$0xff]
        %v2283 = vld [vmem:[%s2148 + $0x830] sm:$0xff]
        %v2284 = vld [vmem:[%s2148 + $0x838] sm:$0xff]
        %v2285 = vld [vmem:[%s2148 + $0x840] sm:$0xff]
        %v2286 = vld [vmem:[%s2148 + $0x848] sm:$0xff]
        %v2287 = vld [vmem:[%s2148 + $0x850] sm:$0xff]
        %v2288 = vld [vmem:[%s2148 + $0x858] sm:$0xff]
        %v2289 = vld [vmem:[%s2148 + $0x860] sm:$0xff]
        %v2290 = vld [vmem:[%s2148 + $0x868] sm:$0xff]
        %v2291 = vld [vmem:[%s2148 + $0x870] sm:$0xff]
        %v2292 = vld [vmem:[%s2148 + $0x878] sm:$0xff]
        %v2293 = vld [vmem:[%s2148 + $0x880] sm:$0xff]
        %v2294 = vld [vmem:[%s2148 + $0x888] sm:$0xff]
        %v2295 = vld [vmem:[%s2148 + $0x890] sm:$0xff]
        %v2296 = vld [vmem:[%s2148 + $0x898] sm:$0xff]
        %v2297 = vld [vmem:[%s2148 + $0x8a0] sm:$0xff]
        %v2298 = vld [vmem:[%s2148 + $0x8a8] sm:$0xff]
        %v2299 = vld [vmem:[%s2148 + $0x8b0] sm:$0xff]
        %v2300 = vld [vmem:[%s2148 + $0x8b8] sm:$0xff]
        %v2301 = vld [vmem:[%s2148 + $0x8c0] sm:$0xff]
        %v2302 = vld [vmem:[%s2148 + $0x8c8] sm:$0xff]
        %v2303 = vld [vmem:[%s2148 + $0x8d0] sm:$0xff]
        %v2304 = vld [vmem:[%s2148 + $0x8d8] sm:$0xff]
        %v2305 = vld [vmem:[%s2148 + $0x8e0] sm:$0xff]
        %v2306 = vld [vmem:[%s2148 + $0x8e8] sm:$0xff]
        %v2307 = vld [vmem:[%s2148 + $0x8f0] sm:$0xff]
        %v2308 = vld [vmem:[%s2148 + $0x8f8] sm:$0xff]
        %v2309 = vld [vmem:[%s2148 + $0x900] sm:$0xff]
        %v2310 = vld [vmem:[%s2148 + $0x908] sm:$0xff]
        %v2311 = vld [vmem:[%s2148 + $0x910] sm:$0xff]
        %v2312 = vld [vmem:[%s2148 + $0x918] sm:$0xff]
        %v2313 = vld [vmem:[%s2148 + $0x920] sm:$0xff]
        %v2314 = vld [vmem:[%s2148 + $0x928] sm:$0xff]
        %v2315 = vld [vmem:[%s2148 + $0x930] sm:$0xff]
        %v2316 = vld [vmem:[%s2148 + $0x938] sm:$0xff]
        %v2317 = vld [vmem:[%s2148 + $0x940] sm:$0xff]
        %v2318 = vld [vmem:[%s2148 + $0x948] sm:$0xff]
        %v2319 = vld [vmem:[%s2148 + $0x950] sm:$0xff]
        %v2320 = vld [vmem:[%s2148 + $0x958] sm:$0xff]
        %v2321 = vld [vmem:[%s2148 + $0x960] sm:$0xff]
        %v2322 = vld [vmem:[%s2148 + $0x968] sm:$0xff]
        %v2323 = vld [vmem:[%s2148 + $0x970] sm:$0xff]
        %v2324 = vld [vmem:[%s2148 + $0x978] sm:$0xff]
        %v2325 = vld [vmem:[%s2148 + $0x980] sm:$0xff]
        %v2326 = vld [vmem:[%s2148 + $0x988] sm:$0xff]
        %v2327 = vld [vmem:[%s2148 + $0x990] sm:$0xff]
        %v2328 = vld [vmem:[%s2148 + $0x998] sm:$0xff]
        %v2329 = vld [vmem:[%s2148 + $0x9a0] sm:$0xff]
        %v2330 = vld [vmem:[%s2148 + $0x9a8] sm:$0xff]
        %v2331 = vld [vmem:[%s2148 + $0x9b0] sm:$0xff]
        %v2332 = vld [vmem:[%s2148 + $0x9b8] sm:$0xff]
        %v2333 = vld [vmem:[%s2148 + $0x9c0] sm:$0xff]
        %v2334 = vld [vmem:[%s2148 + $0x9c8] sm:$0xff]
        %v2335 = vld [vmem:[%s2148 + $0x9d0] sm:$0xff]
        %v2336 = vld [vmem:[%s2148 + $0x9d8] sm:$0xff]
        %v2337 = vld [vmem:[%s2148 + $0x9e0] sm:$0xff]
        %v2338 = vld [vmem:[%s2148 + $0x9e8] sm:$0xff]
        %v2339 = vld [vmem:[%s2148 + $0x9f0] sm:$0xff]
        %v2340 = vld [vmem:[%s2148 + $0x9f8] sm:$0xff]
        %v2341 = vld [vmem:[%s2148 + $0xc00] sm:$0xff]
        %v2342 = vld [vmem:[%s2148 + $0xc08] sm:$0xff]
        %v2343 = vld [vmem:[%s2148 + $0xc10] sm:$0xff]
        %v2344 = vld [vmem:[%s2148 + $0xc18] sm:$0xff]
        %v2345 = vld [vmem:[%s2148 + $0xc20] sm:$0xff]
        %v2346 = vld [vmem:[%s2148 + $0xc28] sm:$0xff]
        %v2347 = vld [vmem:[%s2148 + $0xc30] sm:$0xff]
        %v2348 = vld [vmem:[%s2148 + $0xc38] sm:$0xff]
        %v2349 = vld [vmem:[%s2148 + $0xc40] sm:$0xff]
        %v2350 = vld [vmem:[%s2148 + $0xc48] sm:$0xff]
        %v2351 = vld [vmem:[%s2148 + $0xc50] sm:$0xff]
        %v2352 = vld [vmem:[%s2148 + $0xc58] sm:$0xff]
        %v2353 = vld [vmem:[%s2148 + $0xc60] sm:$0xff]
        %v2354 = vld [vmem:[%s2148 + $0xc68] sm:$0xff]
        %v2355 = vld [vmem:[%s2148 + $0xc70] sm:$0xff]
        %v2356 = vld [vmem:[%s2148 + $0xc78] sm:$0xff]
        %v2357 = vld [vmem:[%s2148 + $0xc80] sm:$0xff]
        %v2358 = vld [vmem:[%s2148 + $0xc88] sm:$0xff]
        %v2359 = vld [vmem:[%s2148 + $0xc90] sm:$0xff]
        %v2360 = vld [vmem:[%s2148 + $0xc98] sm:$0xff]
        %v2361 = vld [vmem:[%s2148 + $0xca0] sm:$0xff]
        %v2362 = vld [vmem:[%s2148 + $0xca8] sm:$0xff]
        %v2363 = vld [vmem:[%s2148 + $0xcb0] sm:$0xff]
        %v2364 = vld [vmem:[%s2148 + $0xcb8] sm:$0xff]
        %v2365 = vld [vmem:[%s2148 + $0xcc0] sm:$0xff]
        %v2366 = vld [vmem:[%s2148 + $0xcc8] sm:$0xff]
        %v2367 = vld [vmem:[%s2148 + $0xcd0] sm:$0xff]
        %v2368 = vld [vmem:[%s2148 + $0xcd8] sm:$0xff]
        %v2369 = vld [vmem:[%s2148 + $0xce0] sm:$0xff]
        %v2370 = vld [vmem:[%s2148 + $0xce8] sm:$0xff]
        %v2371 = vld [vmem:[%s2148 + $0xcf0] sm:$0xff]
        %v2372 = vld [vmem:[%s2148 + $0xcf8] sm:$0xff]
        %v2373 = vld [vmem:[%s2148 + $0xd00] sm:$0xff]
        %v2374 = vld [vmem:[%s2148 + $0xd08] sm:$0xff]
        %v2375 = vld [vmem:[%s2148 + $0xd10] sm:$0xff]
        %v2376 = vld [vmem:[%s2148 + $0xd18] sm:$0xff]
        %v2377 = vld [vmem:[%s2148 + $0xd20] sm:$0xff]
        %v2378 = vld [vmem:[%s2148 + $0xd28] sm:$0xff]
        %v2379 = vld [vmem:[%s2148 + $0xd30] sm:$0xff]
        %v2380 = vld [vmem:[%s2148 + $0xd38] sm:$0xff]
        %v2381 = vld [vmem:[%s2148 + $0xd40] sm:$0xff]
        %v2382 = vld [vmem:[%s2148 + $0xd48] sm:$0xff]
        %v2383 = vld [vmem:[%s2148 + $0xd50] sm:$0xff]
        %v2384 = vld [vmem:[%s2148 + $0xd58] sm:$0xff]
        %v2385 = vld [vmem:[%s2148 + $0xd60] sm:$0xff]
        %v2386 = vld [vmem:[%s2148 + $0xd68] sm:$0xff]
        %v2387 = vld [vmem:[%s2148 + $0xd70] sm:$0xff]
        %v2388 = vld [vmem:[%s2148 + $0xd78] sm:$0xff]
        %v2389 = vld [vmem:[%s2148 + $0xd80] sm:$0xff]
        %v2390 = vld [vmem:[%s2148 + $0xd88] sm:$0xff]
        %v2391 = vld [vmem:[%s2148 + $0xd90] sm:$0xff]
        %v2392 = vld [vmem:[%s2148 + $0xd98] sm:$0xff]
        %v2393 = vld [vmem:[%s2148 + $0xda0] sm:$0xff]
        %v2394 = vld [vmem:[%s2148 + $0xda8] sm:$0xff]
        %v2395 = vld [vmem:[%s2148 + $0xdb0] sm:$0xff]
        %v2396 = vld [vmem:[%s2148 + $0xdb8] sm:$0xff]
        %v2397 = vld [vmem:[%s2148 + $0xdc0] sm:$0xff]
        %v2398 = vld [vmem:[%s2148 + $0xdc8] sm:$0xff]
        %v2399 = vld [vmem:[%s2148 + $0xdd0] sm:$0xff]
        %v2400 = vld [vmem:[%s2148 + $0xdd8] sm:$0xff]
        %v2401 = vld [vmem:[%s2148 + $0xde0] sm:$0xff]
        %v2402 = vld [vmem:[%s2148 + $0xde8] sm:$0xff]
        %v2403 = vld [vmem:[%s2148 + $0xdf0] sm:$0xff]
        %v2404 = vld [vmem:[%s2148 + $0xdf8] sm:$0xff]
        %v2405 = vld [vmem:[%s2148 + $0x1000] sm:$0xff]
        %v2406 = vld [vmem:[%s2148 + $0x1008] sm:$0xff]
        %v2407 = vld [vmem:[%s2148 + $0x1010] sm:$0xff]
        %v2408 = vld [vmem:[%s2148 + $0x1018] sm:$0xff]
        %v2409 = vld [vmem:[%s2148 + $0x1020] sm:$0xff]
        %v2410 = vld [vmem:[%s2148 + $0x1028] sm:$0xff]
        %v2411 = vld [vmem:[%s2148 + $0x1030] sm:$0xff]
        %v2412 = vld [vmem:[%s2148 + $0x1038] sm:$0xff]
        %v2413 = vld [vmem:[%s2148 + $0x1040] sm:$0xff]
        %v2414 = vld [vmem:[%s2148 + $0x1048] sm:$0xff]
        %v2415 = vld [vmem:[%s2148 + $0x1050] sm:$0xff]
        %v2416 = vld [vmem:[%s2148 + $0x1058] sm:$0xff]
        %v2417 = vld [vmem:[%s2148 + $0x1060] sm:$0xff]
        %v2418 = vld [vmem:[%s2148 + $0x1068] sm:$0xff]
        %v2419 = vld [vmem:[%s2148 + $0x1070] sm:$0xff]
        %v2420 = vld [vmem:[%s2148 + $0x1078] sm:$0xff]
        %v2421 = vld [vmem:[%s2148 + $0x1080] sm:$0xff]
        %v2422 = vld [vmem:[%s2148 + $0x1088] sm:$0xff]
        %v2423 = vld [vmem:[%s2148 + $0x1090] sm:$0xff]
        %v2424 = vld [vmem:[%s2148 + $0x1098] sm:$0xff]
        %v2425 = vld [vmem:[%s2148 + $0x10a0] sm:$0xff]
        %v2426 = vld [vmem:[%s2148 + $0x10a8] sm:$0xff]
        %v2427 = vld [vmem:[%s2148 + $0x10b0] sm:$0xff]
        %v2428 = vld [vmem:[%s2148 + $0x10b8] sm:$0xff]
        %v2429 = vld [vmem:[%s2148 + $0x10c0] sm:$0xff]
        %v2430 = vld [vmem:[%s2148 + $0x10c8] sm:$0xff]
        %v2431 = vld [vmem:[%s2148 + $0x10d0] sm:$0xff]
        %v2432 = vld [vmem:[%s2148 + $0x10d8] sm:$0xff]
        %v2433 = vld [vmem:[%s2148 + $0x10e0] sm:$0xff]
        %v2434 = vld [vmem:[%s2148 + $0x10e8] sm:$0xff]
        %v2435 = vld [vmem:[%s2148 + $0x10f0] sm:$0xff]
        %v2436 = vld [vmem:[%s2148 + $0x10f8] sm:$0xff]
        %v2437 = vld [vmem:[%s2148 + $0x1100] sm:$0xff]
        %v2438 = vld [vmem:[%s2148 + $0x1108] sm:$0xff]
        %v2439 = vld [vmem:[%s2148 + $0x1110] sm:$0xff]
        %v2440 = vld [vmem:[%s2148 + $0x1118] sm:$0xff]
        %v2441 = vld [vmem:[%s2148 + $0x1120] sm:$0xff]
        %v2442 = vld [vmem:[%s2148 + $0x1128] sm:$0xff]
        %v2443 = vld [vmem:[%s2148 + $0x1130] sm:$0xff]
        %v2444 = vld [vmem:[%s2148 + $0x1138] sm:$0xff]
        %v2445 = vld [vmem:[%s2148 + $0x1140] sm:$0xff]
        %v2446 = vld [vmem:[%s2148 + $0x1148] sm:$0xff]
        %v2447 = vld [vmem:[%s2148 + $0x1150] sm:$0xff]
        %v2448 = vld [vmem:[%s2148 + $0x1158] sm:$0xff]
        %v2449 = vld [vmem:[%s2148 + $0x1160] sm:$0xff]
        %v2450 = vld [vmem:[%s2148 + $0x1168] sm:$0xff]
        %v2451 = vld [vmem:[%s2148 + $0x1170] sm:$0xff]
        %v2452 = vld [vmem:[%s2148 + $0x1178] sm:$0xff]
        %v2453 = vld [vmem:[%s2148 + $0x1180] sm:$0xff]
        %v2454 = vld [vmem:[%s2148 + $0x1188] sm:$0xff]
        %v2455 = vld [vmem:[%s2148 + $0x1190] sm:$0xff]
        %v2456 = vld [vmem:[%s2148 + $0x1198] sm:$0xff]
        %v2457 = vld [vmem:[%s2148 + $0x11a0] sm:$0xff]
        %v2458 = vld [vmem:[%s2148 + $0x11a8] sm:$0xff]
        %v2459 = vld [vmem:[%s2148 + $0x11b0] sm:$0xff]
        %v2460 = vld [vmem:[%s2148 + $0x11b8] sm:$0xff]
        %v2461 = vld [vmem:[%s2148 + $0x11c0] sm:$0xff]
        %v2462 = vld [vmem:[%s2148 + $0x11c8] sm:$0xff]
        %v2463 = vld [vmem:[%s2148 + $0x11d0] sm:$0xff]
        %v2464 = vld [vmem:[%s2148 + $0x11d8] sm:$0xff]
        %v2465 = vld [vmem:[%s2148 + $0x11e0] sm:$0xff]
        %v2466 = vld [vmem:[%s2148 + $0x11e8] sm:$0xff]
        %v2467 = vld [vmem:[%s2148 + $0x11f0] sm:$0xff]
        %v2468 = vld [vmem:[%s2148 + $0x11f8] sm:$0xff]
        %v2469 = vld [vmem:[%s2148 + $0x1400] sm:$0xff]
        %v2470 = vld [vmem:[%s2148 + $0x1408] sm:$0xff]
        %v2471 = vld [vmem:[%s2148 + $0x1410] sm:$0xff]
        %v2472 = vld [vmem:[%s2148 + $0x1418] sm:$0xff]
        %v2473 = vld [vmem:[%s2148 + $0x1420] sm:$0xff]
        %v2474 = vld [vmem:[%s2148 + $0x1428] sm:$0xff]
        %v2475 = vld [vmem:[%s2148 + $0x1430] sm:$0xff]
        %v2476 = vld [vmem:[%s2148 + $0x1438] sm:$0xff]
        %v2477 = vld [vmem:[%s2148 + $0x1440] sm:$0xff]
        %v2478 = vld [vmem:[%s2148 + $0x1448] sm:$0xff]
        %v2479 = vld [vmem:[%s2148 + $0x1450] sm:$0xff]
        %v2480 = vld [vmem:[%s2148 + $0x1458] sm:$0xff]
        %v2481 = vld [vmem:[%s2148 + $0x1460] sm:$0xff]
        %v2482 = vld [vmem:[%s2148 + $0x1468] sm:$0xff]
        %v2483 = vld [vmem:[%s2148 + $0x1470] sm:$0xff]
        %v2484 = vld [vmem:[%s2148 + $0x1478] sm:$0xff]
        %v2485 = vld [vmem:[%s2148 + $0x1480] sm:$0xff]
        %v2486 = vld [vmem:[%s2148 + $0x1488] sm:$0xff]
        %v2487 = vld [vmem:[%s2148 + $0x1490] sm:$0xff]
        %v2488 = vld [vmem:[%s2148 + $0x1498] sm:$0xff]
        %v2489 = vld [vmem:[%s2148 + $0x14a0] sm:$0xff]
        %v2490 = vld [vmem:[%s2148 + $0x14a8] sm:$0xff]
        %v2491 = vld [vmem:[%s2148 + $0x14b0] sm:$0xff]
        %v2492 = vld [vmem:[%s2148 + $0x14b8] sm:$0xff]
        %v2493 = vld [vmem:[%s2148 + $0x14c0] sm:$0xff]
        %v2494 = vld [vmem:[%s2148 + $0x14c8] sm:$0xff]
        %v2495 = vld [vmem:[%s2148 + $0x14d0] sm:$0xff]
        %v2496 = vld [vmem:[%s2148 + $0x14d8] sm:$0xff]
        %v2497 = vld [vmem:[%s2148 + $0x14e0] sm:$0xff]
        %v2498 = vld [vmem:[%s2148 + $0x14e8] sm:$0xff]
        %v2499 = vld [vmem:[%s2148 + $0x14f0] sm:$0xff]
        %v2500 = vld [vmem:[%s2148 + $0x14f8] sm:$0xff]
        %v2501 = vld [vmem:[%s2148 + $0x1500] sm:$0xff]
        %v2502 = vld [vmem:[%s2148 + $0x1508] sm:$0xff]
        %v2503 = vld [vmem:[%s2148 + $0x1510] sm:$0xff]
        %v2504 = vld [vmem:[%s2148 + $0x1518] sm:$0xff]
        %v2505 = vld [vmem:[%s2148 + $0x1520] sm:$0xff]
        %v2506 = vld [vmem:[%s2148 + $0x1528] sm:$0xff]
        %v2507 = vld [vmem:[%s2148 + $0x1530] sm:$0xff]
        %v2508 = vld [vmem:[%s2148 + $0x1538] sm:$0xff]
        %v2509 = vld [vmem:[%s2148 + $0x1540] sm:$0xff]
        %v2510 = vld [vmem:[%s2148 + $0x1548] sm:$0xff]
        %v2511 = vld [vmem:[%s2148 + $0x1550] sm:$0xff]
        %v2512 = vld [vmem:[%s2148 + $0x1558] sm:$0xff]
        %v2513 = vld [vmem:[%s2148 + $0x1560] sm:$0xff]
        %v2514 = vld [vmem:[%s2148 + $0x1568] sm:$0xff]
        %v2515 = vld [vmem:[%s2148 + $0x1570] sm:$0xff]
        %v2516 = vld [vmem:[%s2148 + $0x1578] sm:$0xff]
        %v2517 = vld [vmem:[%s2148 + $0x1580] sm:$0xff]
        %v2518 = vld [vmem:[%s2148 + $0x1588] sm:$0xff]
        %v2519 = vld [vmem:[%s2148 + $0x1590] sm:$0xff]
        %v2520 = vld [vmem:[%s2148 + $0x1598] sm:$0xff]
        %v2521 = vld [vmem:[%s2148 + $0x15a0] sm:$0xff]
        %v2522 = vld [vmem:[%s2148 + $0x15a8] sm:$0xff]
        %v2523 = vld [vmem:[%s2148 + $0x15b0] sm:$0xff]
        %v2524 = vld [vmem:[%s2148 + $0x15b8] sm:$0xff]
        %v2525 = vld [vmem:[%s2148 + $0x15c0] sm:$0xff]
        %v2526 = vld [vmem:[%s2148 + $0x15c8] sm:$0xff]
        %v2527 = vld [vmem:[%s2148 + $0x15d0] sm:$0xff]
        %v2528 = vld [vmem:[%s2148 + $0x15d8] sm:$0xff]
        %v2529 = vld [vmem:[%s2148 + $0x15e0] sm:$0xff]
        %v2530 = vld [vmem:[%s2148 + $0x15e8] sm:$0xff]
        %v2531 = vld [vmem:[%s2148 + $0x15f0] sm:$0xff]
        %v2532 = vld [vmem:[%s2148 + $0x15f8] sm:$0xff]
        %v2533 = vld [vmem:[%s2148 + $0x1800] sm:$0xff]
        %v2534 = vld [vmem:[%s2148 + $0x1808] sm:$0xff]
        %v2535 = vld [vmem:[%s2148 + $0x1810] sm:$0xff]
        %v2536 = vld [vmem:[%s2148 + $0x1818] sm:$0xff]
        %v2537 = vld [vmem:[%s2148 + $0x1820] sm:$0xff]
        %v2538 = vld [vmem:[%s2148 + $0x1828] sm:$0xff]
        %v2539 = vld [vmem:[%s2148 + $0x1830] sm:$0xff]
        %v2540 = vld [vmem:[%s2148 + $0x1838] sm:$0xff]
        %v2541 = vld [vmem:[%s2148 + $0x1840] sm:$0xff]
        %v2542 = vld [vmem:[%s2148 + $0x1848] sm:$0xff]
        %v2543 = vld [vmem:[%s2148 + $0x1850] sm:$0xff]
        %v2544 = vld [vmem:[%s2148 + $0x1858] sm:$0xff]
        %v2545 = vld [vmem:[%s2148 + $0x1860] sm:$0xff]
        %v2546 = vld [vmem:[%s2148 + $0x1868] sm:$0xff]
        %v2547 = vld [vmem:[%s2148 + $0x1870] sm:$0xff]
        %v2548 = vld [vmem:[%s2148 + $0x1878] sm:$0xff]
        %v2549 = vld [vmem:[%s2148 + $0x1880] sm:$0xff]
        %v2550 = vld [vmem:[%s2148 + $0x1888] sm:$0xff]
        %v2551 = vld [vmem:[%s2148 + $0x1890] sm:$0xff]
        %v2552 = vld [vmem:[%s2148 + $0x1898] sm:$0xff]
        %v2553 = vld [vmem:[%s2148 + $0x18a0] sm:$0xff]
        %v2554 = vld [vmem:[%s2148 + $0x18a8] sm:$0xff]
        %v2555 = vld [vmem:[%s2148 + $0x18b0] sm:$0xff]
        %v2556 = vld [vmem:[%s2148 + $0x18b8] sm:$0xff]
        %v2557 = vld [vmem:[%s2148 + $0x18c0] sm:$0xff]
        %v2558 = vld [vmem:[%s2148 + $0x18c8] sm:$0xff]
        %v2559 = vld [vmem:[%s2148 + $0x18d0] sm:$0xff]
        %v2560 = vld [vmem:[%s2148 + $0x18d8] sm:$0xff]
        %v2561 = vld [vmem:[%s2148 + $0x18e0] sm:$0xff]
        %v2562 = vld [vmem:[%s2148 + $0x18e8] sm:$0xff]
        %v2563 = vld [vmem:[%s2148 + $0x18f0] sm:$0xff]
        %v2564 = vld [vmem:[%s2148 + $0x18f8] sm:$0xff]
        %v2565 = vld [vmem:[%s2148 + $0x1900] sm:$0xff]
        %v2566 = vld [vmem:[%s2148 + $0x1908] sm:$0xff]
        %v2567 = vld [vmem:[%s2148 + $0x1910] sm:$0xff]
        %v2568 = vld [vmem:[%s2148 + $0x1918] sm:$0xff]
        %v2569 = vld [vmem:[%s2148 + $0x1920] sm:$0xff]
        %v2570 = vld [vmem:[%s2148 + $0x1928] sm:$0xff]
        %v2571 = vld [vmem:[%s2148 + $0x1930] sm:$0xff]
        %v2572 = vld [vmem:[%s2148 + $0x1938] sm:$0xff]
        %v2573 = vld [vmem:[%s2148 + $0x1940] sm:$0xff]
        %v2574 = vld [vmem:[%s2148 + $0x1948] sm:$0xff]
        %v2575 = vld [vmem:[%s2148 + $0x1950] sm:$0xff]
        %v2576 = vld [vmem:[%s2148 + $0x1958] sm:$0xff]
        %v2577 = vld [vmem:[%s2148 + $0x1960] sm:$0xff]
        %v2578 = vld [vmem:[%s2148 + $0x1968] sm:$0xff]
        %v2579 = vld [vmem:[%s2148 + $0x1970] sm:$0xff]
        %v2580 = vld [vmem:[%s2148 + $0x1978] sm:$0xff]
        %v2581 = vld [vmem:[%s2148 + $0x1980] sm:$0xff]
        %v2582 = vld [vmem:[%s2148 + $0x1988] sm:$0xff]
        %v2583 = vld [vmem:[%s2148 + $0x1990] sm:$0xff]
        %v2584 = vld [vmem:[%s2148 + $0x1998] sm:$0xff]
        %v2585 = vld [vmem:[%s2148 + $0x19a0] sm:$0xff]
        %v2586 = vld [vmem:[%s2148 + $0x19a8] sm:$0xff]
        %v2587 = vld [vmem:[%s2148 + $0x19b0] sm:$0xff]
        %v2588 = vld [vmem:[%s2148 + $0x19b8] sm:$0xff]
        %v2589 = vld [vmem:[%s2148 + $0x19c0] sm:$0xff]
        %v2590 = vld [vmem:[%s2148 + $0x19c8] sm:$0xff]
        %v2591 = vld [vmem:[%s2148 + $0x19d0] sm:$0xff]
        %v2592 = vld [vmem:[%s2148 + $0x19d8] sm:$0xff]
        %v2593 = vld [vmem:[%s2148 + $0x19e0] sm:$0xff]
        %v2594 = vld [vmem:[%s2148 + $0x19e8] sm:$0xff]
        %v2595 = vld [vmem:[%s2148 + $0x19f0] sm:$0xff]
        %v2596 = vld [vmem:[%s2148 + $0x19f8] sm:$0xff]
        %v2597 = vld [vmem:[%s2148 + $0x1c00] sm:$0xff]
        %v2598 = vld [vmem:[%s2148 + $0x1c08] sm:$0xff]
        %v2599 = vld [vmem:[%s2148 + $0x1c10] sm:$0xff]
        %v2600 = vld [vmem:[%s2148 + $0x1c18] sm:$0xff]
        %v2601 = vld [vmem:[%s2148 + $0x1c20] sm:$0xff]
        %v2602 = vld [vmem:[%s2148 + $0x1c28] sm:$0xff]
        %v2603 = vld [vmem:[%s2148 + $0x1c30] sm:$0xff]
        %v2604 = vld [vmem:[%s2148 + $0x1c38] sm:$0xff]
        %v2605 = vld [vmem:[%s2148 + $0x1c40] sm:$0xff]
        %v2606 = vld [vmem:[%s2148 + $0x1c48] sm:$0xff]
        %v2607 = vld [vmem:[%s2148 + $0x1c50] sm:$0xff]
        %v2608 = vld [vmem:[%s2148 + $0x1c58] sm:$0xff]
        %v2609 = vld [vmem:[%s2148 + $0x1c60] sm:$0xff]
        %v2610 = vld [vmem:[%s2148 + $0x1c68] sm:$0xff]
        %v2611 = vld [vmem:[%s2148 + $0x1c70] sm:$0xff]
        %v2612 = vld [vmem:[%s2148 + $0x1c78] sm:$0xff]
        %v2613 = vld [vmem:[%s2148 + $0x1c80] sm:$0xff]
        %v2614 = vld [vmem:[%s2148 + $0x1c88] sm:$0xff]
        %v2615 = vld [vmem:[%s2148 + $0x1c90] sm:$0xff]
        %v2616 = vld [vmem:[%s2148 + $0x1c98] sm:$0xff]
        %v2617 = vld [vmem:[%s2148 + $0x1ca0] sm:$0xff]
        %v2618 = vld [vmem:[%s2148 + $0x1ca8] sm:$0xff]
        %v2619 = vld [vmem:[%s2148 + $0x1cb0] sm:$0xff]
        %v2620 = vld [vmem:[%s2148 + $0x1cb8] sm:$0xff]
        %v2621 = vld [vmem:[%s2148 + $0x1cc0] sm:$0xff]
        %v2622 = vld [vmem:[%s2148 + $0x1cc8] sm:$0xff]
        %v2623 = vld [vmem:[%s2148 + $0x1cd0] sm:$0xff]
        %v2624 = vld [vmem:[%s2148 + $0x1cd8] sm:$0xff]
        %v2625 = vld [vmem:[%s2148 + $0x1ce0] sm:$0xff]
        %v2626 = vld [vmem:[%s2148 + $0x1ce8] sm:$0xff]
        %v2627 = vld [vmem:[%s2148 + $0x1cf0] sm:$0xff]
        %v2628 = vld [vmem:[%s2148 + $0x1cf8] sm:$0xff]
        %v2629 = vld [vmem:[%s2148 + $0x1d00] sm:$0xff]
        %v2630 = vld [vmem:[%s2148 + $0x1d08] sm:$0xff]
        %v2631 = vld [vmem:[%s2148 + $0x1d10] sm:$0xff]
        %v2632 = vld [vmem:[%s2148 + $0x1d18] sm:$0xff]
        %v2633 = vld [vmem:[%s2148 + $0x1d20] sm:$0xff]
        %v2634 = vld [vmem:[%s2148 + $0x1d28] sm:$0xff]
        %v2635 = vld [vmem:[%s2148 + $0x1d30] sm:$0xff]
        %v2636 = vld [vmem:[%s2148 + $0x1d38] sm:$0xff]
        %v2637 = vld [vmem:[%s2148 + $0x1d40] sm:$0xff]
        %v2638 = vld [vmem:[%s2148 + $0x1d48] sm:$0xff]
        %v2639 = vld [vmem:[%s2148 + $0x1d50] sm:$0xff]
        %v2640 = vld [vmem:[%s2148 + $0x1d58] sm:$0xff]
        %v2641 = vld [vmem:[%s2148 + $0x1d60] sm:$0xff]
        %v2642 = vld [vmem:[%s2148 + $0x1d68] sm:$0xff]
        %v2643 = vld [vmem:[%s2148 + $0x1d70] sm:$0xff]
        %v2644 = vld [vmem:[%s2148 + $0x1d78] sm:$0xff]
        %v2645 = vld [vmem:[%s2148 + $0x1d80] sm:$0xff]
        %v2646 = vld [vmem:[%s2148 + $0x1d88] sm:$0xff]
        %v2647 = vld [vmem:[%s2148 + $0x1d90] sm:$0xff]
        %v2648 = vld [vmem:[%s2148 + $0x1d98] sm:$0xff]
        %v2649 = vld [vmem:[%s2148 + $0x1da0] sm:$0xff]
        %v2650 = vld [vmem:[%s2148 + $0x1da8] sm:$0xff]
        %v2651 = vld [vmem:[%s2148 + $0x1db0] sm:$0xff]
        %v2652 = vld [vmem:[%s2148 + $0x1db8] sm:$0xff]
        %v2653 = vld [vmem:[%s2148 + $0x1dc0] sm:$0xff]
        %v2654 = vld [vmem:[%s2148 + $0x1dc8] sm:$0xff]
        %v2655 = vld [vmem:[%s2148 + $0x1dd0] sm:$0xff]
        %v2656 = vld [vmem:[%s2148 + $0x1dd8] sm:$0xff]
        %v2657 = vld [vmem:[%s2148 + $0x1de0] sm:$0xff]
        %v2658 = vld [vmem:[%s2148 + $0x1de8] sm:$0xff]
        %v2659 = vld [vmem:[%s2148 + $0x1df0] sm:$0xff]
        %v2660 = vld [vmem:[%s2148 + $0x1df8] sm:$0xff]
        %v2661 = vadd.f32 %v2149, %v2165
        %v2662 = vadd.f32 %v2661, %v2181
        %v2663 = vadd.f32 %v2662, %v2197
        %v2664 = vrot.slane %v2663, 4
        %v2665 = vadd.f32 %v2663, %v2664
        %v2666 = vrot.slane %v2665, 2
        %v2667 = vadd.f32 %v2665, %v2666
        %v2668 = vrot.slane %v2667, 1
        %v2669 = vadd.f32 %v2667, %v2668
        %v2670 = vadd.f32 %v2150, %v2166
        %v2671 = vadd.f32 %v2670, %v2182
        %v2672 = vadd.f32 %v2671, %v2198
        %v2673 = vrot.slane %v2672, 4
        %v2674 = vadd.f32 %v2672, %v2673
        %v2675 = vrot.slane %v2674, 2
        %v2676 = vadd.f32 %v2674, %v2675
        %v2677 = vrot.slane %v2676, 1
        %v2678 = vadd.f32 %v2676, %v2677
        %v2679 = vadd.f32 %v2151, %v2167
        %v2680 = vadd.f32 %v2679, %v2183
        %v2681 = vadd.f32 %v2680, %v2199
        %v2682 = vrot.slane %v2681, 4
        %v2683 = vadd.f32 %v2681, %v2682
        %v2684 = vrot.slane %v2683, 2
        %v2685 = vadd.f32 %v2683, %v2684
        %v2686 = vrot.slane %v2685, 1
        %v2687 = vadd.f32 %v2685, %v2686
        %v2688 = vadd.f32 %v2152, %v2168
        %v2689 = vadd.f32 %v2688, %v2184
        %v2690 = vadd.f32 %v2689, %v2200
        %v2691 = vrot.slane %v2690, 4
        %v2692 = vadd.f32 %v2690, %v2691
        %v2693 = vrot.slane %v2692, 2
        %v2694 = vadd.f32 %v2692, %v2693
        %v2695 = vrot.slane %v2694, 1
        %v2696 = vadd.f32 %v2694, %v2695
        %v2697 = vadd.f32 %v2153, %v2169
        %v2698 = vadd.f32 %v2697, %v2185
        %v2699 = vadd.f32 %v2698, %v2201
        %v2700 = vrot.slane %v2699, 4
        %v2701 = vadd.f32 %v2699, %v2700
        %v2702 = vrot.slane %v2701, 2
        %v2703 = vadd.f32 %v2701, %v2702
        %v2704 = vrot.slane %v2703, 1
        %v2705 = vadd.f32 %v2703, %v2704
        %v2706 = vadd.f32 %v2154, %v2170
        %v2707 = vadd.f32 %v2706, %v2186
        %v2708 = vadd.f32 %v2707, %v2202
        %v2709 = vrot.slane %v2708, 4
        %v2710 = vadd.f32 %v2708, %v2709
        %v2711 = vrot.slane %v2710, 2
        %v2712 = vadd.f32 %v2710, %v2711
        %v2713 = vrot.slane %v2712, 1
        %v2714 = vadd.f32 %v2712, %v2713
        %v2715 = vadd.f32 %v2155, %v2171
        %v2716 = vadd.f32 %v2715, %v2187
        %v2717 = vadd.f32 %v2716, %v2203
        %v2718 = vrot.slane %v2717, 4
        %v2719 = vadd.f32 %v2717, %v2718
        %v2720 = vrot.slane %v2719, 2
        %v2721 = vadd.f32 %v2719, %v2720
        %v2722 = vrot.slane %v2721, 1
        %v2723 = vadd.f32 %v2721, %v2722
        %v2724 = vadd.f32 %v2156, %v2172
        %v2725 = vadd.f32 %v2724, %v2188
        %v2726 = vadd.f32 %v2725, %v2204
        %v2727 = vrot.slane %v2726, 4
        %v2728 = vadd.f32 %v2726, %v2727
        %v2729 = vrot.slane %v2728, 2
        %v2730 = vadd.f32 %v2728, %v2729
        %v2731 = vrot.slane %v2730, 1
        %v2732 = vadd.f32 %v2730, %v2731
        %v2733 = vadd.f32 %v2157, %v2173
        %v2734 = vadd.f32 %v2733, %v2189
        %v2735 = vadd.f32 %v2734, %v2205
        %v2736 = vrot.slane %v2735, 4
        %v2737 = vadd.f32 %v2735, %v2736
        %v2738 = vrot.slane %v2737, 2
        %v2739 = vadd.f32 %v2737, %v2738
        %v2740 = vrot.slane %v2739, 1
        %v2741 = vadd.f32 %v2739, %v2740
        %v2742 = vadd.f32 %v2158, %v2174
        %v2743 = vadd.f32 %v2742, %v2190
        %v2744 = vadd.f32 %v2743, %v2206
        %v2745 = vrot.slane %v2744, 4
        %v2746 = vadd.f32 %v2744, %v2745
        %v2747 = vrot.slane %v2746, 2
        %v2748 = vadd.f32 %v2746, %v2747
        %v2749 = vrot.slane %v2748, 1
        %v2750 = vadd.f32 %v2748, %v2749
        %v2751 = vadd.f32 %v2159, %v2175
        %v2752 = vadd.f32 %v2751, %v2191
        %v2753 = vadd.f32 %v2752, %v2207
        %v2754 = vrot.slane %v2753, 4
        %v2755 = vadd.f32 %v2753, %v2754
        %v2756 = vrot.slane %v2755, 2
        %v2757 = vadd.f32 %v2755, %v2756
        %v2758 = vrot.slane %v2757, 1
        %v2759 = vadd.f32 %v2757, %v2758
        %v2760 = vadd.f32 %v2160, %v2176
        %v2761 = vadd.f32 %v2760, %v2192
        %v2762 = vadd.f32 %v2761, %v2208
        %v2763 = vrot.slane %v2762, 4
        %v2764 = vadd.f32 %v2762, %v2763
        %v2765 = vrot.slane %v2764, 2
        %v2766 = vadd.f32 %v2764, %v2765
        %v2767 = vrot.slane %v2766, 1
        %v2768 = vadd.f32 %v2766, %v2767
        %v2769 = vadd.f32 %v2161, %v2177
        %v2770 = vadd.f32 %v2769, %v2193
        %v2771 = vadd.f32 %v2770, %v2209
        %v2772 = vrot.slane %v2771, 4
        %v2773 = vadd.f32 %v2771, %v2772
        %v2774 = vrot.slane %v2773, 2
        %v2775 = vadd.f32 %v2773, %v2774
        %v2776 = vrot.slane %v2775, 1
        %v2777 = vadd.f32 %v2775, %v2776
        %v2778 = vadd.f32 %v2162, %v2178
        %v2779 = vadd.f32 %v2778, %v2194
        %v2780 = vadd.f32 %v2779, %v2210
        %v2781 = vrot.slane %v2780, 4
        %v2782 = vadd.f32 %v2780, %v2781
        %v2783 = vrot.slane %v2782, 2
        %v2784 = vadd.f32 %v2782, %v2783
        %v2785 = vrot.slane %v2784, 1
        %v2786 = vadd.f32 %v2784, %v2785
        %v2787 = vadd.f32 %v2163, %v2179
        %v2788 = vadd.f32 %v2787, %v2195
        %v2789 = vadd.f32 %v2788, %v2211
        %v2790 = vrot.slane %v2789, 4
        %v2791 = vadd.f32 %v2789, %v2790
        %v2792 = vrot.slane %v2791, 2
        %v2793 = vadd.f32 %v2791, %v2792
        %v2794 = vrot.slane %v2793, 1
        %v2795 = vadd.f32 %v2793, %v2794
        %v2796 = vadd.f32 %v2164, %v2180
        %v2797 = vadd.f32 %v2796, %v2196
        %v2798 = vadd.f32 %v2797, %v2212
        %v2799 = vrot.slane %v2798, 4
        %v2800 = vadd.f32 %v2798, %v2799
        %v2801 = vrot.slane %v2800, 2
        %v2802 = vadd.f32 %v2800, %v2801
        %v2803 = vrot.slane %v2802, 1
        %v2804 = vadd.f32 %v2802, %v2803
        %v2805 = vadd.f32 %v2213, %v2229
        %v2806 = vadd.f32 %v2805, %v2245
        %v2807 = vadd.f32 %v2806, %v2261
        %v2808 = vrot.slane %v2807, 4
        %v2809 = vadd.f32 %v2807, %v2808
        %v2810 = vrot.slane %v2809, 2
        %v2811 = vadd.f32 %v2809, %v2810
        %v2812 = vrot.slane %v2811, 1
        %v2813 = vadd.f32 %v2811, %v2812
        %v2814 = vadd.f32 %v2214, %v2230
        %v2815 = vadd.f32 %v2814, %v2246
        %v2816 = vadd.f32 %v2815, %v2262
        %v2817 = vrot.slane %v2816, 4
        %v2818 = vadd.f32 %v2816, %v2817
        %v2819 = vrot.slane %v2818, 2
        %v2820 = vadd.f32 %v2818, %v2819
        %v2821 = vrot.slane %v2820, 1
        %v2822 = vadd.f32 %v2820, %v2821
        %v2823 = vadd.f32 %v2215, %v2231
        %v2824 = vadd.f32 %v2823, %v2247
        %v2825 = vadd.f32 %v2824, %v2263
        %v2826 = vrot.slane %v2825, 4
        %v2827 = vadd.f32 %v2825, %v2826
        %v2828 = vrot.slane %v2827, 2
        %v2829 = vadd.f32 %v2827, %v2828
        %v2830 = vrot.slane %v2829, 1
        %v2831 = vadd.f32 %v2829, %v2830
        %v2832 = vadd.f32 %v2216, %v2232
        %v2833 = vadd.f32 %v2832, %v2248
        %v2834 = vadd.f32 %v2833, %v2264
        %v2835 = vrot.slane %v2834, 4
        %v2836 = vadd.f32 %v2834, %v2835
        %v2837 = vrot.slane %v2836, 2
        %v2838 = vadd.f32 %v2836, %v2837
        %v2839 = vrot.slane %v2838, 1
        %v2840 = vadd.f32 %v2838, %v2839
        %v2841 = vadd.f32 %v2217, %v2233
        %v2842 = vadd.f32 %v2841, %v2249
        %v2843 = vadd.f32 %v2842, %v2265
        %v2844 = vrot.slane %v2843, 4
        %v2845 = vadd.f32 %v2843, %v2844
        %v2846 = vrot.slane %v2845, 2
        %v2847 = vadd.f32 %v2845, %v2846
        %v2848 = vrot.slane %v2847, 1
        %v2849 = vadd.f32 %v2847, %v2848
        %v2850 = vadd.f32 %v2218, %v2234
        %v2851 = vadd.f32 %v2850, %v2250
        %v2852 = vadd.f32 %v2851, %v2266
        %v2853 = vrot.slane %v2852, 4
        %v2854 = vadd.f32 %v2852, %v2853
        %v2855 = vrot.slane %v2854, 2
        %v2856 = vadd.f32 %v2854, %v2855
        %v2857 = vrot.slane %v2856, 1
        %v2858 = vadd.f32 %v2856, %v2857
        %v2859 = vadd.f32 %v2219, %v2235
        %v2860 = vadd.f32 %v2859, %v2251
        %v2861 = vadd.f32 %v2860, %v2267
        %v2862 = vrot.slane %v2861, 4
        %v2863 = vadd.f32 %v2861, %v2862
        %v2864 = vrot.slane %v2863, 2
        %v2865 = vadd.f32 %v2863, %v2864
        %v2866 = vrot.slane %v2865, 1
        %v2867 = vadd.f32 %v2865, %v2866
        %v2868 = vadd.f32 %v2220, %v2236
        %v2869 = vadd.f32 %v2868, %v2252
        %v2870 = vadd.f32 %v2869, %v2268
        %v2871 = vrot.slane %v2870, 4
        %v2872 = vadd.f32 %v2870, %v2871
        %v2873 = vrot.slane %v2872, 2
        %v2874 = vadd.f32 %v2872, %v2873
        %v2875 = vrot.slane %v2874, 1
        %v2876 = vadd.f32 %v2874, %v2875
        %v2877 = vadd.f32 %v2221, %v2237
        %v2878 = vadd.f32 %v2877, %v2253
        %v2879 = vadd.f32 %v2878, %v2269
        %v2880 = vrot.slane %v2879, 4
        %v2881 = vadd.f32 %v2879, %v2880
        %v2882 = vrot.slane %v2881, 2
        %v2883 = vadd.f32 %v2881, %v2882
        %v2884 = vrot.slane %v2883, 1
        %v2885 = vadd.f32 %v2883, %v2884
        %v2886 = vadd.f32 %v2222, %v2238
        %v2887 = vadd.f32 %v2886, %v2254
        %v2888 = vadd.f32 %v2887, %v2270
        %v2889 = vrot.slane %v2888, 4
        %v2890 = vadd.f32 %v2888, %v2889
        %v2891 = vrot.slane %v2890, 2
        %v2892 = vadd.f32 %v2890, %v2891
        %v2893 = vrot.slane %v2892, 1
        %v2894 = vadd.f32 %v2892, %v2893
        %v2895 = vadd.f32 %v2223, %v2239
        %v2896 = vadd.f32 %v2895, %v2255
        %v2897 = vadd.f32 %v2896, %v2271
        %v2898 = vrot.slane %v2897, 4
        %v2899 = vadd.f32 %v2897, %v2898
        %v2900 = vrot.slane %v2899, 2
        %v2901 = vadd.f32 %v2899, %v2900
        %v2902 = vrot.slane %v2901, 1
        %v2903 = vadd.f32 %v2901, %v2902
        %v2904 = vadd.f32 %v2224, %v2240
        %v2905 = vadd.f32 %v2904, %v2256
        %v2906 = vadd.f32 %v2905, %v2272
        %v2907 = vrot.slane %v2906, 4
        %v2908 = vadd.f32 %v2906, %v2907
        %v2909 = vrot.slane %v2908, 2
        %v2910 = vadd.f32 %v2908, %v2909
        %v2911 = vrot.slane %v2910, 1
        %v2912 = vadd.f32 %v2910, %v2911
        %v2913 = vadd.f32 %v2225, %v2241
        %v2914 = vadd.f32 %v2913, %v2257
        %v2915 = vadd.f32 %v2914, %v2273
        %v2916 = vrot.slane %v2915, 4
        %v2917 = vadd.f32 %v2915, %v2916
        %v2918 = vrot.slane %v2917, 2
        %v2919 = vadd.f32 %v2917, %v2918
        %v2920 = vrot.slane %v2919, 1
        %v2921 = vadd.f32 %v2919, %v2920
        %v2922 = vadd.f32 %v2226, %v2242
        %v2923 = vadd.f32 %v2922, %v2258
        %v2924 = vadd.f32 %v2923, %v2274
        %v2925 = vrot.slane %v2924, 4
        %v2926 = vadd.f32 %v2924, %v2925
        %v2927 = vrot.slane %v2926, 2
        %v2928 = vadd.f32 %v2926, %v2927
        %v2929 = vrot.slane %v2928, 1
        %v2930 = vadd.f32 %v2928, %v2929
        %v2931 = vadd.f32 %v2227, %v2243
        %v2932 = vadd.f32 %v2931, %v2259
        %v2933 = vadd.f32 %v2932, %v2275
        %v2934 = vrot.slane %v2933, 4
        %v2935 = vadd.f32 %v2933, %v2934
        %v2936 = vrot.slane %v2935, 2
        %v2937 = vadd.f32 %v2935, %v2936
        %v2938 = vrot.slane %v2937, 1
        %v2939 = vadd.f32 %v2937, %v2938
        %v2940 = vadd.f32 %v2228, %v2244
        %v2941 = vadd.f32 %v2940, %v2260
        %v2942 = vadd.f32 %v2941, %v2276
        %v2943 = vrot.slane %v2942, 4
        %v2944 = vadd.f32 %v2942, %v2943
        %v2945 = vrot.slane %v2944, 2
        %v2946 = vadd.f32 %v2944, %v2945
        %v2947 = vrot.slane %v2946, 1
        %v2948 = vadd.f32 %v2946, %v2947
        %v2949 = vadd.f32 %v2277, %v2293
        %v2950 = vadd.f32 %v2949, %v2309
        %v2951 = vadd.f32 %v2950, %v2325
        %v2952 = vrot.slane %v2951, 4
        %v2953 = vadd.f32 %v2951, %v2952
        %v2954 = vrot.slane %v2953, 2
        %v2955 = vadd.f32 %v2953, %v2954
        %v2956 = vrot.slane %v2955, 1
        %v2957 = vadd.f32 %v2955, %v2956
        %v2958 = vadd.f32 %v2278, %v2294
        %v2959 = vadd.f32 %v2958, %v2310
        %v2960 = vadd.f32 %v2959, %v2326
        %v2961 = vrot.slane %v2960, 4
        %v2962 = vadd.f32 %v2960, %v2961
        %v2963 = vrot.slane %v2962, 2
        %v2964 = vadd.f32 %v2962, %v2963
        %v2965 = vrot.slane %v2964, 1
        %v2966 = vadd.f32 %v2964, %v2965
        %v2967 = vadd.f32 %v2279, %v2295
        %v2968 = vadd.f32 %v2967, %v2311
        %v2969 = vadd.f32 %v2968, %v2327
        %v2970 = vrot.slane %v2969, 4
        %v2971 = vadd.f32 %v2969, %v2970
        %v2972 = vrot.slane %v2971, 2
        %v2973 = vadd.f32 %v2971, %v2972
        %v2974 = vrot.slane %v2973, 1
        %v2975 = vadd.f32 %v2973, %v2974
        %v2976 = vadd.f32 %v2280, %v2296
        %v2977 = vadd.f32 %v2976, %v2312
        %v2978 = vadd.f32 %v2977, %v2328
        %v2979 = vrot.slane %v2978, 4
        %v2980 = vadd.f32 %v2978, %v2979
        %v2981 = vrot.slane %v2980, 2
        %v2982 = vadd.f32 %v2980, %v2981
        %v2983 = vrot.slane %v2982, 1
        %v2984 = vadd.f32 %v2982, %v2983
        %v2985 = vadd.f32 %v2281, %v2297
        %v2986 = vadd.f32 %v2985, %v2313
        %v2987 = vadd.f32 %v2986, %v2329
        %v2988 = vrot.slane %v2987, 4
        %v2989 = vadd.f32 %v2987, %v2988
        %v2990 = vrot.slane %v2989, 2
        %v2991 = vadd.f32 %v2989, %v2990
        %v2992 = vrot.slane %v2991, 1
        %v2993 = vadd.f32 %v2991, %v2992
        %v2994 = vadd.f32 %v2282, %v2298
        %v2995 = vadd.f32 %v2994, %v2314
        %v2996 = vadd.f32 %v2995, %v2330
        %v2997 = vrot.slane %v2996, 4
        %v2998 = vadd.f32 %v2996, %v2997
        %v2999 = vrot.slane %v2998, 2
        %v3000 = vadd.f32 %v2998, %v2999
        %v3001 = vrot.slane %v3000, 1
        %v3002 = vadd.f32 %v3000, %v3001
        %v3003 = vadd.f32 %v2283, %v2299
        %v3004 = vadd.f32 %v3003, %v2315
        %v3005 = vadd.f32 %v3004, %v2331
        %v3006 = vrot.slane %v3005, 4
        %v3007 = vadd.f32 %v3005, %v3006
        %v3008 = vrot.slane %v3007, 2
        %v3009 = vadd.f32 %v3007, %v3008
        %v3010 = vrot.slane %v3009, 1
        %v3011 = vadd.f32 %v3009, %v3010
        %v3012 = vadd.f32 %v2284, %v2300
        %v3013 = vadd.f32 %v3012, %v2316
        %v3014 = vadd.f32 %v3013, %v2332
        %v3015 = vrot.slane %v3014, 4
        %v3016 = vadd.f32 %v3014, %v3015
        %v3017 = vrot.slane %v3016, 2
        %v3018 = vadd.f32 %v3016, %v3017
        %v3019 = vrot.slane %v3018, 1
        %v3020 = vadd.f32 %v3018, %v3019
        %v3021 = vadd.f32 %v2285, %v2301
        %v3022 = vadd.f32 %v3021, %v2317
        %v3023 = vadd.f32 %v3022, %v2333
        %v3024 = vrot.slane %v3023, 4
        %v3025 = vadd.f32 %v3023, %v3024
        %v3026 = vrot.slane %v3025, 2
        %v3027 = vadd.f32 %v3025, %v3026
        %v3028 = vrot.slane %v3027, 1
        %v3029 = vadd.f32 %v3027, %v3028
        %v3030 = vadd.f32 %v2286, %v2302
        %v3031 = vadd.f32 %v3030, %v2318
        %v3032 = vadd.f32 %v3031, %v2334
        %v3033 = vrot.slane %v3032, 4
        %v3034 = vadd.f32 %v3032, %v3033
        %v3035 = vrot.slane %v3034, 2
        %v3036 = vadd.f32 %v3034, %v3035
        %v3037 = vrot.slane %v3036, 1
        %v3038 = vadd.f32 %v3036, %v3037
        %v3039 = vadd.f32 %v2287, %v2303
        %v3040 = vadd.f32 %v3039, %v2319
        %v3041 = vadd.f32 %v3040, %v2335
        %v3042 = vrot.slane %v3041, 4
        %v3043 = vadd.f32 %v3041, %v3042
        %v3044 = vrot.slane %v3043, 2
        %v3045 = vadd.f32 %v3043, %v3044
        %v3046 = vrot.slane %v3045, 1
        %v3047 = vadd.f32 %v3045, %v3046
        %v3048 = vadd.f32 %v2288, %v2304
        %v3049 = vadd.f32 %v3048, %v2320
        %v3050 = vadd.f32 %v3049, %v2336
        %v3051 = vrot.slane %v3050, 4
        %v3052 = vadd.f32 %v3050, %v3051
        %v3053 = vrot.slane %v3052, 2
        %v3054 = vadd.f32 %v3052, %v3053
        %v3055 = vrot.slane %v3054, 1
        %v3056 = vadd.f32 %v3054, %v3055
        %v3057 = vadd.f32 %v2289, %v2305
        %v3058 = vadd.f32 %v3057, %v2321
        %v3059 = vadd.f32 %v3058, %v2337
        %v3060 = vrot.slane %v3059, 4
        %v3061 = vadd.f32 %v3059, %v3060
        %v3062 = vrot.slane %v3061, 2
        %v3063 = vadd.f32 %v3061, %v3062
        %v3064 = vrot.slane %v3063, 1
        %v3065 = vadd.f32 %v3063, %v3064
        %v3066 = vadd.f32 %v2290, %v2306
        %v3067 = vadd.f32 %v3066, %v2322
        %v3068 = vadd.f32 %v3067, %v2338
        %v3069 = vrot.slane %v3068, 4
        %v3070 = vadd.f32 %v3068, %v3069
        %v3071 = vrot.slane %v3070, 2
        %v3072 = vadd.f32 %v3070, %v3071
        %v3073 = vrot.slane %v3072, 1
        %v3074 = vadd.f32 %v3072, %v3073
        %v3075 = vadd.f32 %v2291, %v2307
        %v3076 = vadd.f32 %v3075, %v2323
        %v3077 = vadd.f32 %v3076, %v2339
        %v3078 = vrot.slane %v3077, 4
        %v3079 = vadd.f32 %v3077, %v3078
        %v3080 = vrot.slane %v3079, 2
        %v3081 = vadd.f32 %v3079, %v3080
        %v3082 = vrot.slane %v3081, 1
        %v3083 = vadd.f32 %v3081, %v3082
        %v3084 = vadd.f32 %v2292, %v2308
        %v3085 = vadd.f32 %v3084, %v2324
        %v3086 = vadd.f32 %v3085, %v2340
        %v3087 = vrot.slane %v3086, 4
        %v3088 = vadd.f32 %v3086, %v3087
        %v3089 = vrot.slane %v3088, 2
        %v3090 = vadd.f32 %v3088, %v3089
        %v3091 = vrot.slane %v3090, 1
        %v3092 = vadd.f32 %v3090, %v3091
        %v3093 = vadd.f32 %v2341, %v2357
        %v3094 = vadd.f32 %v3093, %v2373
        %v3095 = vadd.f32 %v3094, %v2389
        %v3096 = vrot.slane %v3095, 4
        %v3097 = vadd.f32 %v3095, %v3096
        %v3098 = vrot.slane %v3097, 2
        %v3099 = vadd.f32 %v3097, %v3098
        %v3100 = vrot.slane %v3099, 1
        %v3101 = vadd.f32 %v3099, %v3100
        %v3102 = vadd.f32 %v2342, %v2358
        %v3103 = vadd.f32 %v3102, %v2374
        %v3104 = vadd.f32 %v3103, %v2390
        %v3105 = vrot.slane %v3104, 4
        %v3106 = vadd.f32 %v3104, %v3105
        %v3107 = vrot.slane %v3106, 2
        %v3108 = vadd.f32 %v3106, %v3107
        %v3109 = vrot.slane %v3108, 1
        %v3110 = vadd.f32 %v3108, %v3109
        %v3111 = vadd.f32 %v2343, %v2359
        %v3112 = vadd.f32 %v3111, %v2375
        %v3113 = vadd.f32 %v3112, %v2391
        %v3114 = vrot.slane %v3113, 4
        %v3115 = vadd.f32 %v3113, %v3114
        %v3116 = vrot.slane %v3115, 2
        %v3117 = vadd.f32 %v3115, %v3116
        %v3118 = vrot.slane %v3117, 1
        %v3119 = vadd.f32 %v3117, %v3118
        %v3120 = vadd.f32 %v2344, %v2360
        %v3121 = vadd.f32 %v3120, %v2376
        %v3122 = vadd.f32 %v3121, %v2392
        %v3123 = vrot.slane %v3122, 4
        %v3124 = vadd.f32 %v3122, %v3123
        %v3125 = vrot.slane %v3124, 2
        %v3126 = vadd.f32 %v3124, %v3125
        %v3127 = vrot.slane %v3126, 1
        %v3128 = vadd.f32 %v3126, %v3127
        %v3129 = vadd.f32 %v2345, %v2361
        %v3130 = vadd.f32 %v3129, %v2377
        %v3131 = vadd.f32 %v3130, %v2393
        %v3132 = vrot.slane %v3131, 4
        %v3133 = vadd.f32 %v3131, %v3132
        %v3134 = vrot.slane %v3133, 2
        %v3135 = vadd.f32 %v3133, %v3134
        %v3136 = vrot.slane %v3135, 1
        %v3137 = vadd.f32 %v3135, %v3136
        %v3138 = vadd.f32 %v2346, %v2362
        %v3139 = vadd.f32 %v3138, %v2378
        %v3140 = vadd.f32 %v3139, %v2394
        %v3141 = vrot.slane %v3140, 4
        %v3142 = vadd.f32 %v3140, %v3141
        %v3143 = vrot.slane %v3142, 2
        %v3144 = vadd.f32 %v3142, %v3143
        %v3145 = vrot.slane %v3144, 1
        %v3146 = vadd.f32 %v3144, %v3145
        %v3147 = vadd.f32 %v2347, %v2363
        %v3148 = vadd.f32 %v3147, %v2379
        %v3149 = vadd.f32 %v3148, %v2395
        %v3150 = vrot.slane %v3149, 4
        %v3151 = vadd.f32 %v3149, %v3150
        %v3152 = vrot.slane %v3151, 2
        %v3153 = vadd.f32 %v3151, %v3152
        %v3154 = vrot.slane %v3153, 1
        %v3155 = vadd.f32 %v3153, %v3154
        %v3156 = vadd.f32 %v2348, %v2364
        %v3157 = vadd.f32 %v3156, %v2380
        %v3158 = vadd.f32 %v3157, %v2396
        %v3159 = vrot.slane %v3158, 4
        %v3160 = vadd.f32 %v3158, %v3159
        %v3161 = vrot.slane %v3160, 2
        %v3162 = vadd.f32 %v3160, %v3161
        %v3163 = vrot.slane %v3162, 1
        %v3164 = vadd.f32 %v3162, %v3163
        %v3165 = vadd.f32 %v2349, %v2365
        %v3166 = vadd.f32 %v3165, %v2381
        %v3167 = vadd.f32 %v3166, %v2397
        %v3168 = vrot.slane %v3167, 4
        %v3169 = vadd.f32 %v3167, %v3168
        %v3170 = vrot.slane %v3169, 2
        %v3171 = vadd.f32 %v3169, %v3170
        %v3172 = vrot.slane %v3171, 1
        %v3173 = vadd.f32 %v3171, %v3172
        %v3174 = vadd.f32 %v2350, %v2366
        %v3175 = vadd.f32 %v3174, %v2382
        %v3176 = vadd.f32 %v3175, %v2398
        %v3177 = vrot.slane %v3176, 4
        %v3178 = vadd.f32 %v3176, %v3177
        %v3179 = vrot.slane %v3178, 2
        %v3180 = vadd.f32 %v3178, %v3179
        %v3181 = vrot.slane %v3180, 1
        %v3182 = vadd.f32 %v3180, %v3181
        %v3183 = vadd.f32 %v2351, %v2367
        %v3184 = vadd.f32 %v3183, %v2383
        %v3185 = vadd.f32 %v3184, %v2399
        %v3186 = vrot.slane %v3185, 4
        %v3187 = vadd.f32 %v3185, %v3186
        %v3188 = vrot.slane %v3187, 2
        %v3189 = vadd.f32 %v3187, %v3188
        %v3190 = vrot.slane %v3189, 1
        %v3191 = vadd.f32 %v3189, %v3190
        %v3192 = vadd.f32 %v2352, %v2368
        %v3193 = vadd.f32 %v3192, %v2384
        %v3194 = vadd.f32 %v3193, %v2400
        %v3195 = vrot.slane %v3194, 4
        %v3196 = vadd.f32 %v3194, %v3195
        %v3197 = vrot.slane %v3196, 2
        %v3198 = vadd.f32 %v3196, %v3197
        %v3199 = vrot.slane %v3198, 1
        %v3200 = vadd.f32 %v3198, %v3199
        %v3201 = vadd.f32 %v2353, %v2369
        %v3202 = vadd.f32 %v3201, %v2385
        %v3203 = vadd.f32 %v3202, %v2401
        %v3204 = vrot.slane %v3203, 4
        %v3205 = vadd.f32 %v3203, %v3204
        %v3206 = vrot.slane %v3205, 2
        %v3207 = vadd.f32 %v3205, %v3206
        %v3208 = vrot.slane %v3207, 1
        %v3209 = vadd.f32 %v3207, %v3208
        %v3210 = vadd.f32 %v2354, %v2370
        %v3211 = vadd.f32 %v3210, %v2386
        %v3212 = vadd.f32 %v3211, %v2402
        %v3213 = vrot.slane %v3212, 4
        %v3214 = vadd.f32 %v3212, %v3213
        %v3215 = vrot.slane %v3214, 2
        %v3216 = vadd.f32 %v3214, %v3215
        %v3217 = vrot.slane %v3216, 1
        %v3218 = vadd.f32 %v3216, %v3217
        %v3219 = vadd.f32 %v2355, %v2371
        %v3220 = vadd.f32 %v3219, %v2387
        %v3221 = vadd.f32 %v3220, %v2403
        %v3222 = vrot.slane %v3221, 4
        %v3223 = vadd.f32 %v3221, %v3222
        %v3224 = vrot.slane %v3223, 2
        %v3225 = vadd.f32 %v3223, %v3224
        %v3226 = vrot.slane %v3225, 1
        %v3227 = vadd.f32 %v3225, %v3226
        %v3228 = vadd.f32 %v2356, %v2372
        %v3229 = vadd.f32 %v3228, %v2388
        %v3230 = vadd.f32 %v3229, %v2404
        %v3231 = vrot.slane %v3230, 4
        %v3232 = vadd.f32 %v3230, %v3231
        %v3233 = vrot.slane %v3232, 2
        %v3234 = vadd.f32 %v3232, %v3233
        %v3235 = vrot.slane %v3234, 1
        %v3236 = vadd.f32 %v3234, %v3235
        %v3237 = vadd.f32 %v2405, %v2421
        %v3238 = vadd.f32 %v3237, %v2437
        %v3239 = vadd.f32 %v3238, %v2453
        %v3240 = vrot.slane %v3239, 4
        %v3241 = vadd.f32 %v3239, %v3240
        %v3242 = vrot.slane %v3241, 2
        %v3243 = vadd.f32 %v3241, %v3242
        %v3244 = vrot.slane %v3243, 1
        %v3245 = vadd.f32 %v3243, %v3244
        %v3246 = vadd.f32 %v2406, %v2422
        %v3247 = vadd.f32 %v3246, %v2438
        %v3248 = vadd.f32 %v3247, %v2454
        %v3249 = vrot.slane %v3248, 4
        %v3250 = vadd.f32 %v3248, %v3249
        %v3251 = vrot.slane %v3250, 2
        %v3252 = vadd.f32 %v3250, %v3251
        %v3253 = vrot.slane %v3252, 1
        %v3254 = vadd.f32 %v3252, %v3253
        %v3255 = vadd.f32 %v2407, %v2423
        %v3256 = vadd.f32 %v3255, %v2439
        %v3257 = vadd.f32 %v3256, %v2455
        %v3258 = vrot.slane %v3257, 4
        %v3259 = vadd.f32 %v3257, %v3258
        %v3260 = vrot.slane %v3259, 2
        %v3261 = vadd.f32 %v3259, %v3260
        %v3262 = vrot.slane %v3261, 1
        %v3263 = vadd.f32 %v3261, %v3262
        %v3264 = vadd.f32 %v2408, %v2424
        %v3265 = vadd.f32 %v3264, %v2440
        %v3266 = vadd.f32 %v3265, %v2456
        %v3267 = vrot.slane %v3266, 4
        %v3268 = vadd.f32 %v3266, %v3267
        %v3269 = vrot.slane %v3268, 2
        %v3270 = vadd.f32 %v3268, %v3269
        %v3271 = vrot.slane %v3270, 1
        %v3272 = vadd.f32 %v3270, %v3271
        %v3273 = vadd.f32 %v2409, %v2425
        %v3274 = vadd.f32 %v3273, %v2441
        %v3275 = vadd.f32 %v3274, %v2457
        %v3276 = vrot.slane %v3275, 4
        %v3277 = vadd.f32 %v3275, %v3276
        %v3278 = vrot.slane %v3277, 2
        %v3279 = vadd.f32 %v3277, %v3278
        %v3280 = vrot.slane %v3279, 1
        %v3281 = vadd.f32 %v3279, %v3280
        %v3282 = vadd.f32 %v2410, %v2426
        %v3283 = vadd.f32 %v3282, %v2442
        %v3284 = vadd.f32 %v3283, %v2458
        %v3285 = vrot.slane %v3284, 4
        %v3286 = vadd.f32 %v3284, %v3285
        %v3287 = vrot.slane %v3286, 2
        %v3288 = vadd.f32 %v3286, %v3287
        %v3289 = vrot.slane %v3288, 1
        %v3290 = vadd.f32 %v3288, %v3289
        %v3291 = vadd.f32 %v2411, %v2427
        %v3292 = vadd.f32 %v3291, %v2443
        %v3293 = vadd.f32 %v3292, %v2459
        %v3294 = vrot.slane %v3293, 4
        %v3295 = vadd.f32 %v3293, %v3294
        %v3296 = vrot.slane %v3295, 2
        %v3297 = vadd.f32 %v3295, %v3296
        %v3298 = vrot.slane %v3297, 1
        %v3299 = vadd.f32 %v3297, %v3298
        %v3300 = vadd.f32 %v2412, %v2428
        %v3301 = vadd.f32 %v3300, %v2444
        %v3302 = vadd.f32 %v3301, %v2460
        %v3303 = vrot.slane %v3302, 4
        %v3304 = vadd.f32 %v3302, %v3303
        %v3305 = vrot.slane %v3304, 2
        %v3306 = vadd.f32 %v3304, %v3305
        %v3307 = vrot.slane %v3306, 1
        %v3308 = vadd.f32 %v3306, %v3307
        %v3309 = vadd.f32 %v2413, %v2429
        %v3310 = vadd.f32 %v3309, %v2445
        %v3311 = vadd.f32 %v3310, %v2461
        %v3312 = vrot.slane %v3311, 4
        %v3313 = vadd.f32 %v3311, %v3312
        %v3314 = vrot.slane %v3313, 2
        %v3315 = vadd.f32 %v3313, %v3314
        %v3316 = vrot.slane %v3315, 1
        %v3317 = vadd.f32 %v3315, %v3316
        %v3318 = vadd.f32 %v2414, %v2430
        %v3319 = vadd.f32 %v3318, %v2446
        %v3320 = vadd.f32 %v3319, %v2462
        %v3321 = vrot.slane %v3320, 4
        %v3322 = vadd.f32 %v3320, %v3321
        %v3323 = vrot.slane %v3322, 2
        %v3324 = vadd.f32 %v3322, %v3323
        %v3325 = vrot.slane %v3324, 1
        %v3326 = vadd.f32 %v3324, %v3325
        %v3327 = vadd.f32 %v2415, %v2431
        %v3328 = vadd.f32 %v3327, %v2447
        %v3329 = vadd.f32 %v3328, %v2463
        %v3330 = vrot.slane %v3329, 4
        %v3331 = vadd.f32 %v3329, %v3330
        %v3332 = vrot.slane %v3331, 2
        %v3333 = vadd.f32 %v3331, %v3332
        %v3334 = vrot.slane %v3333, 1
        %v3335 = vadd.f32 %v3333, %v3334
        %v3336 = vadd.f32 %v2416, %v2432
        %v3337 = vadd.f32 %v3336, %v2448
        %v3338 = vadd.f32 %v3337, %v2464
        %v3339 = vrot.slane %v3338, 4
        %v3340 = vadd.f32 %v3338, %v3339
        %v3341 = vrot.slane %v3340, 2
        %v3342 = vadd.f32 %v3340, %v3341
        %v3343 = vrot.slane %v3342, 1
        %v3344 = vadd.f32 %v3342, %v3343
        %v3345 = vadd.f32 %v2417, %v2433
        %v3346 = vadd.f32 %v3345, %v2449
        %v3347 = vadd.f32 %v3346, %v2465
        %v3348 = vrot.slane %v3347, 4
        %v3349 = vadd.f32 %v3347, %v3348
        %v3350 = vrot.slane %v3349, 2
        %v3351 = vadd.f32 %v3349, %v3350
        %v3352 = vrot.slane %v3351, 1
        %v3353 = vadd.f32 %v3351, %v3352
        %v3354 = vadd.f32 %v2418, %v2434
        %v3355 = vadd.f32 %v3354, %v2450
        %v3356 = vadd.f32 %v3355, %v2466
        %v3357 = vrot.slane %v3356, 4
        %v3358 = vadd.f32 %v3356, %v3357
        %v3359 = vrot.slane %v3358, 2
        %v3360 = vadd.f32 %v3358, %v3359
        %v3361 = vrot.slane %v3360, 1
        %v3362 = vadd.f32 %v3360, %v3361
        %v3363 = vadd.f32 %v2419, %v2435
        %v3364 = vadd.f32 %v3363, %v2451
        %v3365 = vadd.f32 %v3364, %v2467
        %v3366 = vrot.slane %v3365, 4
        %v3367 = vadd.f32 %v3365, %v3366
        %v3368 = vrot.slane %v3367, 2
        %v3369 = vadd.f32 %v3367, %v3368
        %v3370 = vrot.slane %v3369, 1
        %v3371 = vadd.f32 %v3369, %v3370
        %v3372 = vadd.f32 %v2420, %v2436
        %v3373 = vadd.f32 %v3372, %v2452
        %v3374 = vadd.f32 %v3373, %v2468
        %v3375 = vrot.slane %v3374, 4
        %v3376 = vadd.f32 %v3374, %v3375
        %v3377 = vrot.slane %v3376, 2
        %v3378 = vadd.f32 %v3376, %v3377
        %v3379 = vrot.slane %v3378, 1
        %v3380 = vadd.f32 %v3378, %v3379
        %v3381 = vadd.f32 %v2469, %v2485
        %v3382 = vadd.f32 %v3381, %v2501
        %v3383 = vadd.f32 %v3382, %v2517
        %v3384 = vrot.slane %v3383, 4
        %v3385 = vadd.f32 %v3383, %v3384
        %v3386 = vrot.slane %v3385, 2
        %v3387 = vadd.f32 %v3385, %v3386
        %v3388 = vrot.slane %v3387, 1
        %v3389 = vadd.f32 %v3387, %v3388
        %v3390 = vadd.f32 %v2470, %v2486
        %v3391 = vadd.f32 %v3390, %v2502
        %v3392 = vadd.f32 %v3391, %v2518
        %v3393 = vrot.slane %v3392, 4
        %v3394 = vadd.f32 %v3392, %v3393
        %v3395 = vrot.slane %v3394, 2
        %v3396 = vadd.f32 %v3394, %v3395
        %v3397 = vrot.slane %v3396, 1
        %v3398 = vadd.f32 %v3396, %v3397
        %v3399 = vadd.f32 %v2471, %v2487
        %v3400 = vadd.f32 %v3399, %v2503
        %v3401 = vadd.f32 %v3400, %v2519
        %v3402 = vrot.slane %v3401, 4
        %v3403 = vadd.f32 %v3401, %v3402
        %v3404 = vrot.slane %v3403, 2
        %v3405 = vadd.f32 %v3403, %v3404
        %v3406 = vrot.slane %v3405, 1
        %v3407 = vadd.f32 %v3405, %v3406
        %v3408 = vadd.f32 %v2472, %v2488
        %v3409 = vadd.f32 %v3408, %v2504
        %v3410 = vadd.f32 %v3409, %v2520
        %v3411 = vrot.slane %v3410, 4
        %v3412 = vadd.f32 %v3410, %v3411
        %v3413 = vrot.slane %v3412, 2
        %v3414 = vadd.f32 %v3412, %v3413
        %v3415 = vrot.slane %v3414, 1
        %v3416 = vadd.f32 %v3414, %v3415
        %v3417 = vadd.f32 %v2473, %v2489
        %v3418 = vadd.f32 %v3417, %v2505
        %v3419 = vadd.f32 %v3418, %v2521
        %v3420 = vrot.slane %v3419, 4
        %v3421 = vadd.f32 %v3419, %v3420
        %v3422 = vrot.slane %v3421, 2
        %v3423 = vadd.f32 %v3421, %v3422
        %v3424 = vrot.slane %v3423, 1
        %v3425 = vadd.f32 %v3423, %v3424
        %v3426 = vadd.f32 %v2474, %v2490
        %v3427 = vadd.f32 %v3426, %v2506
        %v3428 = vadd.f32 %v3427, %v2522
        %v3429 = vrot.slane %v3428, 4
        %v3430 = vadd.f32 %v3428, %v3429
        %v3431 = vrot.slane %v3430, 2
        %v3432 = vadd.f32 %v3430, %v3431
        %v3433 = vrot.slane %v3432, 1
        %v3434 = vadd.f32 %v3432, %v3433
        %v3435 = vadd.f32 %v2475, %v2491
        %v3436 = vadd.f32 %v3435, %v2507
        %v3437 = vadd.f32 %v3436, %v2523
        %v3438 = vrot.slane %v3437, 4
        %v3439 = vadd.f32 %v3437, %v3438
        %v3440 = vrot.slane %v3439, 2
        %v3441 = vadd.f32 %v3439, %v3440
        %v3442 = vrot.slane %v3441, 1
        %v3443 = vadd.f32 %v3441, %v3442
        %v3444 = vadd.f32 %v2476, %v2492
        %v3445 = vadd.f32 %v3444, %v2508
        %v3446 = vadd.f32 %v3445, %v2524
        %v3447 = vrot.slane %v3446, 4
        %v3448 = vadd.f32 %v3446, %v3447
        %v3449 = vrot.slane %v3448, 2
        %v3450 = vadd.f32 %v3448, %v3449
        %v3451 = vrot.slane %v3450, 1
        %v3452 = vadd.f32 %v3450, %v3451
        %v3453 = vadd.f32 %v2477, %v2493
        %v3454 = vadd.f32 %v3453, %v2509
        %v3455 = vadd.f32 %v3454, %v2525
        %v3456 = vrot.slane %v3455, 4
        %v3457 = vadd.f32 %v3455, %v3456
        %v3458 = vrot.slane %v3457, 2
        %v3459 = vadd.f32 %v3457, %v3458
        %v3460 = vrot.slane %v3459, 1
        %v3461 = vadd.f32 %v3459, %v3460
        %v3462 = vadd.f32 %v2478, %v2494
        %v3463 = vadd.f32 %v3462, %v2510
        %v3464 = vadd.f32 %v3463, %v2526
        %v3465 = vrot.slane %v3464, 4
        %v3466 = vadd.f32 %v3464, %v3465
        %v3467 = vrot.slane %v3466, 2
        %v3468 = vadd.f32 %v3466, %v3467
        %v3469 = vrot.slane %v3468, 1
        %v3470 = vadd.f32 %v3468, %v3469
        %v3471 = vadd.f32 %v2479, %v2495
        %v3472 = vadd.f32 %v3471, %v2511
        %v3473 = vadd.f32 %v3472, %v2527
        %v3474 = vrot.slane %v3473, 4
        %v3475 = vadd.f32 %v3473, %v3474
        %v3476 = vrot.slane %v3475, 2
        %v3477 = vadd.f32 %v3475, %v3476
        %v3478 = vrot.slane %v3477, 1
        %v3479 = vadd.f32 %v3477, %v3478
        %v3480 = vadd.f32 %v2480, %v2496
        %v3481 = vadd.f32 %v3480, %v2512
        %v3482 = vadd.f32 %v3481, %v2528
        %v3483 = vrot.slane %v3482, 4
        %v3484 = vadd.f32 %v3482, %v3483
        %v3485 = vrot.slane %v3484, 2
        %v3486 = vadd.f32 %v3484, %v3485
        %v3487 = vrot.slane %v3486, 1
        %v3488 = vadd.f32 %v3486, %v3487
        %v3489 = vadd.f32 %v2481, %v2497
        %v3490 = vadd.f32 %v3489, %v2513
        %v3491 = vadd.f32 %v3490, %v2529
        %v3492 = vrot.slane %v3491, 4
        %v3493 = vadd.f32 %v3491, %v3492
        %v3494 = vrot.slane %v3493, 2
        %v3495 = vadd.f32 %v3493, %v3494
        %v3496 = vrot.slane %v3495, 1
        %v3497 = vadd.f32 %v3495, %v3496
        %v3498 = vadd.f32 %v2482, %v2498
        %v3499 = vadd.f32 %v3498, %v2514
        %v3500 = vadd.f32 %v3499, %v2530
        %v3501 = vrot.slane %v3500, 4
        %v3502 = vadd.f32 %v3500, %v3501
        %v3503 = vrot.slane %v3502, 2
        %v3504 = vadd.f32 %v3502, %v3503
        %v3505 = vrot.slane %v3504, 1
        %v3506 = vadd.f32 %v3504, %v3505
        %v3507 = vadd.f32 %v2483, %v2499
        %v3508 = vadd.f32 %v3507, %v2515
        %v3509 = vadd.f32 %v3508, %v2531
        %v3510 = vrot.slane %v3509, 4
        %v3511 = vadd.f32 %v3509, %v3510
        %v3512 = vrot.slane %v3511, 2
        %v3513 = vadd.f32 %v3511, %v3512
        %v3514 = vrot.slane %v3513, 1
        %v3515 = vadd.f32 %v3513, %v3514
        %v3516 = vadd.f32 %v2484, %v2500
        %v3517 = vadd.f32 %v3516, %v2516
        %v3518 = vadd.f32 %v3517, %v2532
        %v3519 = vrot.slane %v3518, 4
        %v3520 = vadd.f32 %v3518, %v3519
        %v3521 = vrot.slane %v3520, 2
        %v3522 = vadd.f32 %v3520, %v3521
        %v3523 = vrot.slane %v3522, 1
        %v3524 = vadd.f32 %v3522, %v3523
        %v3525 = vadd.f32 %v2533, %v2549
        %v3526 = vadd.f32 %v3525, %v2565
        %v3527 = vadd.f32 %v3526, %v2581
        %v3528 = vrot.slane %v3527, 4
        %v3529 = vadd.f32 %v3527, %v3528
        %v3530 = vrot.slane %v3529, 2
        %v3531 = vadd.f32 %v3529, %v3530
        %v3532 = vrot.slane %v3531, 1
        %v3533 = vadd.f32 %v3531, %v3532
        %v3534 = vadd.f32 %v2534, %v2550
        %v3535 = vadd.f32 %v3534, %v2566
        %v3536 = vadd.f32 %v3535, %v2582
        %v3537 = vrot.slane %v3536, 4
        %v3538 = vadd.f32 %v3536, %v3537
        %v3539 = vrot.slane %v3538, 2
        %v3540 = vadd.f32 %v3538, %v3539
        %v3541 = vrot.slane %v3540, 1
        %v3542 = vadd.f32 %v3540, %v3541
        %v3543 = vadd.f32 %v2535, %v2551
        %v3544 = vadd.f32 %v3543, %v2567
        %v3545 = vadd.f32 %v3544, %v2583
        %v3546 = vrot.slane %v3545, 4
        %v3547 = vadd.f32 %v3545, %v3546
        %v3548 = vrot.slane %v3547, 2
        %v3549 = vadd.f32 %v3547, %v3548
        %v3550 = vrot.slane %v3549, 1
        %v3551 = vadd.f32 %v3549, %v3550
        %v3552 = vadd.f32 %v2536, %v2552
        %v3553 = vadd.f32 %v3552, %v2568
        %v3554 = vadd.f32 %v3553, %v2584
        %v3555 = vrot.slane %v3554, 4
        %v3556 = vadd.f32 %v3554, %v3555
        %v3557 = vrot.slane %v3556, 2
        %v3558 = vadd.f32 %v3556, %v3557
        %v3559 = vrot.slane %v3558, 1
        %v3560 = vadd.f32 %v3558, %v3559
        %v3561 = vadd.f32 %v2537, %v2553
        %v3562 = vadd.f32 %v3561, %v2569
        %v3563 = vadd.f32 %v3562, %v2585
        %v3564 = vrot.slane %v3563, 4
        %v3565 = vadd.f32 %v3563, %v3564
        %v3566 = vrot.slane %v3565, 2
        %v3567 = vadd.f32 %v3565, %v3566
        %v3568 = vrot.slane %v3567, 1
        %v3569 = vadd.f32 %v3567, %v3568
        %v3570 = vadd.f32 %v2538, %v2554
        %v3571 = vadd.f32 %v3570, %v2570
        %v3572 = vadd.f32 %v3571, %v2586
        %v3573 = vrot.slane %v3572, 4
        %v3574 = vadd.f32 %v3572, %v3573
        %v3575 = vrot.slane %v3574, 2
        %v3576 = vadd.f32 %v3574, %v3575
        %v3577 = vrot.slane %v3576, 1
        %v3578 = vadd.f32 %v3576, %v3577
        %v3579 = vadd.f32 %v2539, %v2555
        %v3580 = vadd.f32 %v3579, %v2571
        %v3581 = vadd.f32 %v3580, %v2587
        %v3582 = vrot.slane %v3581, 4
        %v3583 = vadd.f32 %v3581, %v3582
        %v3584 = vrot.slane %v3583, 2
        %v3585 = vadd.f32 %v3583, %v3584
        %v3586 = vrot.slane %v3585, 1
        %v3587 = vadd.f32 %v3585, %v3586
        %v3588 = vadd.f32 %v2540, %v2556
        %v3589 = vadd.f32 %v3588, %v2572
        %v3590 = vadd.f32 %v3589, %v2588
        %v3591 = vrot.slane %v3590, 4
        %v3592 = vadd.f32 %v3590, %v3591
        %v3593 = vrot.slane %v3592, 2
        %v3594 = vadd.f32 %v3592, %v3593
        %v3595 = vrot.slane %v3594, 1
        %v3596 = vadd.f32 %v3594, %v3595
        %v3597 = vadd.f32 %v2541, %v2557
        %v3598 = vadd.f32 %v3597, %v2573
        %v3599 = vadd.f32 %v3598, %v2589
        %v3600 = vrot.slane %v3599, 4
        %v3601 = vadd.f32 %v3599, %v3600
        %v3602 = vrot.slane %v3601, 2
        %v3603 = vadd.f32 %v3601, %v3602
        %v3604 = vrot.slane %v3603, 1
        %v3605 = vadd.f32 %v3603, %v3604
        %v3606 = vadd.f32 %v2542, %v2558
        %v3607 = vadd.f32 %v3606, %v2574
        %v3608 = vadd.f32 %v3607, %v2590
        %v3609 = vrot.slane %v3608, 4
        %v3610 = vadd.f32 %v3608, %v3609
        %v3611 = vrot.slane %v3610, 2
        %v3612 = vadd.f32 %v3610, %v3611
        %v3613 = vrot.slane %v3612, 1
        %v3614 = vadd.f32 %v3612, %v3613
        %v3615 = vadd.f32 %v2543, %v2559
        %v3616 = vadd.f32 %v3615, %v2575
        %v3617 = vadd.f32 %v3616, %v2591
        %v3618 = vrot.slane %v3617, 4
        %v3619 = vadd.f32 %v3617, %v3618
        %v3620 = vrot.slane %v3619, 2
        %v3621 = vadd.f32 %v3619, %v3620
        %v3622 = vrot.slane %v3621, 1
        %v3623 = vadd.f32 %v3621, %v3622
        %v3624 = vadd.f32 %v2544, %v2560
        %v3625 = vadd.f32 %v3624, %v2576
        %v3626 = vadd.f32 %v3625, %v2592
        %v3627 = vrot.slane %v3626, 4
        %v3628 = vadd.f32 %v3626, %v3627
        %v3629 = vrot.slane %v3628, 2
        %v3630 = vadd.f32 %v3628, %v3629
        %v3631 = vrot.slane %v3630, 1
        %v3632 = vadd.f32 %v3630, %v3631
        %v3633 = vadd.f32 %v2545, %v2561
        %v3634 = vadd.f32 %v3633, %v2577
        %v3635 = vadd.f32 %v3634, %v2593
        %v3636 = vrot.slane %v3635, 4
        %v3637 = vadd.f32 %v3635, %v3636
        %v3638 = vrot.slane %v3637, 2
        %v3639 = vadd.f32 %v3637, %v3638
        %v3640 = vrot.slane %v3639, 1
        %v3641 = vadd.f32 %v3639, %v3640
        %v3642 = vadd.f32 %v2546, %v2562
        %v3643 = vadd.f32 %v3642, %v2578
        %v3644 = vadd.f32 %v3643, %v2594
        %v3645 = vrot.slane %v3644, 4
        %v3646 = vadd.f32 %v3644, %v3645
        %v3647 = vrot.slane %v3646, 2
        %v3648 = vadd.f32 %v3646, %v3647
        %v3649 = vrot.slane %v3648, 1
        %v3650 = vadd.f32 %v3648, %v3649
        %v3651 = vadd.f32 %v2547, %v2563
        %v3652 = vadd.f32 %v3651, %v2579
        %v3653 = vadd.f32 %v3652, %v2595
        %v3654 = vrot.slane %v3653, 4
        %v3655 = vadd.f32 %v3653, %v3654
        %v3656 = vrot.slane %v3655, 2
        %v3657 = vadd.f32 %v3655, %v3656
        %v3658 = vrot.slane %v3657, 1
        %v3659 = vadd.f32 %v3657, %v3658
        %v3660 = vadd.f32 %v2548, %v2564
        %v3661 = vadd.f32 %v3660, %v2580
        %v3662 = vadd.f32 %v3661, %v2596
        %v3663 = vrot.slane %v3662, 4
        %v3664 = vadd.f32 %v3662, %v3663
        %v3665 = vrot.slane %v3664, 2
        %v3666 = vadd.f32 %v3664, %v3665
        %v3667 = vrot.slane %v3666, 1
        %v3668 = vadd.f32 %v3666, %v3667
        %v3669 = vadd.f32 %v2597, %v2613
        %v3670 = vadd.f32 %v3669, %v2629
        %v3671 = vadd.f32 %v3670, %v2645
        %v3672 = vrot.slane %v3671, 4
        %v3673 = vadd.f32 %v3671, %v3672
        %v3674 = vrot.slane %v3673, 2
        %v3675 = vadd.f32 %v3673, %v3674
        %v3676 = vrot.slane %v3675, 1
        %v3677 = vadd.f32 %v3675, %v3676
        %v3678 = vadd.f32 %v2598, %v2614
        %v3679 = vadd.f32 %v3678, %v2630
        %v3680 = vadd.f32 %v3679, %v2646
        %v3681 = vrot.slane %v3680, 4
        %v3682 = vadd.f32 %v3680, %v3681
        %v3683 = vrot.slane %v3682, 2
        %v3684 = vadd.f32 %v3682, %v3683
        %v3685 = vrot.slane %v3684, 1
        %v3686 = vadd.f32 %v3684, %v3685
        %v3687 = vadd.f32 %v2599, %v2615
        %v3688 = vadd.f32 %v3687, %v2631
        %v3689 = vadd.f32 %v3688, %v2647
        %v3690 = vrot.slane %v3689, 4
        %v3691 = vadd.f32 %v3689, %v3690
        %v3692 = vrot.slane %v3691, 2
        %v3693 = vadd.f32 %v3691, %v3692
        %v3694 = vrot.slane %v3693, 1
        %v3695 = vadd.f32 %v3693, %v3694
        %v3696 = vadd.f32 %v2600, %v2616
        %v3697 = vadd.f32 %v3696, %v2632
        %v3698 = vadd.f32 %v3697, %v2648
        %v3699 = vrot.slane %v3698, 4
        %v3700 = vadd.f32 %v3698, %v3699
        %v3701 = vrot.slane %v3700, 2
        %v3702 = vadd.f32 %v3700, %v3701
        %v3703 = vrot.slane %v3702, 1
        %v3704 = vadd.f32 %v3702, %v3703
        %v3705 = vadd.f32 %v2601, %v2617
        %v3706 = vadd.f32 %v3705, %v2633
        %v3707 = vadd.f32 %v3706, %v2649
        %v3708 = vrot.slane %v3707, 4
        %v3709 = vadd.f32 %v3707, %v3708
        %v3710 = vrot.slane %v3709, 2
        %v3711 = vadd.f32 %v3709, %v3710
        %v3712 = vrot.slane %v3711, 1
        %v3713 = vadd.f32 %v3711, %v3712
        %v3714 = vadd.f32 %v2602, %v2618
        %v3715 = vadd.f32 %v3714, %v2634
        %v3716 = vadd.f32 %v3715, %v2650
        %v3717 = vrot.slane %v3716, 4
        %v3718 = vadd.f32 %v3716, %v3717
        %v3719 = vrot.slane %v3718, 2
        %v3720 = vadd.f32 %v3718, %v3719
        %v3721 = vrot.slane %v3720, 1
        %v3722 = vadd.f32 %v3720, %v3721
        %v3723 = vadd.f32 %v2603, %v2619
        %v3724 = vadd.f32 %v3723, %v2635
        %v3725 = vadd.f32 %v3724, %v2651
        %v3726 = vrot.slane %v3725, 4
        %v3727 = vadd.f32 %v3725, %v3726
        %v3728 = vrot.slane %v3727, 2
        %v3729 = vadd.f32 %v3727, %v3728
        %v3730 = vrot.slane %v3729, 1
        %v3731 = vadd.f32 %v3729, %v3730
        %v3732 = vadd.f32 %v2604, %v2620
        %v3733 = vadd.f32 %v3732, %v2636
        %v3734 = vadd.f32 %v3733, %v2652
        %v3735 = vrot.slane %v3734, 4
        %v3736 = vadd.f32 %v3734, %v3735
        %v3737 = vrot.slane %v3736, 2
        %v3738 = vadd.f32 %v3736, %v3737
        %v3739 = vrot.slane %v3738, 1
        %v3740 = vadd.f32 %v3738, %v3739
        %v3741 = vadd.f32 %v2605, %v2621
        %v3742 = vadd.f32 %v3741, %v2637
        %v3743 = vadd.f32 %v3742, %v2653
        %v3744 = vrot.slane %v3743, 4
        %v3745 = vadd.f32 %v3743, %v3744
        %v3746 = vrot.slane %v3745, 2
        %v3747 = vadd.f32 %v3745, %v3746
        %v3748 = vrot.slane %v3747, 1
        %v3749 = vadd.f32 %v3747, %v3748
        %v3750 = vadd.f32 %v2606, %v2622
        %v3751 = vadd.f32 %v3750, %v2638
        %v3752 = vadd.f32 %v3751, %v2654
        %v3753 = vrot.slane %v3752, 4
        %v3754 = vadd.f32 %v3752, %v3753
        %v3755 = vrot.slane %v3754, 2
        %v3756 = vadd.f32 %v3754, %v3755
        %v3757 = vrot.slane %v3756, 1
        %v3758 = vadd.f32 %v3756, %v3757
        %v3759 = vadd.f32 %v2607, %v2623
        %v3760 = vadd.f32 %v3759, %v2639
        %v3761 = vadd.f32 %v3760, %v2655
        %v3762 = vrot.slane %v3761, 4
        %v3763 = vadd.f32 %v3761, %v3762
        %v3764 = vrot.slane %v3763, 2
        %v3765 = vadd.f32 %v3763, %v3764
        %v3766 = vrot.slane %v3765, 1
        %v3767 = vadd.f32 %v3765, %v3766
        %v3768 = vadd.f32 %v2608, %v2624
        %v3769 = vadd.f32 %v3768, %v2640
        %v3770 = vadd.f32 %v3769, %v2656
        %v3771 = vrot.slane %v3770, 4
        %v3772 = vadd.f32 %v3770, %v3771
        %v3773 = vrot.slane %v3772, 2
        %v3774 = vadd.f32 %v3772, %v3773
        %v3775 = vrot.slane %v3774, 1
        %v3776 = vadd.f32 %v3774, %v3775
        %v3777 = vadd.f32 %v2609, %v2625
        %v3778 = vadd.f32 %v3777, %v2641
        %v3779 = vadd.f32 %v3778, %v2657
        %v3780 = vrot.slane %v3779, 4
        %v3781 = vadd.f32 %v3779, %v3780
        %v3782 = vrot.slane %v3781, 2
        %v3783 = vadd.f32 %v3781, %v3782
        %v3784 = vrot.slane %v3783, 1
        %v3785 = vadd.f32 %v3783, %v3784
        %v3786 = vadd.f32 %v2610, %v2626
        %v3787 = vadd.f32 %v3786, %v2642
        %v3788 = vadd.f32 %v3787, %v2658
        %v3789 = vrot.slane %v3788, 4
        %v3790 = vadd.f32 %v3788, %v3789
        %v3791 = vrot.slane %v3790, 2
        %v3792 = vadd.f32 %v3790, %v3791
        %v3793 = vrot.slane %v3792, 1
        %v3794 = vadd.f32 %v3792, %v3793
        %v3795 = vadd.f32 %v2611, %v2627
        %v3796 = vadd.f32 %v3795, %v2643
        %v3797 = vadd.f32 %v3796, %v2659
        %v3798 = vrot.slane %v3797, 4
        %v3799 = vadd.f32 %v3797, %v3798
        %v3800 = vrot.slane %v3799, 2
        %v3801 = vadd.f32 %v3799, %v3800
        %v3802 = vrot.slane %v3801, 1
        %v3803 = vadd.f32 %v3801, %v3802
        %v3804 = vadd.f32 %v2612, %v2628
        %v3805 = vadd.f32 %v3804, %v2644
        %v3806 = vadd.f32 %v3805, %v2660
        %v3807 = vrot.slane %v3806, 4
        %v3808 = vadd.f32 %v3806, %v3807
        %v3809 = vrot.slane %v3808, 2
        %v3810 = vadd.f32 %v3808, %v3809
        %v3811 = vrot.slane %v3810, 1
        %v3812 = vadd.f32 %v3810, %v3811
        %s3813 = scalar_lea.vmem %s1, 2048
        %v3814 = vld [vmem:[%s3813] sm:$0xff]
        %v3815 = vld [vmem:[%s3813 + $0x8] sm:$0xff]
        %v3816 = vld [vmem:[%s3813 + $0x10] sm:$0xff]
        %v3817 = vld [vmem:[%s3813 + $0x18] sm:$0xff]
        %v3818 = vld [vmem:[%s3813 + $0x20] sm:$0xff]
        %v3819 = vld [vmem:[%s3813 + $0x28] sm:$0xff]
        %v3820 = vld [vmem:[%s3813 + $0x30] sm:$0xff]
        %v3821 = vld [vmem:[%s3813 + $0x38] sm:$0xff]
        %v3822 = vld [vmem:[%s3813 + $0x40] sm:$0xff]
        %v3823 = vld [vmem:[%s3813 + $0x48] sm:$0xff]
        %v3824 = vld [vmem:[%s3813 + $0x50] sm:$0xff]
        %v3825 = vld [vmem:[%s3813 + $0x58] sm:$0xff]
        %v3826 = vld [vmem:[%s3813 + $0x60] sm:$0xff]
        %v3827 = vld [vmem:[%s3813 + $0x68] sm:$0xff]
        %v3828 = vld [vmem:[%s3813 + $0x70] sm:$0xff]
        %v3829 = vld [vmem:[%s3813 + $0x78] sm:$0xff]
        %v3830 = vld [vmem:[%s3813 + $0x80] sm:$0xff]
        %v3831 = vld [vmem:[%s3813 + $0x88] sm:$0xff]
        %v3832 = vld [vmem:[%s3813 + $0x90] sm:$0xff]
        %v3833 = vld [vmem:[%s3813 + $0x98] sm:$0xff]
        %v3834 = vld [vmem:[%s3813 + $0xa0] sm:$0xff]
        %v3835 = vld [vmem:[%s3813 + $0xa8] sm:$0xff]
        %v3836 = vld [vmem:[%s3813 + $0xb0] sm:$0xff]
        %v3837 = vld [vmem:[%s3813 + $0xb8] sm:$0xff]
        %v3838 = vld [vmem:[%s3813 + $0xc0] sm:$0xff]
        %v3839 = vld [vmem:[%s3813 + $0xc8] sm:$0xff]
        %v3840 = vld [vmem:[%s3813 + $0xd0] sm:$0xff]
        %v3841 = vld [vmem:[%s3813 + $0xd8] sm:$0xff]
        %v3842 = vld [vmem:[%s3813 + $0xe0] sm:$0xff]
        %v3843 = vld [vmem:[%s3813 + $0xe8] sm:$0xff]
        %v3844 = vld [vmem:[%s3813 + $0xf0] sm:$0xff]
        %v3845 = vld [vmem:[%s3813 + $0xf8] sm:$0xff]
        %v3846 = vld [vmem:[%s3813 + $0x100] sm:$0xff]
        %v3847 = vld [vmem:[%s3813 + $0x108] sm:$0xff]
        %v3848 = vld [vmem:[%s3813 + $0x110] sm:$0xff]
        %v3849 = vld [vmem:[%s3813 + $0x118] sm:$0xff]
        %v3850 = vld [vmem:[%s3813 + $0x120] sm:$0xff]
        %v3851 = vld [vmem:[%s3813 + $0x128] sm:$0xff]
        %v3852 = vld [vmem:[%s3813 + $0x130] sm:$0xff]
        %v3853 = vld [vmem:[%s3813 + $0x138] sm:$0xff]
        %v3854 = vld [vmem:[%s3813 + $0x140] sm:$0xff]
        %v3855 = vld [vmem:[%s3813 + $0x148] sm:$0xff]
        %v3856 = vld [vmem:[%s3813 + $0x150] sm:$0xff]
        %v3857 = vld [vmem:[%s3813 + $0x158] sm:$0xff]
        %v3858 = vld [vmem:[%s3813 + $0x160] sm:$0xff]
        %v3859 = vld [vmem:[%s3813 + $0x168] sm:$0xff]
        %v3860 = vld [vmem:[%s3813 + $0x170] sm:$0xff]
        %v3861 = vld [vmem:[%s3813 + $0x178] sm:$0xff]
        %v3862 = vld [vmem:[%s3813 + $0x180] sm:$0xff]
        %v3863 = vld [vmem:[%s3813 + $0x188] sm:$0xff]
        %v3864 = vld [vmem:[%s3813 + $0x190] sm:$0xff]
        %v3865 = vld [vmem:[%s3813 + $0x198] sm:$0xff]
        %v3866 = vld [vmem:[%s3813 + $0x1a0] sm:$0xff]
        %v3867 = vld [vmem:[%s3813 + $0x1a8] sm:$0xff]
        %v3868 = vld [vmem:[%s3813 + $0x1b0] sm:$0xff]
        %v3869 = vld [vmem:[%s3813 + $0x1b8] sm:$0xff]
        %v3870 = vld [vmem:[%s3813 + $0x1c0] sm:$0xff]
        %v3871 = vld [vmem:[%s3813 + $0x1c8] sm:$0xff]
        %v3872 = vld [vmem:[%s3813 + $0x1d0] sm:$0xff]
        %v3873 = vld [vmem:[%s3813 + $0x1d8] sm:$0xff]
        %v3874 = vld [vmem:[%s3813 + $0x1e0] sm:$0xff]
        %v3875 = vld [vmem:[%s3813 + $0x1e8] sm:$0xff]
        %v3876 = vld [vmem:[%s3813 + $0x1f0] sm:$0xff]
        %v3877 = vld [vmem:[%s3813 + $0x1f8] sm:$0xff]
        %v3878 = vld [vmem:[%s3813 + $0x200] sm:$0xff]
        %v3879 = vld [vmem:[%s3813 + $0x208] sm:$0xff]
        %v3880 = vld [vmem:[%s3813 + $0x210] sm:$0xff]
        %v3881 = vld [vmem:[%s3813 + $0x218] sm:$0xff]
        %v3882 = vld [vmem:[%s3813 + $0x220] sm:$0xff]
        %v3883 = vld [vmem:[%s3813 + $0x228] sm:$0xff]
        %v3884 = vld [vmem:[%s3813 + $0x230] sm:$0xff]
        %v3885 = vld [vmem:[%s3813 + $0x238] sm:$0xff]
        %v3886 = vld [vmem:[%s3813 + $0x240] sm:$0xff]
        %v3887 = vld [vmem:[%s3813 + $0x248] sm:$0xff]
        %v3888 = vld [vmem:[%s3813 + $0x250] sm:$0xff]
        %v3889 = vld [vmem:[%s3813 + $0x258] sm:$0xff]
        %v3890 = vld [vmem:[%s3813 + $0x260] sm:$0xff]
        %v3891 = vld [vmem:[%s3813 + $0x268] sm:$0xff]
        %v3892 = vld [vmem:[%s3813 + $0x270] sm:$0xff]
        %v3893 = vld [vmem:[%s3813 + $0x278] sm:$0xff]
        %v3894 = vld [vmem:[%s3813 + $0x280] sm:$0xff]
        %v3895 = vld [vmem:[%s3813 + $0x288] sm:$0xff]
        %v3896 = vld [vmem:[%s3813 + $0x290] sm:$0xff]
        %v3897 = vld [vmem:[%s3813 + $0x298] sm:$0xff]
        %v3898 = vld [vmem:[%s3813 + $0x2a0] sm:$0xff]
        %v3899 = vld [vmem:[%s3813 + $0x2a8] sm:$0xff]
        %v3900 = vld [vmem:[%s3813 + $0x2b0] sm:$0xff]
        %v3901 = vld [vmem:[%s3813 + $0x2b8] sm:$0xff]
        %v3902 = vld [vmem:[%s3813 + $0x2c0] sm:$0xff]
        %v3903 = vld [vmem:[%s3813 + $0x2c8] sm:$0xff]
        %v3904 = vld [vmem:[%s3813 + $0x2d0] sm:$0xff]
        %v3905 = vld [vmem:[%s3813 + $0x2d8] sm:$0xff]
        %v3906 = vld [vmem:[%s3813 + $0x2e0] sm:$0xff]
        %v3907 = vld [vmem:[%s3813 + $0x2e8] sm:$0xff]
        %v3908 = vld [vmem:[%s3813 + $0x2f0] sm:$0xff]
        %v3909 = vld [vmem:[%s3813 + $0x2f8] sm:$0xff]
        %v3910 = vld [vmem:[%s3813 + $0x300] sm:$0xff]
        %v3911 = vld [vmem:[%s3813 + $0x308] sm:$0xff]
        %v3912 = vld [vmem:[%s3813 + $0x310] sm:$0xff]
        %v3913 = vld [vmem:[%s3813 + $0x318] sm:$0xff]
        %v3914 = vld [vmem:[%s3813 + $0x320] sm:$0xff]
        %v3915 = vld [vmem:[%s3813 + $0x328] sm:$0xff]
        %v3916 = vld [vmem:[%s3813 + $0x330] sm:$0xff]
        %v3917 = vld [vmem:[%s3813 + $0x338] sm:$0xff]
        %v3918 = vld [vmem:[%s3813 + $0x340] sm:$0xff]
        %v3919 = vld [vmem:[%s3813 + $0x348] sm:$0xff]
        %v3920 = vld [vmem:[%s3813 + $0x350] sm:$0xff]
        %v3921 = vld [vmem:[%s3813 + $0x358] sm:$0xff]
        %v3922 = vld [vmem:[%s3813 + $0x360] sm:$0xff]
        %v3923 = vld [vmem:[%s3813 + $0x368] sm:$0xff]
        %v3924 = vld [vmem:[%s3813 + $0x370] sm:$0xff]
        %v3925 = vld [vmem:[%s3813 + $0x378] sm:$0xff]
        %v3926 = vld [vmem:[%s3813 + $0x380] sm:$0xff]
        %v3927 = vld [vmem:[%s3813 + $0x388] sm:$0xff]
        %v3928 = vld [vmem:[%s3813 + $0x390] sm:$0xff]
        %v3929 = vld [vmem:[%s3813 + $0x398] sm:$0xff]
        %v3930 = vld [vmem:[%s3813 + $0x3a0] sm:$0xff]
        %v3931 = vld [vmem:[%s3813 + $0x3a8] sm:$0xff]
        %v3932 = vld [vmem:[%s3813 + $0x3b0] sm:$0xff]
        %v3933 = vld [vmem:[%s3813 + $0x3b8] sm:$0xff]
        %v3934 = vld [vmem:[%s3813 + $0x3c0] sm:$0xff]
        %v3935 = vld [vmem:[%s3813 + $0x3c8] sm:$0xff]
        %v3936 = vld [vmem:[%s3813 + $0x3d0] sm:$0xff]
        %v3937 = vld [vmem:[%s3813 + $0x3d8] sm:$0xff]
        %v3938 = vld [vmem:[%s3813 + $0x3e0] sm:$0xff]
        %v3939 = vld [vmem:[%s3813 + $0x3e8] sm:$0xff]
        %v3940 = vld [vmem:[%s3813 + $0x3f0] sm:$0xff]
        %v3941 = vld [vmem:[%s3813 + $0x3f8] sm:$0xff]
        %v3942 = vld [vmem:[%s3813 + $0x400] sm:$0xff]
        %v3943 = vld [vmem:[%s3813 + $0x408] sm:$0xff]
        %v3944 = vld [vmem:[%s3813 + $0x410] sm:$0xff]
        %v3945 = vld [vmem:[%s3813 + $0x418] sm:$0xff]
        %v3946 = vld [vmem:[%s3813 + $0x420] sm:$0xff]
        %v3947 = vld [vmem:[%s3813 + $0x428] sm:$0xff]
        %v3948 = vld [vmem:[%s3813 + $0x430] sm:$0xff]
        %v3949 = vld [vmem:[%s3813 + $0x438] sm:$0xff]
        %v3950 = vld [vmem:[%s3813 + $0x440] sm:$0xff]
        %v3951 = vld [vmem:[%s3813 + $0x448] sm:$0xff]
        %v3952 = vld [vmem:[%s3813 + $0x450] sm:$0xff]
        %v3953 = vld [vmem:[%s3813 + $0x458] sm:$0xff]
        %v3954 = vld [vmem:[%s3813 + $0x460] sm:$0xff]
        %v3955 = vld [vmem:[%s3813 + $0x468] sm:$0xff]
        %v3956 = vld [vmem:[%s3813 + $0x470] sm:$0xff]
        %v3957 = vld [vmem:[%s3813 + $0x478] sm:$0xff]
        %v3958 = vld [vmem:[%s3813 + $0x480] sm:$0xff]
        %v3959 = vld [vmem:[%s3813 + $0x488] sm:$0xff]
        %v3960 = vld [vmem:[%s3813 + $0x490] sm:$0xff]
        %v3961 = vld [vmem:[%s3813 + $0x498] sm:$0xff]
        %v3962 = vld [vmem:[%s3813 + $0x4a0] sm:$0xff]
        %v3963 = vld [vmem:[%s3813 + $0x4a8] sm:$0xff]
        %v3964 = vld [vmem:[%s3813 + $0x4b0] sm:$0xff]
        %v3965 = vld [vmem:[%s3813 + $0x4b8] sm:$0xff]
        %v3966 = vld [vmem:[%s3813 + $0x4c0] sm:$0xff]
        %v3967 = vld [vmem:[%s3813 + $0x4c8] sm:$0xff]
        %v3968 = vld [vmem:[%s3813 + $0x4d0] sm:$0xff]
        %v3969 = vld [vmem:[%s3813 + $0x4d8] sm:$0xff]
        %v3970 = vld [vmem:[%s3813 + $0x4e0] sm:$0xff]
        %v3971 = vld [vmem:[%s3813 + $0x4e8] sm:$0xff]
        %v3972 = vld [vmem:[%s3813 + $0x4f0] sm:$0xff]
        %v3973 = vld [vmem:[%s3813 + $0x4f8] sm:$0xff]
        %v3974 = vld [vmem:[%s3813 + $0x500] sm:$0xff]
        %v3975 = vld [vmem:[%s3813 + $0x508] sm:$0xff]
        %v3976 = vld [vmem:[%s3813 + $0x510] sm:$0xff]
        %v3977 = vld [vmem:[%s3813 + $0x518] sm:$0xff]
        %v3978 = vld [vmem:[%s3813 + $0x520] sm:$0xff]
        %v3979 = vld [vmem:[%s3813 + $0x528] sm:$0xff]
        %v3980 = vld [vmem:[%s3813 + $0x530] sm:$0xff]
        %v3981 = vld [vmem:[%s3813 + $0x538] sm:$0xff]
        %v3982 = vld [vmem:[%s3813 + $0x540] sm:$0xff]
        %v3983 = vld [vmem:[%s3813 + $0x548] sm:$0xff]
        %v3984 = vld [vmem:[%s3813 + $0x550] sm:$0xff]
        %v3985 = vld [vmem:[%s3813 + $0x558] sm:$0xff]
        %v3986 = vld [vmem:[%s3813 + $0x560] sm:$0xff]
        %v3987 = vld [vmem:[%s3813 + $0x568] sm:$0xff]
        %v3988 = vld [vmem:[%s3813 + $0x570] sm:$0xff]
        %v3989 = vld [vmem:[%s3813 + $0x578] sm:$0xff]
        %v3990 = vld [vmem:[%s3813 + $0x580] sm:$0xff]
        %v3991 = vld [vmem:[%s3813 + $0x588] sm:$0xff]
        %v3992 = vld [vmem:[%s3813 + $0x590] sm:$0xff]
        %v3993 = vld [vmem:[%s3813 + $0x598] sm:$0xff]
        %v3994 = vld [vmem:[%s3813 + $0x5a0] sm:$0xff]
        %v3995 = vld [vmem:[%s3813 + $0x5a8] sm:$0xff]
        %v3996 = vld [vmem:[%s3813 + $0x5b0] sm:$0xff]
        %v3997 = vld [vmem:[%s3813 + $0x5b8] sm:$0xff]
        %v3998 = vld [vmem:[%s3813 + $0x5c0] sm:$0xff]
        %v3999 = vld [vmem:[%s3813 + $0x5c8] sm:$0xff]
        %v4000 = vld [vmem:[%s3813 + $0x5d0] sm:$0xff]
        %v4001 = vld [vmem:[%s3813 + $0x5d8] sm:$0xff]
        %v4002 = vld [vmem:[%s3813 + $0x5e0] sm:$0xff]
        %v4003 = vld [vmem:[%s3813 + $0x5e8] sm:$0xff]
        %v4004 = vld [vmem:[%s3813 + $0x5f0] sm:$0xff]
        %v4005 = vld [vmem:[%s3813 + $0x5f8] sm:$0xff]
        %v4006 = vld [vmem:[%s3813 + $0x600] sm:$0xff]
        %v4007 = vld [vmem:[%s3813 + $0x608] sm:$0xff]
        %v4008 = vld [vmem:[%s3813 + $0x610] sm:$0xff]
        %v4009 = vld [vmem:[%s3813 + $0x618] sm:$0xff]
        %v4010 = vld [vmem:[%s3813 + $0x620] sm:$0xff]
        %v4011 = vld [vmem:[%s3813 + $0x628] sm:$0xff]
        %v4012 = vld [vmem:[%s3813 + $0x630] sm:$0xff]
        %v4013 = vld [vmem:[%s3813 + $0x638] sm:$0xff]
        %v4014 = vld [vmem:[%s3813 + $0x640] sm:$0xff]
        %v4015 = vld [vmem:[%s3813 + $0x648] sm:$0xff]
        %v4016 = vld [vmem:[%s3813 + $0x650] sm:$0xff]
        %v4017 = vld [vmem:[%s3813 + $0x658] sm:$0xff]
        %v4018 = vld [vmem:[%s3813 + $0x660] sm:$0xff]
        %v4019 = vld [vmem:[%s3813 + $0x668] sm:$0xff]
        %v4020 = vld [vmem:[%s3813 + $0x670] sm:$0xff]
        %v4021 = vld [vmem:[%s3813 + $0x678] sm:$0xff]
        %v4022 = vld [vmem:[%s3813 + $0x680] sm:$0xff]
        %v4023 = vld [vmem:[%s3813 + $0x688] sm:$0xff]
        %v4024 = vld [vmem:[%s3813 + $0x690] sm:$0xff]
        %v4025 = vld [vmem:[%s3813 + $0x698] sm:$0xff]
        %v4026 = vld [vmem:[%s3813 + $0x6a0] sm:$0xff]
        %v4027 = vld [vmem:[%s3813 + $0x6a8] sm:$0xff]
        %v4028 = vld [vmem:[%s3813 + $0x6b0] sm:$0xff]
        %v4029 = vld [vmem:[%s3813 + $0x6b8] sm:$0xff]
        %v4030 = vld [vmem:[%s3813 + $0x6c0] sm:$0xff]
        %v4031 = vld [vmem:[%s3813 + $0x6c8] sm:$0xff]
        %v4032 = vld [vmem:[%s3813 + $0x6d0] sm:$0xff]
        %v4033 = vld [vmem:[%s3813 + $0x6d8] sm:$0xff]
        %v4034 = vld [vmem:[%s3813 + $0x6e0] sm:$0xff]
        %v4035 = vld [vmem:[%s3813 + $0x6e8] sm:$0xff]
        %v4036 = vld [vmem:[%s3813 + $0x6f0] sm:$0xff]
        %v4037 = vld [vmem:[%s3813 + $0x6f8] sm:$0xff]
        %v4038 = vld [vmem:[%s3813 + $0x700] sm:$0xff]
        %v4039 = vld [vmem:[%s3813 + $0x708] sm:$0xff]
        %v4040 = vld [vmem:[%s3813 + $0x710] sm:$0xff]
        %v4041 = vld [vmem:[%s3813 + $0x718] sm:$0xff]
        %v4042 = vld [vmem:[%s3813 + $0x720] sm:$0xff]
        %v4043 = vld [vmem:[%s3813 + $0x728] sm:$0xff]
        %v4044 = vld [vmem:[%s3813 + $0x730] sm:$0xff]
        %v4045 = vld [vmem:[%s3813 + $0x738] sm:$0xff]
        %v4046 = vld [vmem:[%s3813 + $0x740] sm:$0xff]
        %v4047 = vld [vmem:[%s3813 + $0x748] sm:$0xff]
        %v4048 = vld [vmem:[%s3813 + $0x750] sm:$0xff]
        %v4049 = vld [vmem:[%s3813 + $0x758] sm:$0xff]
        %v4050 = vld [vmem:[%s3813 + $0x760] sm:$0xff]
        %v4051 = vld [vmem:[%s3813 + $0x768] sm:$0xff]
        %v4052 = vld [vmem:[%s3813 + $0x770] sm:$0xff]
        %v4053 = vld [vmem:[%s3813 + $0x778] sm:$0xff]
        %v4054 = vld [vmem:[%s3813 + $0x780] sm:$0xff]
        %v4055 = vld [vmem:[%s3813 + $0x788] sm:$0xff]
        %v4056 = vld [vmem:[%s3813 + $0x790] sm:$0xff]
        %v4057 = vld [vmem:[%s3813 + $0x798] sm:$0xff]
        %v4058 = vld [vmem:[%s3813 + $0x7a0] sm:$0xff]
        %v4059 = vld [vmem:[%s3813 + $0x7a8] sm:$0xff]
        %v4060 = vld [vmem:[%s3813 + $0x7b0] sm:$0xff]
        %v4061 = vld [vmem:[%s3813 + $0x7b8] sm:$0xff]
        %v4062 = vld [vmem:[%s3813 + $0x7c0] sm:$0xff]
        %v4063 = vld [vmem:[%s3813 + $0x7c8] sm:$0xff]
        %v4064 = vld [vmem:[%s3813 + $0x7d0] sm:$0xff]
        %v4065 = vld [vmem:[%s3813 + $0x7d8] sm:$0xff]
        %v4066 = vld [vmem:[%s3813 + $0x7e0] sm:$0xff]
        %v4067 = vld [vmem:[%s3813 + $0x7e8] sm:$0xff]
        %v4068 = vld [vmem:[%s3813 + $0x7f0] sm:$0xff]
        %v4069 = vld [vmem:[%s3813 + $0x7f8] sm:$0xff]
        %vm4198 = vcmask 1041409
        %v4199 = vsel %vm4198, %v2813, %v2669
        %vm4200 = vcmask 1042434
        %v4201 = vsel %vm4200, %v2957, %v4199
        %vm4202 = vcmask 1043459
        %v4203 = vsel %vm4202, %v3101, %v4201
        %vm4204 = vcmask 1044484
        %v4205 = vsel %vm4204, %v3245, %v4203
        %vm4206 = vcmask 1045509
        %v4207 = vsel %vm4206, %v3389, %v4205
        %vm4208 = vcmask 1046534
        %v4209 = vsel %vm4208, %v3533, %v4207
        %vm4210 = vcmask 1047559
        %v4211 = vsel %vm4210, %v3677, %v4209
        %v4212 = vsel %vm4198, %v2822, %v2678
        %v4213 = vsel %vm4200, %v2966, %v4212
        %v4214 = vsel %vm4202, %v3110, %v4213
        %v4215 = vsel %vm4204, %v3254, %v4214
        %v4216 = vsel %vm4206, %v3398, %v4215
        %v4217 = vsel %vm4208, %v3542, %v4216
        %v4218 = vsel %vm4210, %v3686, %v4217
        %v4219 = vsel %vm4198, %v2831, %v2687
        %v4220 = vsel %vm4200, %v2975, %v4219
        %v4221 = vsel %vm4202, %v3119, %v4220
        %v4222 = vsel %vm4204, %v3263, %v4221
        %v4223 = vsel %vm4206, %v3407, %v4222
        %v4224 = vsel %vm4208, %v3551, %v4223
        %v4225 = vsel %vm4210, %v3695, %v4224
        %v4226 = vsel %vm4198, %v2840, %v2696
        %v4227 = vsel %vm4200, %v2984, %v4226
        %v4228 = vsel %vm4202, %v3128, %v4227
        %v4229 = vsel %vm4204, %v3272, %v4228
        %v4230 = vsel %vm4206, %v3416, %v4229
        %v4231 = vsel %vm4208, %v3560, %v4230
        %v4232 = vsel %vm4210, %v3704, %v4231
        %v4233 = vsel %vm4198, %v2849, %v2705
        %v4234 = vsel %vm4200, %v2993, %v4233
        %v4235 = vsel %vm4202, %v3137, %v4234
        %v4236 = vsel %vm4204, %v3281, %v4235
        %v4237 = vsel %vm4206, %v3425, %v4236
        %v4238 = vsel %vm4208, %v3569, %v4237
        %v4239 = vsel %vm4210, %v3713, %v4238
        %v4240 = vsel %vm4198, %v2858, %v2714
        %v4241 = vsel %vm4200, %v3002, %v4240
        %v4242 = vsel %vm4202, %v3146, %v4241
        %v4243 = vsel %vm4204, %v3290, %v4242
        %v4244 = vsel %vm4206, %v3434, %v4243
        %v4245 = vsel %vm4208, %v3578, %v4244
        %v4246 = vsel %vm4210, %v3722, %v4245
        %v4247 = vsel %vm4198, %v2867, %v2723
        %v4248 = vsel %vm4200, %v3011, %v4247
        %v4249 = vsel %vm4202, %v3155, %v4248
        %v4250 = vsel %vm4204, %v3299, %v4249
        %v4251 = vsel %vm4206, %v3443, %v4250
        %v4252 = vsel %vm4208, %v3587, %v4251
        %v4253 = vsel %vm4210, %v3731, %v4252
        %v4254 = vsel %vm4198, %v2876, %v2732
        %v4255 = vsel %vm4200, %v3020, %v4254
        %v4256 = vsel %vm4202, %v3164, %v4255
        %v4257 = vsel %vm4204, %v3308, %v4256
        %v4258 = vsel %vm4206, %v3452, %v4257
        %v4259 = vsel %vm4208, %v3596, %v4258
        %v4260 = vsel %vm4210, %v3740, %v4259
        %v4261 = vsel %vm4198, %v2885, %v2741
        %v4262 = vsel %vm4200, %v3029, %v4261
        %v4263 = vsel %vm4202, %v3173, %v4262
        %v4264 = vsel %vm4204, %v3317, %v4263
        %v4265 = vsel %vm4206, %v3461, %v4264
        %v4266 = vsel %vm4208, %v3605, %v4265
        %v4267 = vsel %vm4210, %v3749, %v4266
        %v4268 = vsel %vm4198, %v2894, %v2750
        %v4269 = vsel %vm4200, %v3038, %v4268
        %v4270 = vsel %vm4202, %v3182, %v4269
        %v4271 = vsel %vm4204, %v3326, %v4270
        %v4272 = vsel %vm4206, %v3470, %v4271
        %v4273 = vsel %vm4208, %v3614, %v4272
        %v4274 = vsel %vm4210, %v3758, %v4273
        %v4275 = vsel %vm4198, %v2903, %v2759
        %v4276 = vsel %vm4200, %v3047, %v4275
        %v4277 = vsel %vm4202, %v3191, %v4276
        %v4278 = vsel %vm4204, %v3335, %v4277
        %v4279 = vsel %vm4206, %v3479, %v4278
        %v4280 = vsel %vm4208, %v3623, %v4279
        %v4281 = vsel %vm4210, %v3767, %v4280
        %v4282 = vsel %vm4198, %v2912, %v2768
        %v4283 = vsel %vm4200, %v3056, %v4282
        %v4284 = vsel %vm4202, %v3200, %v4283
        %v4285 = vsel %vm4204, %v3344, %v4284
        %v4286 = vsel %vm4206, %v3488, %v4285
        %v4287 = vsel %vm4208, %v3632, %v4286
        %v4288 = vsel %vm4210, %v3776, %v4287
        %v4289 = vsel %vm4198, %v2921, %v2777
        %v4290 = vsel %vm4200, %v3065, %v4289
        %v4291 = vsel %vm4202, %v3209, %v4290
        %v4292 = vsel %vm4204, %v3353, %v4291
        %v4293 = vsel %vm4206, %v3497, %v4292
        %v4294 = vsel %vm4208, %v3641, %v4293
        %v4295 = vsel %vm4210, %v3785, %v4294
        %v4296 = vsel %vm4198, %v2930, %v2786
        %v4297 = vsel %vm4200, %v3074, %v4296
        %v4298 = vsel %vm4202, %v3218, %v4297
        %v4299 = vsel %vm4204, %v3362, %v4298
        %v4300 = vsel %vm4206, %v3506, %v4299
        %v4301 = vsel %vm4208, %v3650, %v4300
        %v4302 = vsel %vm4210, %v3794, %v4301
        %v4303 = vsel %vm4198, %v2939, %v2795
        %v4304 = vsel %vm4200, %v3083, %v4303
        %v4305 = vsel %vm4202, %v3227, %v4304
        %v4306 = vsel %vm4204, %v3371, %v4305
        %v4307 = vsel %vm4206, %v3515, %v4306
        %v4308 = vsel %vm4208, %v3659, %v4307
        %v4309 = vsel %vm4210, %v3803, %v4308
        %v4310 = vsel %vm4198, %v2948, %v2804
        %v4311 = vsel %vm4200, %v3092, %v4310
        %v4312 = vsel %vm4202, %v3236, %v4311
        %v4313 = vsel %vm4204, %v3380, %v4312
        %v4314 = vsel %vm4206, %v3524, %v4313
        %v4315 = vsel %vm4208, %v3668, %v4314
        %v4316 = vsel %vm4210, %v3812, %v4315
        %4333 = vmatprep.subr.mxu0 0.0
        %4334 = vmatpush1.msra.mxu0 %v3814
        %4335 = vmatprep.subr.mxu0 0.0
        %4336 = vmatpush1.msra.mxu0 %v3815
        %4337 = vmatprep.subr.mxu0 0.0
        %4338 = vmatpush1.msra.mxu0 %v3816
        %4339 = vmatprep.subr.mxu0 0.0
        %4340 = vmatpush1.msra.mxu0 %v3817
        %4341 = vmatprep.subr.mxu0 0.0
        %4342 = vmatpush1.msra.mxu0 %v3818
        %4343 = vmatprep.subr.mxu0 0.0
        %4344 = vmatpush1.msra.mxu0 %v3819
        %4345 = vmatprep.subr.mxu0 0.0
        %4346 = vmatpush1.msra.mxu0 %v3820
        %4347 = vmatprep.subr.mxu0 0.0
        %4348 = vmatpush1.msra.mxu0 %v3821
        %4349 = vmatprep.subr.mxu0 0.0
        %4350 = vmatpush1.msra.mxu0 %v3822
        %4351 = vmatprep.subr.mxu0 0.0
        %4352 = vmatpush1.msra.mxu0 %v3823
        %4353 = vmatprep.subr.mxu0 0.0
        %4354 = vmatpush1.msra.mxu0 %v3824
        %4355 = vmatprep.subr.mxu0 0.0
        %4356 = vmatpush1.msra.mxu0 %v3825
        %4357 = vmatprep.subr.mxu0 0.0
        %4358 = vmatpush1.msra.mxu0 %v3826
        %4359 = vmatprep.subr.mxu0 0.0
        %4360 = vmatpush1.msra.mxu0 %v3827
        %4361 = vmatprep.subr.mxu0 0.0
        %4362 = vmatpush1.msra.mxu0 %v3828
        %4363 = vmatprep.subr.mxu0 0.0
        %4364 = vmatpush1.msra.mxu0 %v3829
        %4365 = vmatprep.subr.mxu0 0.0
        %4366 = vmatpush1.msra.mxu0 %v3830
        %4367 = vmatprep.subr.mxu0 0.0
        %4368 = vmatpush1.msra.mxu0 %v3831
        %4369 = vmatprep.subr.mxu0 0.0
        %4370 = vmatpush1.msra.mxu0 %v3832
        %4371 = vmatprep.subr.mxu0 0.0
        %4372 = vmatpush1.msra.mxu0 %v3833
        %4373 = vmatprep.subr.mxu0 0.0
        %4374 = vmatpush1.msra.mxu0 %v3834
        %4375 = vmatprep.subr.mxu0 0.0
        %4376 = vmatpush1.msra.mxu0 %v3835
        %4377 = vmatprep.subr.mxu0 0.0
        %4378 = vmatpush1.msra.mxu0 %v3836
        %4379 = vmatprep.subr.mxu0 0.0
        %4380 = vmatpush1.msra.mxu0 %v3837
        %4381 = vmatprep.subr.mxu0 0.0
        %4382 = vmatpush1.msra.mxu0 %v3838
        %4383 = vmatprep.subr.mxu0 0.0
        %4384 = vmatpush1.msra.mxu0 %v3839
        %4385 = vmatprep.subr.mxu0 0.0
        %4386 = vmatpush1.msra.mxu0 %v3840
        %4387 = vmatprep.subr.mxu0 0.0
        %4388 = vmatpush1.msra.mxu0 %v3841
        %4389 = vmatprep.subr.mxu0 0.0
        %4390 = vmatpush1.msra.mxu0 %v3842
        %4391 = vmatprep.subr.mxu0 0.0
        %4392 = vmatpush1.msra.mxu0 %v3843
        %4393 = vmatprep.subr.mxu0 0.0
        %4394 = vmatpush1.msra.mxu0 %v3844
        %4395 = vmatprep.subr.mxu0 0.0
        %4396 = vmatpush1.msra.mxu0 %v3845
        %4397 = vmatprep.mubr.f32.mxu0 %v4218
        %4398 = vmatmul.mubr.f32.gmra.mrb[0].mxu0 %v4211
        %v4399 = vpop.f32.mrb[0].mxu0
        %v4400 = vadd.f32 0.0, %v4399
        %v4401 = vpop.f32.mrb[0].mxu0
        %4402 = vdwg.mxu0
        %4403 = vmatprep.subr.mxu0 0.0
        %4404 = vmatpush1.msra.mxu0 %v3846
        %4405 = vmatprep.subr.mxu0 0.0
        %4406 = vmatpush1.msra.mxu0 %v3847
        %4407 = vmatprep.subr.mxu0 0.0
        %4408 = vmatpush1.msra.mxu0 %v3848
        %4409 = vmatprep.subr.mxu0 0.0
        %4410 = vmatpush1.msra.mxu0 %v3849
        %4411 = vmatprep.subr.mxu0 0.0
        %4412 = vmatpush1.msra.mxu0 %v3850
        %4413 = vmatprep.subr.mxu0 0.0
        %4414 = vmatpush1.msra.mxu0 %v3851
        %4415 = vmatprep.subr.mxu0 0.0
        %4416 = vmatpush1.msra.mxu0 %v3852
        %4417 = vmatprep.subr.mxu0 0.0
        %4418 = vmatpush1.msra.mxu0 %v3853
        %4419 = vmatprep.subr.mxu0 0.0
        %4420 = vmatpush1.msra.mxu0 %v3854
        %4421 = vmatprep.subr.mxu0 0.0
        %4422 = vmatpush1.msra.mxu0 %v3855
        %4423 = vmatprep.subr.mxu0 0.0
        %4424 = vmatpush1.msra.mxu0 %v3856
        %4425 = vmatprep.subr.mxu0 0.0
        %4426 = vmatpush1.msra.mxu0 %v3857
        %4427 = vmatprep.subr.mxu0 0.0
        %4428 = vmatpush1.msra.mxu0 %v3858
        %4429 = vmatprep.subr.mxu0 0.0
        %4430 = vmatpush1.msra.mxu0 %v3859
        %4431 = vmatprep.subr.mxu0 0.0
        %4432 = vmatpush1.msra.mxu0 %v3860
        %4433 = vmatprep.subr.mxu0 0.0
        %4434 = vmatpush1.msra.mxu0 %v3861
        %4435 = vmatprep.subr.mxu0 0.0
        %4436 = vmatpush1.msra.mxu0 %v3862
        %4437 = vmatprep.subr.mxu0 0.0
        %4438 = vmatpush1.msra.mxu0 %v3863
        %4439 = vmatprep.subr.mxu0 0.0
        %4440 = vmatpush1.msra.mxu0 %v3864
        %4441 = vmatprep.subr.mxu0 0.0
        %4442 = vmatpush1.msra.mxu0 %v3865
        %4443 = vmatprep.subr.mxu0 0.0
        %4444 = vmatpush1.msra.mxu0 %v3866
        %4445 = vmatprep.subr.mxu0 0.0
        %4446 = vmatpush1.msra.mxu0 %v3867
        %4447 = vmatprep.subr.mxu0 0.0
        %4448 = vmatpush1.msra.mxu0 %v3868
        %4449 = vmatprep.subr.mxu0 0.0
        %4450 = vmatpush1.msra.mxu0 %v3869
        %4451 = vmatprep.subr.mxu0 0.0
        %4452 = vmatpush1.msra.mxu0 %v3870
        %4453 = vmatprep.subr.mxu0 0.0
        %4454 = vmatpush1.msra.mxu0 %v3871
        %4455 = vmatprep.subr.mxu0 0.0
        %4456 = vmatpush1.msra.mxu0 %v3872
        %4457 = vmatprep.subr.mxu0 0.0
        %4458 = vmatpush1.msra.mxu0 %v3873
        %4459 = vmatprep.subr.mxu0 0.0
        %4460 = vmatpush1.msra.mxu0 %v3874
        %4461 = vmatprep.subr.mxu0 0.0
        %4462 = vmatpush1.msra.mxu0 %v3875
        %4463 = vmatprep.subr.mxu0 0.0
        %4464 = vmatpush1.msra.mxu0 %v3876
        %4465 = vmatprep.subr.mxu0 0.0
        %4466 = vmatpush1.msra.mxu0 %v3877
        %4467 = vmatprep.mubr.f32.mxu0 %v4232
        %4468 = vmatmul.mubr.f32.gmra.mrb[0].mxu0 %v4225
        %v4469 = vpop.f32.mrb[0].mxu0
        %v4470 = vadd.f32 %v4400, %v4469
        %v4471 = vpop.f32.mrb[0].mxu0
        %4472 = vdwg.mxu0
        %4473 = vmatprep.subr.mxu0 0.0
        %4474 = vmatpush1.msra.mxu0 %v3878
        %4475 = vmatprep.subr.mxu0 0.0
        %4476 = vmatpush1.msra.mxu0 %v3879
        %4477 = vmatprep.subr.mxu0 0.0
        %4478 = vmatpush1.msra.mxu0 %v3880
        %4479 = vmatprep.subr.mxu0 0.0
        %4480 = vmatpush1.msra.mxu0 %v3881
        %4481 = vmatprep.subr.mxu0 0.0
        %4482 = vmatpush1.msra.mxu0 %v3882
        %4483 = vmatprep.subr.mxu0 0.0
        %4484 = vmatpush1.msra.mxu0 %v3883
        %4485 = vmatprep.subr.mxu0 0.0
        %4486 = vmatpush1.msra.mxu0 %v3884
        %4487 = vmatprep.subr.mxu0 0.0
        %4488 = vmatpush1.msra.mxu0 %v3885
        %4489 = vmatprep.subr.mxu0 0.0
        %4490 = vmatpush1.msra.mxu0 %v3886
        %4491 = vmatprep.subr.mxu0 0.0
        %4492 = vmatpush1.msra.mxu0 %v3887
        %4493 = vmatprep.subr.mxu0 0.0
        %4494 = vmatpush1.msra.mxu0 %v3888
        %4495 = vmatprep.subr.mxu0 0.0
        %4496 = vmatpush1.msra.mxu0 %v3889
        %4497 = vmatprep.subr.mxu0 0.0
        %4498 = vmatpush1.msra.mxu0 %v3890
        %4499 = vmatprep.subr.mxu0 0.0
        %4500 = vmatpush1.msra.mxu0 %v3891
        %4501 = vmatprep.subr.mxu0 0.0
        %4502 = vmatpush1.msra.mxu0 %v3892
        %4503 = vmatprep.subr.mxu0 0.0
        %4504 = vmatpush1.msra.mxu0 %v3893
        %4505 = vmatprep.subr.mxu0 0.0
        %4506 = vmatpush1.msra.mxu0 %v3894
        %4507 = vmatprep.subr.mxu0 0.0
        %4508 = vmatpush1.msra.mxu0 %v3895
        %4509 = vmatprep.subr.mxu0 0.0
        %4510 = vmatpush1.msra.mxu0 %v3896
        %4511 = vmatprep.subr.mxu0 0.0
        %4512 = vmatpush1.msra.mxu0 %v3897
        %4513 = vmatprep.subr.mxu0 0.0
        %4514 = vmatpush1.msra.mxu0 %v3898
        %4515 = vmatprep.subr.mxu0 0.0
        %4516 = vmatpush1.msra.mxu0 %v3899
        %4517 = vmatprep.subr.mxu0 0.0
        %4518 = vmatpush1.msra.mxu0 %v3900
        %4519 = vmatprep.subr.mxu0 0.0
        %4520 = vmatpush1.msra.mxu0 %v3901
        %4521 = vmatprep.subr.mxu0 0.0
        %4522 = vmatpush1.msra.mxu0 %v3902
        %4523 = vmatprep.subr.mxu0 0.0
        %4524 = vmatpush1.msra.mxu0 %v3903
        %4525 = vmatprep.subr.mxu0 0.0
        %4526 = vmatpush1.msra.mxu0 %v3904
        %4527 = vmatprep.subr.mxu0 0.0
        %4528 = vmatpush1.msra.mxu0 %v3905
        %4529 = vmatprep.subr.mxu0 0.0
        %4530 = vmatpush1.msra.mxu0 %v3906
        %4531 = vmatprep.subr.mxu0 0.0
        %4532 = vmatpush1.msra.mxu0 %v3907
        %4533 = vmatprep.subr.mxu0 0.0
        %4534 = vmatpush1.msra.mxu0 %v3908
        %4535 = vmatprep.subr.mxu0 0.0
        %4536 = vmatpush1.msra.mxu0 %v3909
        %4537 = vmatprep.mubr.f32.mxu0 %v4246
        %4538 = vmatmul.mubr.f32.gmra.mrb[0].mxu0 %v4239
        %v4539 = vpop.f32.mrb[0].mxu0
        %v4540 = vadd.f32 %v4470, %v4539
        %v4541 = vpop.f32.mrb[0].mxu0
        %4542 = vdwg.mxu0
        %4543 = vmatprep.subr.mxu0 0.0
        %4544 = vmatpush1.msra.mxu0 %v3910
        %4545 = vmatprep.subr.mxu0 0.0
        %4546 = vmatpush1.msra.mxu0 %v3911
        %4547 = vmatprep.subr.mxu0 0.0
        %4548 = vmatpush1.msra.mxu0 %v3912
        %4549 = vmatprep.subr.mxu0 0.0
        %4550 = vmatpush1.msra.mxu0 %v3913
        %4551 = vmatprep.subr.mxu0 0.0
        %4552 = vmatpush1.msra.mxu0 %v3914
        %4553 = vmatprep.subr.mxu0 0.0
        %4554 = vmatpush1.msra.mxu0 %v3915
        %4555 = vmatprep.subr.mxu0 0.0
        %4556 = vmatpush1.msra.mxu0 %v3916
        %4557 = vmatprep.subr.mxu0 0.0
        %4558 = vmatpush1.msra.mxu0 %v3917
        %4559 = vmatprep.subr.mxu0 0.0
        %4560 = vmatpush1.msra.mxu0 %v3918
        %4561 = vmatprep.subr.mxu0 0.0
        %4562 = vmatpush1.msra.mxu0 %v3919
        %4563 = vmatprep.subr.mxu0 0.0
        %4564 = vmatpush1.msra.mxu0 %v3920
        %4565 = vmatprep.subr.mxu0 0.0
        %4566 = vmatpush1.msra.mxu0 %v3921
        %4567 = vmatprep.subr.mxu0 0.0
        %4568 = vmatpush1.msra.mxu0 %v3922
        %4569 = vmatprep.subr.mxu0 0.0
        %4570 = vmatpush1.msra.mxu0 %v3923
        %4571 = vmatprep.subr.mxu0 0.0
        %4572 = vmatpush1.msra.mxu0 %v3924
        %4573 = vmatprep.subr.mxu0 0.0
        %4574 = vmatpush1.msra.mxu0 %v3925
        %4575 = vmatprep.subr.mxu0 0.0
        %4576 = vmatpush1.msra.mxu0 %v3926
        %4577 = vmatprep.subr.mxu0 0.0
        %4578 = vmatpush1.msra.mxu0 %v3927
        %4579 = vmatprep.subr.mxu0 0.0
        %4580 = vmatpush1.msra.mxu0 %v3928
        %4581 = vmatprep.subr.mxu0 0.0
        %4582 = vmatpush1.msra.mxu0 %v3929
        %4583 = vmatprep.subr.mxu0 0.0
        %4584 = vmatpush1.msra.mxu0 %v3930
        %4585 = vmatprep.subr.mxu0 0.0
        %4586 = vmatpush1.msra.mxu0 %v3931
        %4587 = vmatprep.subr.mxu0 0.0
        %4588 = vmatpush1.msra.mxu0 %v3932
        %4589 = vmatprep.subr.mxu0 0.0
        %4590 = vmatpush1.msra.mxu0 %v3933
        %4591 = vmatprep.subr.mxu0 0.0
        %4592 = vmatpush1.msra.mxu0 %v3934
        %4593 = vmatprep.subr.mxu0 0.0
        %4594 = vmatpush1.msra.mxu0 %v3935
        %4595 = vmatprep.subr.mxu0 0.0
        %4596 = vmatpush1.msra.mxu0 %v3936
        %4597 = vmatprep.subr.mxu0 0.0
        %4598 = vmatpush1.msra.mxu0 %v3937
        %4599 = vmatprep.subr.mxu0 0.0
        %4600 = vmatpush1.msra.mxu0 %v3938
        %4601 = vmatprep.subr.mxu0 0.0
        %4602 = vmatpush1.msra.mxu0 %v3939
        %4603 = vmatprep.subr.mxu0 0.0
        %4604 = vmatpush1.msra.mxu0 %v3940
        %4605 = vmatprep.subr.mxu0 0.0
        %4606 = vmatpush1.msra.mxu0 %v3941
        %4607 = vmatprep.mubr.f32.mxu0 %v4260
        %4608 = vmatmul.mubr.f32.gmra.mrb[0].mxu0 %v4253
        %v4609 = vpop.f32.mrb[0].mxu0
        %v4610 = vadd.f32 %v4540, %v4609
        %v4611 = vpop.f32.mrb[0].mxu0
        %4612 = vdwg.mxu0
        %4613 = vmatprep.subr.mxu0 0.0
        %4614 = vmatpush1.msra.mxu0 %v3942
        %4615 = vmatprep.subr.mxu0 0.0
        %4616 = vmatpush1.msra.mxu0 %v3943
        %4617 = vmatprep.subr.mxu0 0.0
        %4618 = vmatpush1.msra.mxu0 %v3944
        %4619 = vmatprep.subr.mxu0 0.0
        %4620 = vmatpush1.msra.mxu0 %v3945
        %4621 = vmatprep.subr.mxu0 0.0
        %4622 = vmatpush1.msra.mxu0 %v3946
        %4623 = vmatprep.subr.mxu0 0.0
        %4624 = vmatpush1.msra.mxu0 %v3947
        %4625 = vmatprep.subr.mxu0 0.0
        %4626 = vmatpush1.msra.mxu0 %v3948
        %4627 = vmatprep.subr.mxu0 0.0
        %4628 = vmatpush1.msra.mxu0 %v3949
        %4629 = vmatprep.subr.mxu0 0.0
        %4630 = vmatpush1.msra.mxu0 %v3950
        %4631 = vmatprep.subr.mxu0 0.0
        %4632 = vmatpush1.msra.mxu0 %v3951
        %4633 = vmatprep.subr.mxu0 0.0
        %4634 = vmatpush1.msra.mxu0 %v3952
        %4635 = vmatprep.subr.mxu0 0.0
        %4636 = vmatpush1.msra.mxu0 %v3953
        %4637 = vmatprep.subr.mxu0 0.0
        %4638 = vmatpush1.msra.mxu0 %v3954
        %4639 = vmatprep.subr.mxu0 0.0
        %4640 = vmatpush1.msra.mxu0 %v3955
        %4641 = vmatprep.subr.mxu0 0.0
        %4642 = vmatpush1.msra.mxu0 %v3956
        %4643 = vmatprep.subr.mxu0 0.0
        %4644 = vmatpush1.msra.mxu0 %v3957
        %4645 = vmatprep.subr.mxu0 0.0
        %4646 = vmatpush1.msra.mxu0 %v3958
        %4647 = vmatprep.subr.mxu0 0.0
        %4648 = vmatpush1.msra.mxu0 %v3959
        %4649 = vmatprep.subr.mxu0 0.0
        %4650 = vmatpush1.msra.mxu0 %v3960
        %4651 = vmatprep.subr.mxu0 0.0
        %4652 = vmatpush1.msra.mxu0 %v3961
        %4653 = vmatprep.subr.mxu0 0.0
        %4654 = vmatpush1.msra.mxu0 %v3962
        %4655 = vmatprep.subr.mxu0 0.0
        %4656 = vmatpush1.msra.mxu0 %v3963
        %4657 = vmatprep.subr.mxu0 0.0
        %4658 = vmatpush1.msra.mxu0 %v3964
        %4659 = vmatprep.subr.mxu0 0.0
        %4660 = vmatpush1.msra.mxu0 %v3965
        %4661 = vmatprep.subr.mxu0 0.0
        %4662 = vmatpush1.msra.mxu0 %v3966
        %4663 = vmatprep.subr.mxu0 0.0
        %4664 = vmatpush1.msra.mxu0 %v3967
        %4665 = vmatprep.subr.mxu0 0.0
        %4666 = vmatpush1.msra.mxu0 %v3968
        %4667 = vmatprep.subr.mxu0 0.0
        %4668 = vmatpush1.msra.mxu0 %v3969
        %4669 = vmatprep.subr.mxu0 0.0
        %4670 = vmatpush1.msra.mxu0 %v3970
        %4671 = vmatprep.subr.mxu0 0.0
        %4672 = vmatpush1.msra.mxu0 %v3971
        %4673 = vmatprep.subr.mxu0 0.0
        %4674 = vmatpush1.msra.mxu0 %v3972
        %4675 = vmatprep.subr.mxu0 0.0
        %4676 = vmatpush1.msra.mxu0 %v3973
        %4677 = vmatprep.mubr.f32.mxu0 %v4274
        %4678 = vmatmul.mubr.f32.gmra.mrb[0].mxu0 %v4267
        %v4679 = vpop.f32.mrb[0].mxu0
        %v4680 = vadd.f32 %v4610, %v4679
        %v4681 = vpop.f32.mrb[0].mxu0
        %4682 = vdwg.mxu0
        %4683 = vmatprep.subr.mxu0 0.0
        %4684 = vmatpush1.msra.mxu0 %v3974
        %4685 = vmatprep.subr.mxu0 0.0
        %4686 = vmatpush1.msra.mxu0 %v3975
        %4687 = vmatprep.subr.mxu0 0.0
        %4688 = vmatpush1.msra.mxu0 %v3976
        %4689 = vmatprep.subr.mxu0 0.0
        %4690 = vmatpush1.msra.mxu0 %v3977
        %4691 = vmatprep.subr.mxu0 0.0
        %4692 = vmatpush1.msra.mxu0 %v3978
        %4693 = vmatprep.subr.mxu0 0.0
        %4694 = vmatpush1.msra.mxu0 %v3979
        %4695 = vmatprep.subr.mxu0 0.0
        %4696 = vmatpush1.msra.mxu0 %v3980
        %4697 = vmatprep.subr.mxu0 0.0
        %4698 = vmatpush1.msra.mxu0 %v3981
        %4699 = vmatprep.subr.mxu0 0.0
        %4700 = vmatpush1.msra.mxu0 %v3982
        %4701 = vmatprep.subr.mxu0 0.0
        %4702 = vmatpush1.msra.mxu0 %v3983
        %4703 = vmatprep.subr.mxu0 0.0
        %4704 = vmatpush1.msra.mxu0 %v3984
        %4705 = vmatprep.subr.mxu0 0.0
        %4706 = vmatpush1.msra.mxu0 %v3985
        %4707 = vmatprep.subr.mxu0 0.0
        %4708 = vmatpush1.msra.mxu0 %v3986
        %4709 = vmatprep.subr.mxu0 0.0
        %4710 = vmatpush1.msra.mxu0 %v3987
        %4711 = vmatprep.subr.mxu0 0.0
        %4712 = vmatpush1.msra.mxu0 %v3988
        %4713 = vmatprep.subr.mxu0 0.0
        %4714 = vmatpush1.msra.mxu0 %v3989
        %4715 = vmatprep.subr.mxu0 0.0
        %4716 = vmatpush1.msra.mxu0 %v3990
        %4717 = vmatprep.subr.mxu0 0.0
        %4718 = vmatpush1.msra.mxu0 %v3991
        %4719 = vmatprep.subr.mxu0 0.0
        %4720 = vmatpush1.msra.mxu0 %v3992
        %4721 = vmatprep.subr.mxu0 0.0
        %4722 = vmatpush1.msra.mxu0 %v3993
        %4723 = vmatprep.subr.mxu0 0.0
        %4724 = vmatpush1.msra.mxu0 %v3994
        %4725 = vmatprep.subr.mxu0 0.0
        %4726 = vmatpush1.msra.mxu0 %v3995
        %4727 = vmatprep.subr.mxu0 0.0
        %4728 = vmatpush1.msra.mxu0 %v3996
        %4729 = vmatprep.subr.mxu0 0.0
        %4730 = vmatpush1.msra.mxu0 %v3997
        %4731 = vmatprep.subr.mxu0 0.0
        %4732 = vmatpush1.msra.mxu0 %v3998
        %4733 = vmatprep.subr.mxu0 0.0
        %4734 = vmatpush1.msra.mxu0 %v3999
        %4735 = vmatprep.subr.mxu0 0.0
        %4736 = vmatpush1.msra.mxu0 %v4000
        %4737 = vmatprep.subr.mxu0 0.0
        %4738 = vmatpush1.msra.mxu0 %v4001
        %4739 = vmatprep.subr.mxu0 0.0
        %4740 = vmatpush1.msra.mxu0 %v4002
        %4741 = vmatprep.subr.mxu0 0.0
        %4742 = vmatpush1.msra.mxu0 %v4003
        %4743 = vmatprep.subr.mxu0 0.0
        %4744 = vmatpush1.msra.mxu0 %v4004
        %4745 = vmatprep.subr.mxu0 0.0
        %4746 = vmatpush1.msra.mxu0 %v4005
        %4747 = vmatprep.mubr.f32.mxu0 %v4288
        %4748 = vmatmul.mubr.f32.gmra.mrb[0].mxu0 %v4281
        %v4749 = vpop.f32.mrb[0].mxu0
        %v4750 = vadd.f32 %v4680, %v4749
        %v4751 = vpop.f32.mrb[0].mxu0
        %4752 = vdwg.mxu0
        %4753 = vmatprep.subr.mxu0 0.0
        %4754 = vmatpush1.msra.mxu0 %v4006
        %4755 = vmatprep.subr.mxu0 0.0
        %4756 = vmatpush1.msra.mxu0 %v4007
        %4757 = vmatprep.subr.mxu0 0.0
        %4758 = vmatpush1.msra.mxu0 %v4008
        %4759 = vmatprep.subr.mxu0 0.0
        %4760 = vmatpush1.msra.mxu0 %v4009
        %4761 = vmatprep.subr.mxu0 0.0
        %4762 = vmatpush1.msra.mxu0 %v4010
        %4763 = vmatprep.subr.mxu0 0.0
        %4764 = vmatpush1.msra.mxu0 %v4011
        %4765 = vmatprep.subr.mxu0 0.0
        %4766 = vmatpush1.msra.mxu0 %v4012
        %4767 = vmatprep.subr.mxu0 0.0
        %4768 = vmatpush1.msra.mxu0 %v4013
        %4769 = vmatprep.subr.mxu0 0.0
        %4770 = vmatpush1.msra.mxu0 %v4014
        %4771 = vmatprep.subr.mxu0 0.0
        %4772 = vmatpush1.msra.mxu0 %v4015
        %4773 = vmatprep.subr.mxu0 0.0
        %4774 = vmatpush1.msra.mxu0 %v4016
        %4775 = vmatprep.subr.mxu0 0.0
        %4776 = vmatpush1.msra.mxu0 %v4017
        %4777 = vmatprep.subr.mxu0 0.0
        %4778 = vmatpush1.msra.mxu0 %v4018
        %4779 = vmatprep.subr.mxu0 0.0
        %4780 = vmatpush1.msra.mxu0 %v4019
        %4781 = vmatprep.subr.mxu0 0.0
        %4782 = vmatpush1.msra.mxu0 %v4020
        %4783 = vmatprep.subr.mxu0 0.0
        %4784 = vmatpush1.msra.mxu0 %v4021
        %4785 = vmatprep.subr.mxu0 0.0
        %4786 = vmatpush1.msra.mxu0 %v4022
        %4787 = vmatprep.subr.mxu0 0.0
        %4788 = vmatpush1.msra.mxu0 %v4023
        %4789 = vmatprep.subr.mxu0 0.0
        %4790 = vmatpush1.msra.mxu0 %v4024
        %4791 = vmatprep.subr.mxu0 0.0
        %4792 = vmatpush1.msra.mxu0 %v4025
        %4793 = vmatprep.subr.mxu0 0.0
        %4794 = vmatpush1.msra.mxu0 %v4026
        %4795 = vmatprep.subr.mxu0 0.0
        %4796 = vmatpush1.msra.mxu0 %v4027
        %4797 = vmatprep.subr.mxu0 0.0
        %4798 = vmatpush1.msra.mxu0 %v4028
        %4799 = vmatprep.subr.mxu0 0.0
        %4800 = vmatpush1.msra.mxu0 %v4029
        %4801 = vmatprep.subr.mxu0 0.0
        %4802 = vmatpush1.msra.mxu0 %v4030
        %4803 = vmatprep.subr.mxu0 0.0
        %4804 = vmatpush1.msra.mxu0 %v4031
        %4805 = vmatprep.subr.mxu0 0.0
        %4806 = vmatpush1.msra.mxu0 %v4032
        %4807 = vmatprep.subr.mxu0 0.0
        %4808 = vmatpush1.msra.mxu0 %v4033
        %4809 = vmatprep.subr.mxu0 0.0
        %4810 = vmatpush1.msra.mxu0 %v4034
        %4811 = vmatprep.subr.mxu0 0.0
        %4812 = vmatpush1.msra.mxu0 %v4035
        %4813 = vmatprep.subr.mxu0 0.0
        %4814 = vmatpush1.msra.mxu0 %v4036
        %4815 = vmatprep.subr.mxu0 0.0
        %4816 = vmatpush1.msra.mxu0 %v4037
        %4817 = vmatprep.mubr.f32.mxu0 %v4302
        %4818 = vmatmul.mubr.f32.gmra.mrb[0].mxu0 %v4295
        %v4819 = vpop.f32.mrb[0].mxu0
        %v4820 = vadd.f32 %v4750, %v4819
        %v4821 = vpop.f32.mrb[0].mxu0
        %4822 = vdwg.mxu0
        %4823 = vmatprep.subr.mxu0 0.0
        %4824 = vmatpush1.msra.mxu0 %v4038
        %4825 = vmatprep.subr.mxu0 0.0
        %4826 = vmatpush1.msra.mxu0 %v4039
        %4827 = vmatprep.subr.mxu0 0.0
        %4828 = vmatpush1.msra.mxu0 %v4040
        %4829 = vmatprep.subr.mxu0 0.0
        %4830 = vmatpush1.msra.mxu0 %v4041
        %4831 = vmatprep.subr.mxu0 0.0
        %4832 = vmatpush1.msra.mxu0 %v4042
        %4833 = vmatprep.subr.mxu0 0.0
        %4834 = vmatpush1.msra.mxu0 %v4043
        %4835 = vmatprep.subr.mxu0 0.0
        %4836 = vmatpush1.msra.mxu0 %v4044
        %4837 = vmatprep.subr.mxu0 0.0
        %4838 = vmatpush1.msra.mxu0 %v4045
        %4839 = vmatprep.subr.mxu0 0.0
        %4840 = vmatpush1.msra.mxu0 %v4046
        %4841 = vmatprep.subr.mxu0 0.0
        %4842 = vmatpush1.msra.mxu0 %v4047
        %4843 = vmatprep.subr.mxu0 0.0
        %4844 = vmatpush1.msra.mxu0 %v4048
        %4845 = vmatprep.subr.mxu0 0.0
        %4846 = vmatpush1.msra.mxu0 %v4049
        %4847 = vmatprep.subr.mxu0 0.0
        %4848 = vmatpush1.msra.mxu0 %v4050
        %4849 = vmatprep.subr.mxu0 0.0
        %4850 = vmatpush1.msra.mxu0 %v4051
        %4851 = vmatprep.subr.mxu0 0.0
        %4852 = vmatpush1.msra.mxu0 %v4052
        %4853 = vmatprep.subr.mxu0 0.0
        %4854 = vmatpush1.msra.mxu0 %v4053
        %4855 = vmatprep.subr.mxu0 0.0
        %4856 = vmatpush1.msra.mxu0 %v4054
        %4857 = vmatprep.subr.mxu0 0.0
        %4858 = vmatpush1.msra.mxu0 %v4055
        %4859 = vmatprep.subr.mxu0 0.0
        %4860 = vmatpush1.msra.mxu0 %v4056
        %4861 = vmatprep.subr.mxu0 0.0
        %4862 = vmatpush1.msra.mxu0 %v4057
        %4863 = vmatprep.subr.mxu0 0.0
        %4864 = vmatpush1.msra.mxu0 %v4058
        %4865 = vmatprep.subr.mxu0 0.0
        %4866 = vmatpush1.msra.mxu0 %v4059
        %4867 = vmatprep.subr.mxu0 0.0
        %4868 = vmatpush1.msra.mxu0 %v4060
        %4869 = vmatprep.subr.mxu0 0.0
        %4870 = vmatpush1.msra.mxu0 %v4061
        %4871 = vmatprep.subr.mxu0 0.0
        %4872 = vmatpush1.msra.mxu0 %v4062
        %4873 = vmatprep.subr.mxu0 0.0
        %4874 = vmatpush1.msra.mxu0 %v4063
        %4875 = vmatprep.subr.mxu0 0.0
        %4876 = vmatpush1.msra.mxu0 %v4064
        %4877 = vmatprep.subr.mxu0 0.0
        %4878 = vmatpush1.msra.mxu0 %v4065
        %4879 = vmatprep.subr.mxu0 0.0
        %4880 = vmatpush1.msra.mxu0 %v4066
        %4881 = vmatprep.subr.mxu0 0.0
        %4882 = vmatpush1.msra.mxu0 %v4067
        %4883 = vmatprep.subr.mxu0 0.0
        %4884 = vmatpush1.msra.mxu0 %v4068
        %4885 = vmatprep.subr.mxu0 0.0
        %4886 = vmatpush1.msra.mxu0 %v4069
        %4887 = vmatprep.mubr.f32.mxu0 %v4316
        %4888 = vmatmul.mubr.f32.gmra.mrb[0].mxu0 %v4309
        %v4889 = vpop.f32.mrb[0].mxu0
        %v4890 = vadd.f32 %v4820, %v4889
        %v4891 = vpop.f32.mrb[0].mxu0
        %4892 = vdwg.mxu0
        %v5021 = vsel %vm4198, %v892, %v748
        %v5022 = vsel %vm4200, %v1036, %v5021
        %v5023 = vsel %vm4202, %v1180, %v5022
        %v5024 = vsel %vm4204, %v1324, %v5023
        %v5025 = vsel %vm4206, %v1468, %v5024
        %v5026 = vsel %vm4208, %v1612, %v5025
        %v5027 = vsel %vm4210, %v1756, %v5026
        %v5028 = vsel %vm4198, %v901, %v757
        %v5029 = vsel %vm4200, %v1045, %v5028
        %v5030 = vsel %vm4202, %v1189, %v5029
        %v5031 = vsel %vm4204, %v1333, %v5030
        %v5032 = vsel %vm4206, %v1477, %v5031
        %v5033 = vsel %vm4208, %v1621, %v5032
        %v5034 = vsel %vm4210, %v1765, %v5033
        %v5035 = vsel %vm4198, %v910, %v766
        %v5036 = vsel %vm4200, %v1054, %v5035
        %v5037 = vsel %vm4202, %v1198, %v5036
        %v5038 = vsel %vm4204, %v1342, %v5037
        %v5039 = vsel %vm4206, %v1486, %v5038
        %v5040 = vsel %vm4208, %v1630, %v5039
        %v5041 = vsel %vm4210, %v1774, %v5040
        %v5042 = vsel %vm4198, %v919, %v775
        %v5043 = vsel %vm4200, %v1063, %v5042
        %v5044 = vsel %vm4202, %v1207, %v5043
        %v5045 = vsel %vm4204, %v1351, %v5044
        %v5046 = vsel %vm4206, %v1495, %v5045
        %v5047 = vsel %vm4208, %v1639, %v5046
        %v5048 = vsel %vm4210, %v1783, %v5047
        %v5049 = vsel %vm4198, %v928, %v784
        %v5050 = vsel %vm4200, %v1072, %v5049
        %v5051 = vsel %vm4202, %v1216, %v5050
        %v5052 = vsel %vm4204, %v1360, %v5051
        %v5053 = vsel %vm4206, %v1504, %v5052
        %v5054 = vsel %vm4208, %v1648, %v5053
        %v5055 = vsel %vm4210, %v1792, %v5054
        %v5056 = vsel %vm4198, %v937, %v793
        %v5057 = vsel %vm4200, %v1081, %v5056
        %v5058 = vsel %vm4202, %v1225, %v5057
        %v5059 = vsel %vm4204, %v1369, %v5058
        %v5060 = vsel %vm4206, %v1513, %v5059
        %v5061 = vsel %vm4208, %v1657, %v5060
        %v5062 = vsel %vm4210, %v1801, %v5061
        %v5063 = vsel %vm4198, %v946, %v802
        %v5064 = vsel %vm4200, %v1090, %v5063
        %v5065 = vsel %vm4202, %v1234, %v5064
        %v5066 = vsel %vm4204, %v1378, %v5065
        %v5067 = vsel %vm4206, %v1522, %v5066
        %v5068 = vsel %vm4208, %v1666, %v5067
        %v5069 = vsel %vm4210, %v1810, %v5068
        %v5070 = vsel %vm4198, %v955, %v811
        %v5071 = vsel %vm4200, %v1099, %v5070
        %v5072 = vsel %vm4202, %v1243, %v5071
        %v5073 = vsel %vm4204, %v1387, %v5072
        %v5074 = vsel %vm4206, %v1531, %v5073
        %v5075 = vsel %vm4208, %v1675, %v5074
        %v5076 = vsel %vm4210, %v1819, %v5075
        %v5077 = vsel %vm4198, %v964, %v820
        %v5078 = vsel %vm4200, %v1108, %v5077
        %v5079 = vsel %vm4202, %v1252, %v5078
        %v5080 = vsel %vm4204, %v1396, %v5079
        %v5081 = vsel %vm4206, %v1540, %v5080
        %v5082 = vsel %vm4208, %v1684, %v5081
        %v5083 = vsel %vm4210, %v1828, %v5082
        %v5084 = vsel %vm4198, %v973, %v829
        %v5085 = vsel %vm4200, %v1117, %v5084
        %v5086 = vsel %vm4202, %v1261, %v5085
        %v5087 = vsel %vm4204, %v1405, %v5086
        %v5088 = vsel %vm4206, %v1549, %v5087
        %v5089 = vsel %vm4208, %v1693, %v5088
        %v5090 = vsel %vm4210, %v1837, %v5089
        %v5091 = vsel %vm4198, %v982, %v838
        %v5092 = vsel %vm4200, %v1126, %v5091
        %v5093 = vsel %vm4202, %v1270, %v5092
        %v5094 = vsel %vm4204, %v1414, %v5093
        %v5095 = vsel %vm4206, %v1558, %v5094
        %v5096 = vsel %vm4208, %v1702, %v5095
        %v5097 = vsel %vm4210, %v1846, %v5096
        %v5098 = vsel %vm4198, %v991, %v847
        %v5099 = vsel %vm4200, %v1135, %v5098
        %v5100 = vsel %vm4202, %v1279, %v5099
        %v5101 = vsel %vm4204, %v1423, %v5100
        %v5102 = vsel %vm4206, %v1567, %v5101
        %v5103 = vsel %vm4208, %v1711, %v5102
        %v5104 = vsel %vm4210, %v1855, %v5103
        %v5105 = vsel %vm4198, %v1000, %v856
        %v5106 = vsel %vm4200, %v1144, %v5105
        %v5107 = vsel %vm4202, %v1288, %v5106
        %v5108 = vsel %vm4204, %v1432, %v5107
        %v5109 = vsel %vm4206, %v1576, %v5108
        %v5110 = vsel %vm4208, %v1720, %v5109
        %v5111 = vsel %vm4210, %v1864, %v5110
        %v5112 = vsel %vm4198, %v1009, %v865
        %v5113 = vsel %vm4200, %v1153, %v5112
        %v5114 = vsel %vm4202, %v1297, %v5113
        %v5115 = vsel %vm4204, %v1441, %v5114
        %v5116 = vsel %vm4206, %v1585, %v5115
        %v5117 = vsel %vm4208, %v1729, %v5116
        %v5118 = vsel %vm4210, %v1873, %v5117
        %v5119 = vsel %vm4198, %v1018, %v874
        %v5120 = vsel %vm4200, %v1162, %v5119
        %v5121 = vsel %vm4202, %v1306, %v5120
        %v5122 = vsel %vm4204, %v1450, %v5121
        %v5123 = vsel %vm4206, %v1594, %v5122
        %v5124 = vsel %vm4208, %v1738, %v5123
        %v5125 = vsel %vm4210, %v1882, %v5124
        %v5126 = vsel %vm4198, %v1027, %v883
        %v5127 = vsel %vm4200, %v1171, %v5126
        %v5128 = vsel %vm4202, %v1315, %v5127
        %v5129 = vsel %vm4204, %v1459, %v5128
        %v5130 = vsel %vm4206, %v1603, %v5129
        %v5131 = vsel %vm4208, %v1747, %v5130
        %v5132 = vsel %vm4210, %v1891, %v5131
        %5149 = vmatprep.subr.mxu0 0.0
        %5150 = vmatpush1.msra.mxu0 %v1892
        %5151 = vmatprep.subr.mxu0 0.0
        %5152 = vmatpush1.msra.mxu0 %v1893
        %5153 = vmatprep.subr.mxu0 0.0
        %5154 = vmatpush1.msra.mxu0 %v1894
        %5155 = vmatprep.subr.mxu0 0.0
        %5156 = vmatpush1.msra.mxu0 %v1895
        %5157 = vmatprep.subr.mxu0 0.0
        %5158 = vmatpush1.msra.mxu0 %v1896
        %5159 = vmatprep.subr.mxu0 0.0
        %5160 = vmatpush1.msra.mxu0 %v1897
        %5161 = vmatprep.subr.mxu0 0.0
        %5162 = vmatpush1.msra.mxu0 %v1898
        %5163 = vmatprep.subr.mxu0 0.0
        %5164 = vmatpush1.msra.mxu0 %v1899
        %5165 = vmatprep.subr.mxu0 0.0
        %5166 = vmatpush1.msra.mxu0 %v1900
        %5167 = vmatprep.subr.mxu0 0.0
        %5168 = vmatpush1.msra.mxu0 %v1901
        %5169 = vmatprep.subr.mxu0 0.0
        %5170 = vmatpush1.msra.mxu0 %v1902
        %5171 = vmatprep.subr.mxu0 0.0
        %5172 = vmatpush1.msra.mxu0 %v1903
        %5173 = vmatprep.subr.mxu0 0.0
        %5174 = vmatpush1.msra.mxu0 %v1904
        %5175 = vmatprep.subr.mxu0 0.0
        %5176 = vmatpush1.msra.mxu0 %v1905
        %5177 = vmatprep.subr.mxu0 0.0
        %5178 = vmatpush1.msra.mxu0 %v1906
        %5179 = vmatprep.subr.mxu0 0.0
        %5180 = vmatpush1.msra.mxu0 %v1907
        %5181 = vmatprep.subr.mxu0 0.0
        %5182 = vmatpush1.msra.mxu0 %v1908
        %5183 = vmatprep.subr.mxu0 0.0
        %5184 = vmatpush1.msra.mxu0 %v1909
        %5185 = vmatprep.subr.mxu0 0.0
        %5186 = vmatpush1.msra.mxu0 %v1910
        %5187 = vmatprep.subr.mxu0 0.0
        %5188 = vmatpush1.msra.mxu0 %v1911
        %5189 = vmatprep.subr.mxu0 0.0
        %5190 = vmatpush1.msra.mxu0 %v1912
        %5191 = vmatprep.subr.mxu0 0.0
        %5192 = vmatpush1.msra.mxu0 %v1913
        %5193 = vmatprep.subr.mxu0 0.0
        %5194 = vmatpush1.msra.mxu0 %v1914
        %5195 = vmatprep.subr.mxu0 0.0
        %5196 = vmatpush1.msra.mxu0 %v1915
        %5197 = vmatprep.subr.mxu0 0.0
        %5198 = vmatpush1.msra.mxu0 %v1916
        %5199 = vmatprep.subr.mxu0 0.0
        %5200 = vmatpush1.msra.mxu0 %v1917
        %5201 = vmatprep.subr.mxu0 0.0
        %5202 = vmatpush1.msra.mxu0 %v1918
        %5203 = vmatprep.subr.mxu0 0.0
        %5204 = vmatpush1.msra.mxu0 %v1919
        %5205 = vmatprep.subr.mxu0 0.0
        %5206 = vmatpush1.msra.mxu0 %v1920
        %5207 = vmatprep.subr.mxu0 0.0
        %5208 = vmatpush1.msra.mxu0 %v1921
        %5209 = vmatprep.subr.mxu0 0.0
        %5210 = vmatpush1.msra.mxu0 %v1922
        %5211 = vmatprep.subr.mxu0 0.0
        %5212 = vmatpush1.msra.mxu0 %v1923
        %5213 = vmatprep.mubr.f32.mxu0 %v5034
        %5214 = vmatmul.mubr.f32.gmra.mrb[0].mxu0 %v5027
        %v5215 = vpop.f32.mrb[0].mxu0
        %v5216 = vadd.f32 %v4890, %v5215
        %v5217 = vpop.f32.mrb[0].mxu0
        %5218 = vdwg.mxu0
        %5219 = vmatprep.subr.mxu0 0.0
        %5220 = vmatpush1.msra.mxu0 %v1924
        %5221 = vmatprep.subr.mxu0 0.0
        %5222 = vmatpush1.msra.mxu0 %v1925
        %5223 = vmatprep.subr.mxu0 0.0
        %5224 = vmatpush1.msra.mxu0 %v1926
        %5225 = vmatprep.subr.mxu0 0.0
        %5226 = vmatpush1.msra.mxu0 %v1927
        %5227 = vmatprep.subr.mxu0 0.0
        %5228 = vmatpush1.msra.mxu0 %v1928
        %5229 = vmatprep.subr.mxu0 0.0
        %5230 = vmatpush1.msra.mxu0 %v1929
        %5231 = vmatprep.subr.mxu0 0.0
        %5232 = vmatpush1.msra.mxu0 %v1930
        %5233 = vmatprep.subr.mxu0 0.0
        %5234 = vmatpush1.msra.mxu0 %v1931
        %5235 = vmatprep.subr.mxu0 0.0
        %5236 = vmatpush1.msra.mxu0 %v1932
        %5237 = vmatprep.subr.mxu0 0.0
        %5238 = vmatpush1.msra.mxu0 %v1933
        %5239 = vmatprep.subr.mxu0 0.0
        %5240 = vmatpush1.msra.mxu0 %v1934
        %5241 = vmatprep.subr.mxu0 0.0
        %5242 = vmatpush1.msra.mxu0 %v1935
        %5243 = vmatprep.subr.mxu0 0.0
        %5244 = vmatpush1.msra.mxu0 %v1936
        %5245 = vmatprep.subr.mxu0 0.0
        %5246 = vmatpush1.msra.mxu0 %v1937
        %5247 = vmatprep.subr.mxu0 0.0
        %5248 = vmatpush1.msra.mxu0 %v1938
        %5249 = vmatprep.subr.mxu0 0.0
        %5250 = vmatpush1.msra.mxu0 %v1939
        %5251 = vmatprep.subr.mxu0 0.0
        %5252 = vmatpush1.msra.mxu0 %v1940
        %5253 = vmatprep.subr.mxu0 0.0
        %5254 = vmatpush1.msra.mxu0 %v1941
        %5255 = vmatprep.subr.mxu0 0.0
        %5256 = vmatpush1.msra.mxu0 %v1942
        %5257 = vmatprep.subr.mxu0 0.0
        %5258 = vmatpush1.msra.mxu0 %v1943
        %5259 = vmatprep.subr.mxu0 0.0
        %5260 = vmatpush1.msra.mxu0 %v1944
        %5261 = vmatprep.subr.mxu0 0.0
        %5262 = vmatpush1.msra.mxu0 %v1945
        %5263 = vmatprep.subr.mxu0 0.0
        %5264 = vmatpush1.msra.mxu0 %v1946
        %5265 = vmatprep.subr.mxu0 0.0
        %5266 = vmatpush1.msra.mxu0 %v1947
        %5267 = vmatprep.subr.mxu0 0.0
        %5268 = vmatpush1.msra.mxu0 %v1948
        %5269 = vmatprep.subr.mxu0 0.0
        %5270 = vmatpush1.msra.mxu0 %v1949
        %5271 = vmatprep.subr.mxu0 0.0
        %5272 = vmatpush1.msra.mxu0 %v1950
        %5273 = vmatprep.subr.mxu0 0.0
        %5274 = vmatpush1.msra.mxu0 %v1951
        %5275 = vmatprep.subr.mxu0 0.0
        %5276 = vmatpush1.msra.mxu0 %v1952
        %5277 = vmatprep.subr.mxu0 0.0
        %5278 = vmatpush1.msra.mxu0 %v1953
        %5279 = vmatprep.subr.mxu0 0.0
        %5280 = vmatpush1.msra.mxu0 %v1954
        %5281 = vmatprep.subr.mxu0 0.0
        %5282 = vmatpush1.msra.mxu0 %v1955
        %5283 = vmatprep.mubr.f32.mxu0 %v5048
        %5284 = vmatmul.mubr.f32.gmra.mrb[0].mxu0 %v5041
        %v5285 = vpop.f32.mrb[0].mxu0
        %v5286 = vadd.f32 %v5216, %v5285
        %v5287 = vpop.f32.mrb[0].mxu0
        %5288 = vdwg.mxu0
        %5289 = vmatprep.subr.mxu0 0.0
        %5290 = vmatpush1.msra.mxu0 %v1956
        %5291 = vmatprep.subr.mxu0 0.0
        %5292 = vmatpush1.msra.mxu0 %v1957
        %5293 = vmatprep.subr.mxu0 0.0
        %5294 = vmatpush1.msra.mxu0 %v1958
        %5295 = vmatprep.subr.mxu0 0.0
        %5296 = vmatpush1.msra.mxu0 %v1959
        %5297 = vmatprep.subr.mxu0 0.0
        %5298 = vmatpush1.msra.mxu0 %v1960
        %5299 = vmatprep.subr.mxu0 0.0
        %5300 = vmatpush1.msra.mxu0 %v1961
        %5301 = vmatprep.subr.mxu0 0.0
        %5302 = vmatpush1.msra.mxu0 %v1962
        %5303 = vmatprep.subr.mxu0 0.0
        %5304 = vmatpush1.msra.mxu0 %v1963
        %5305 = vmatprep.subr.mxu0 0.0
        %5306 = vmatpush1.msra.mxu0 %v1964
        %5307 = vmatprep.subr.mxu0 0.0
        %5308 = vmatpush1.msra.mxu0 %v1965
        %5309 = vmatprep.subr.mxu0 0.0
        %5310 = vmatpush1.msra.mxu0 %v1966
        %5311 = vmatprep.subr.mxu0 0.0
        %5312 = vmatpush1.msra.mxu0 %v1967
        %5313 = vmatprep.subr.mxu0 0.0
        %5314 = vmatpush1.msra.mxu0 %v1968
        %5315 = vmatprep.subr.mxu0 0.0
        %5316 = vmatpush1.msra.mxu0 %v1969
        %5317 = vmatprep.subr.mxu0 0.0
        %5318 = vmatpush1.msra.mxu0 %v1970
        %5319 = vmatprep.subr.mxu0 0.0
        %5320 = vmatpush1.msra.mxu0 %v1971
        %5321 = vmatprep.subr.mxu0 0.0
        %5322 = vmatpush1.msra.mxu0 %v1972
        %5323 = vmatprep.subr.mxu0 0.0
        %5324 = vmatpush1.msra.mxu0 %v1973
        %5325 = vmatprep.subr.mxu0 0.0
        %5326 = vmatpush1.msra.mxu0 %v1974
        %5327 = vmatprep.subr.mxu0 0.0
        %5328 = vmatpush1.msra.mxu0 %v1975
        %5329 = vmatprep.subr.mxu0 0.0
        %5330 = vmatpush1.msra.mxu0 %v1976
        %5331 = vmatprep.subr.mxu0 0.0
        %5332 = vmatpush1.msra.mxu0 %v1977
        %5333 = vmatprep.subr.mxu0 0.0
        %5334 = vmatpush1.msra.mxu0 %v1978
        %5335 = vmatprep.subr.mxu0 0.0
        %5336 = vmatpush1.msra.mxu0 %v1979
        %5337 = vmatprep.subr.mxu0 0.0
        %5338 = vmatpush1.msra.mxu0 %v1980
        %5339 = vmatprep.subr.mxu0 0.0
        %5340 = vmatpush1.msra.mxu0 %v1981
        %5341 = vmatprep.subr.mxu0 0.0
        %5342 = vmatpush1.msra.mxu0 %v1982
        %5343 = vmatprep.subr.mxu0 0.0
        %5344 = vmatpush1.msra.mxu0 %v1983
        %5345 = vmatprep.subr.mxu0 0.0
        %5346 = vmatpush1.msra.mxu0 %v1984
        %5347 = vmatprep.subr.mxu0 0.0
        %5348 = vmatpush1.msra.mxu0 %v1985
        %5349 = vmatprep.subr.mxu0 0.0
        %5350 = vmatpush1.msra.mxu0 %v1986
        %5351 = vmatprep.subr.mxu0 0.0
        %5352 = vmatpush1.msra.mxu0 %v1987
        %5353 = vmatprep.mubr.f32.mxu0 %v5062
        %5354 = vmatmul.mubr.f32.gmra.mrb[0].mxu0 %v5055
        %v5355 = vpop.f32.mrb[0].mxu0
        %v5356 = vadd.f32 %v5286, %v5355
        %v5357 = vpop.f32.mrb[0].mxu0
        %5358 = vdwg.mxu0
        %5359 = vmatprep.subr.mxu0 0.0
        %5360 = vmatpush1.msra.mxu0 %v1988
        %5361 = vmatprep.subr.mxu0 0.0
        %5362 = vmatpush1.msra.mxu0 %v1989
        %5363 = vmatprep.subr.mxu0 0.0
        %5364 = vmatpush1.msra.mxu0 %v1990
        %5365 = vmatprep.subr.mxu0 0.0
        %5366 = vmatpush1.msra.mxu0 %v1991
        %5367 = vmatprep.subr.mxu0 0.0
        %5368 = vmatpush1.msra.mxu0 %v1992
        %5369 = vmatprep.subr.mxu0 0.0
        %5370 = vmatpush1.msra.mxu0 %v1993
        %5371 = vmatprep.subr.mxu0 0.0
        %5372 = vmatpush1.msra.mxu0 %v1994
        %5373 = vmatprep.subr.mxu0 0.0
        %5374 = vmatpush1.msra.mxu0 %v1995
        %5375 = vmatprep.subr.mxu0 0.0
        %5376 = vmatpush1.msra.mxu0 %v1996
        %5377 = vmatprep.subr.mxu0 0.0
        %5378 = vmatpush1.msra.mxu0 %v1997
        %5379 = vmatprep.subr.mxu0 0.0
        %5380 = vmatpush1.msra.mxu0 %v1998
        %5381 = vmatprep.subr.mxu0 0.0
        %5382 = vmatpush1.msra.mxu0 %v1999
        %5383 = vmatprep.subr.mxu0 0.0
        %5384 = vmatpush1.msra.mxu0 %v2000
        %5385 = vmatprep.subr.mxu0 0.0
        %5386 = vmatpush1.msra.mxu0 %v2001
        %5387 = vmatprep.subr.mxu0 0.0
        %5388 = vmatpush1.msra.mxu0 %v2002
        %5389 = vmatprep.subr.mxu0 0.0
        %5390 = vmatpush1.msra.mxu0 %v2003
        %5391 = vmatprep.subr.mxu0 0.0
        %5392 = vmatpush1.msra.mxu0 %v2004
        %5393 = vmatprep.subr.mxu0 0.0
        %5394 = vmatpush1.msra.mxu0 %v2005
        %5395 = vmatprep.subr.mxu0 0.0
        %5396 = vmatpush1.msra.mxu0 %v2006
        %5397 = vmatprep.subr.mxu0 0.0
        %5398 = vmatpush1.msra.mxu0 %v2007
        %5399 = vmatprep.subr.mxu0 0.0
        %5400 = vmatpush1.msra.mxu0 %v2008
        %5401 = vmatprep.subr.mxu0 0.0
        %5402 = vmatpush1.msra.mxu0 %v2009
        %5403 = vmatprep.subr.mxu0 0.0
        %5404 = vmatpush1.msra.mxu0 %v2010
        %5405 = vmatprep.subr.mxu0 0.0
        %5406 = vmatpush1.msra.mxu0 %v2011
        %5407 = vmatprep.subr.mxu0 0.0
        %5408 = vmatpush1.msra.mxu0 %v2012
        %5409 = vmatprep.subr.mxu0 0.0
        %5410 = vmatpush1.msra.mxu0 %v2013
        %5411 = vmatprep.subr.mxu0 0.0
        %5412 = vmatpush1.msra.mxu0 %v2014
        %5413 = vmatprep.subr.mxu0 0.0
        %5414 = vmatpush1.msra.mxu0 %v2015
        %5415 = vmatprep.subr.mxu0 0.0
        %5416 = vmatpush1.msra.mxu0 %v2016
        %5417 = vmatprep.subr.mxu0 0.0
        %5418 = vmatpush1.msra.mxu0 %v2017
        %5419 = vmatprep.subr.mxu0 0.0
        %5420 = vmatpush1.msra.mxu0 %v2018
        %5421 = vmatprep.subr.mxu0 0.0
        %5422 = vmatpush1.msra.mxu0 %v2019
        %5423 = vmatprep.mubr.f32.mxu0 %v5076
        %5424 = vmatmul.mubr.f32.gmra.mrb[0].mxu0 %v5069
        %v5425 = vpop.f32.mrb[0].mxu0
        %v5426 = vadd.f32 %v5356, %v5425
        %v5427 = vpop.f32.mrb[0].mxu0
        %5428 = vdwg.mxu0
        %5429 = vmatprep.subr.mxu0 0.0
        %5430 = vmatpush1.msra.mxu0 %v2020
        %5431 = vmatprep.subr.mxu0 0.0
        %5432 = vmatpush1.msra.mxu0 %v2021
        %5433 = vmatprep.subr.mxu0 0.0
        %5434 = vmatpush1.msra.mxu0 %v2022
        %5435 = vmatprep.subr.mxu0 0.0
        %5436 = vmatpush1.msra.mxu0 %v2023
        %5437 = vmatprep.subr.mxu0 0.0
        %5438 = vmatpush1.msra.mxu0 %v2024
        %5439 = vmatprep.subr.mxu0 0.0
        %5440 = vmatpush1.msra.mxu0 %v2025
        %5441 = vmatprep.subr.mxu0 0.0
        %5442 = vmatpush1.msra.mxu0 %v2026
        %5443 = vmatprep.subr.mxu0 0.0
        %5444 = vmatpush1.msra.mxu0 %v2027
        %5445 = vmatprep.subr.mxu0 0.0
        %5446 = vmatpush1.msra.mxu0 %v2028
        %5447 = vmatprep.subr.mxu0 0.0
        %5448 = vmatpush1.msra.mxu0 %v2029
        %5449 = vmatprep.subr.mxu0 0.0
        %5450 = vmatpush1.msra.mxu0 %v2030
        %5451 = vmatprep.subr.mxu0 0.0
        %5452 = vmatpush1.msra.mxu0 %v2031
        %5453 = vmatprep.subr.mxu0 0.0
        %5454 = vmatpush1.msra.mxu0 %v2032
        %5455 = vmatprep.subr.mxu0 0.0
        %5456 = vmatpush1.msra.mxu0 %v2033
        %5457 = vmatprep.subr.mxu0 0.0
        %5458 = vmatpush1.msra.mxu0 %v2034
        %5459 = vmatprep.subr.mxu0 0.0
        %5460 = vmatpush1.msra.mxu0 %v2035
        %5461 = vmatprep.subr.mxu0 0.0
        %5462 = vmatpush1.msra.mxu0 %v2036
        %5463 = vmatprep.subr.mxu0 0.0
        %5464 = vmatpush1.msra.mxu0 %v2037
        %5465 = vmatprep.subr.mxu0 0.0
        %5466 = vmatpush1.msra.mxu0 %v2038
        %5467 = vmatprep.subr.mxu0 0.0
        %5468 = vmatpush1.msra.mxu0 %v2039
        %5469 = vmatprep.subr.mxu0 0.0
        %5470 = vmatpush1.msra.mxu0 %v2040
        %5471 = vmatprep.subr.mxu0 0.0
        %5472 = vmatpush1.msra.mxu0 %v2041
        %5473 = vmatprep.subr.mxu0 0.0
        %5474 = vmatpush1.msra.mxu0 %v2042
        %5475 = vmatprep.subr.mxu0 0.0
        %5476 = vmatpush1.msra.mxu0 %v2043
        %5477 = vmatprep.subr.mxu0 0.0
        %5478 = vmatpush1.msra.mxu0 %v2044
        %5479 = vmatprep.subr.mxu0 0.0
        %5480 = vmatpush1.msra.mxu0 %v2045
        %5481 = vmatprep.subr.mxu0 0.0
        %5482 = vmatpush1.msra.mxu0 %v2046
        %5483 = vmatprep.subr.mxu0 0.0
        %5484 = vmatpush1.msra.mxu0 %v2047
        %5485 = vmatprep.subr.mxu0 0.0
        %5486 = vmatpush1.msra.mxu0 %v2048
        %5487 = vmatprep.subr.mxu0 0.0
        %5488 = vmatpush1.msra.mxu0 %v2049
        %5489 = vmatprep.subr.mxu0 0.0
        %5490 = vmatpush1.msra.mxu0 %v2050
        %5491 = vmatprep.subr.mxu0 0.0
        %5492 = vmatpush1.msra.mxu0 %v2051
        %5493 = vmatprep.mubr.f32.mxu0 %v5090
        %5494 = vmatmul.mubr.f32.gmra.mrb[0].mxu0 %v5083
        %v5495 = vpop.f32.mrb[0].mxu0
        %v5496 = vadd.f32 %v5426, %v5495
        %v5497 = vpop.f32.mrb[0].mxu0
        %5498 = vdwg.mxu0
        %5499 = vmatprep.subr.mxu0 0.0
        %5500 = vmatpush1.msra.mxu0 %v2052
        %5501 = vmatprep.subr.mxu0 0.0
        %5502 = vmatpush1.msra.mxu0 %v2053
        %5503 = vmatprep.subr.mxu0 0.0
        %5504 = vmatpush1.msra.mxu0 %v2054
        %5505 = vmatprep.subr.mxu0 0.0
        %5506 = vmatpush1.msra.mxu0 %v2055
        %5507 = vmatprep.subr.mxu0 0.0
        %5508 = vmatpush1.msra.mxu0 %v2056
        %5509 = vmatprep.subr.mxu0 0.0
        %5510 = vmatpush1.msra.mxu0 %v2057
        %5511 = vmatprep.subr.mxu0 0.0
        %5512 = vmatpush1.msra.mxu0 %v2058
        %5513 = vmatprep.subr.mxu0 0.0
        %5514 = vmatpush1.msra.mxu0 %v2059
        %5515 = vmatprep.subr.mxu0 0.0
        %5516 = vmatpush1.msra.mxu0 %v2060
        %5517 = vmatprep.subr.mxu0 0.0
        %5518 = vmatpush1.msra.mxu0 %v2061
        %5519 = vmatprep.subr.mxu0 0.0
        %5520 = vmatpush1.msra.mxu0 %v2062
        %5521 = vmatprep.subr.mxu0 0.0
        %5522 = vmatpush1.msra.mxu0 %v2063
        %5523 = vmatprep.subr.mxu0 0.0
        %5524 = vmatpush1.msra.mxu0 %v2064
        %5525 = vmatprep.subr.mxu0 0.0
        %5526 = vmatpush1.msra.mxu0 %v2065
        %5527 = vmatprep.subr.mxu0 0.0
        %5528 = vmatpush1.msra.mxu0 %v2066
        %5529 = vmatprep.subr.mxu0 0.0
        %5530 = vmatpush1.msra.mxu0 %v2067
        %5531 = vmatprep.subr.mxu0 0.0
        %5532 = vmatpush1.msra.mxu0 %v2068
        %5533 = vmatprep.subr.mxu0 0.0
        %5534 = vmatpush1.msra.mxu0 %v2069
        %5535 = vmatprep.subr.mxu0 0.0
        %5536 = vmatpush1.msra.mxu0 %v2070
        %5537 = vmatprep.subr.mxu0 0.0
        %5538 = vmatpush1.msra.mxu0 %v2071
        %5539 = vmatprep.subr.mxu0 0.0
        %5540 = vmatpush1.msra.mxu0 %v2072
        %5541 = vmatprep.subr.mxu0 0.0
        %5542 = vmatpush1.msra.mxu0 %v2073
        %5543 = vmatprep.subr.mxu0 0.0
        %5544 = vmatpush1.msra.mxu0 %v2074
        %5545 = vmatprep.subr.mxu0 0.0
        %5546 = vmatpush1.msra.mxu0 %v2075
        %5547 = vmatprep.subr.mxu0 0.0
        %5548 = vmatpush1.msra.mxu0 %v2076
        %5549 = vmatprep.subr.mxu0 0.0
        %5550 = vmatpush1.msra.mxu0 %v2077
        %5551 = vmatprep.subr.mxu0 0.0
        %5552 = vmatpush1.msra.mxu0 %v2078
        %5553 = vmatprep.subr.mxu0 0.0
        %5554 = vmatpush1.msra.mxu0 %v2079
        %5555 = vmatprep.subr.mxu0 0.0
        %5556 = vmatpush1.msra.mxu0 %v2080
        %5557 = vmatprep.subr.mxu0 0.0
        %5558 = vmatpush1.msra.mxu0 %v2081
        %5559 = vmatprep.subr.mxu0 0.0
        %5560 = vmatpush1.msra.mxu0 %v2082
        %5561 = vmatprep.subr.mxu0 0.0
        %5562 = vmatpush1.msra.mxu0 %v2083
        %5563 = vmatprep.mubr.f32.mxu0 %v5104
        %5564 = vmatmul.mubr.f32.gmra.mrb[0].mxu0 %v5097
        %v5565 = vpop.f32.mrb[0].mxu0
        %v5566 = vadd.f32 %v5496, %v5565
        %v5567 = vpop.f32.mrb[0].mxu0
        %5568 = vdwg.mxu0
        %5569 = vmatprep.subr.mxu0 0.0
        %5570 = vmatpush1.msra.mxu0 %v2084
        %5571 = vmatprep.subr.mxu0 0.0
        %5572 = vmatpush1.msra.mxu0 %v2085
        %5573 = vmatprep.subr.mxu0 0.0
        %5574 = vmatpush1.msra.mxu0 %v2086
        %5575 = vmatprep.subr.mxu0 0.0
        %5576 = vmatpush1.msra.mxu0 %v2087
        %5577 = vmatprep.subr.mxu0 0.0
        %5578 = vmatpush1.msra.mxu0 %v2088
        %5579 = vmatprep.subr.mxu0 0.0
        %5580 = vmatpush1.msra.mxu0 %v2089
        %5581 = vmatprep.subr.mxu0 0.0
        %5582 = vmatpush1.msra.mxu0 %v2090
        %5583 = vmatprep.subr.mxu0 0.0
        %5584 = vmatpush1.msra.mxu0 %v2091
        %5585 = vmatprep.subr.mxu0 0.0
        %5586 = vmatpush1.msra.mxu0 %v2092
        %5587 = vmatprep.subr.mxu0 0.0
        %5588 = vmatpush1.msra.mxu0 %v2093
        %5589 = vmatprep.subr.mxu0 0.0
        %5590 = vmatpush1.msra.mxu0 %v2094
        %5591 = vmatprep.subr.mxu0 0.0
        %5592 = vmatpush1.msra.mxu0 %v2095
        %5593 = vmatprep.subr.mxu0 0.0
        %5594 = vmatpush1.msra.mxu0 %v2096
        %5595 = vmatprep.subr.mxu0 0.0
        %5596 = vmatpush1.msra.mxu0 %v2097
        %5597 = vmatprep.subr.mxu0 0.0
        %5598 = vmatpush1.msra.mxu0 %v2098
        %5599 = vmatprep.subr.mxu0 0.0
        %5600 = vmatpush1.msra.mxu0 %v2099
        %5601 = vmatprep.subr.mxu0 0.0
        %5602 = vmatpush1.msra.mxu0 %v2100
        %5603 = vmatprep.subr.mxu0 0.0
        %5604 = vmatpush1.msra.mxu0 %v2101
        %5605 = vmatprep.subr.mxu0 0.0
        %5606 = vmatpush1.msra.mxu0 %v2102
        %5607 = vmatprep.subr.mxu0 0.0
        %5608 = vmatpush1.msra.mxu0 %v2103
        %5609 = vmatprep.subr.mxu0 0.0
        %5610 = vmatpush1.msra.mxu0 %v2104
        %5611 = vmatprep.subr.mxu0 0.0
        %5612 = vmatpush1.msra.mxu0 %v2105
        %5613 = vmatprep.subr.mxu0 0.0
        %5614 = vmatpush1.msra.mxu0 %v2106
        %5615 = vmatprep.subr.mxu0 0.0
        %5616 = vmatpush1.msra.mxu0 %v2107
        %5617 = vmatprep.subr.mxu0 0.0
        %5618 = vmatpush1.msra.mxu0 %v2108
        %5619 = vmatprep.subr.mxu0 0.0
        %5620 = vmatpush1.msra.mxu0 %v2109
        %5621 = vmatprep.subr.mxu0 0.0
        %5622 = vmatpush1.msra.mxu0 %v2110
        %5623 = vmatprep.subr.mxu0 0.0
        %5624 = vmatpush1.msra.mxu0 %v2111
        %5625 = vmatprep.subr.mxu0 0.0
        %5626 = vmatpush1.msra.mxu0 %v2112
        %5627 = vmatprep.subr.mxu0 0.0
        %5628 = vmatpush1.msra.mxu0 %v2113
        %5629 = vmatprep.subr.mxu0 0.0
        %5630 = vmatpush1.msra.mxu0 %v2114
        %5631 = vmatprep.subr.mxu0 0.0
        %5632 = vmatpush1.msra.mxu0 %v2115
        %5633 = vmatprep.mubr.f32.mxu0 %v5118
        %5634 = vmatmul.mubr.f32.gmra.mrb[0].mxu0 %v5111
        %v5635 = vpop.f32.mrb[0].mxu0
        %v5636 = vadd.f32 %v5566, %v5635
        %v5637 = vpop.f32.mrb[0].mxu0
        %5638 = vdwg.mxu0
        %5639 = vmatprep.subr.mxu0 0.0
        %5640 = vmatpush1.msra.mxu0 %v2116
        %5641 = vmatprep.subr.mxu0 0.0
        %5642 = vmatpush1.msra.mxu0 %v2117
        %5643 = vmatprep.subr.mxu0 0.0
        %5644 = vmatpush1.msra.mxu0 %v2118
        %5645 = vmatprep.subr.mxu0 0.0
        %5646 = vmatpush1.msra.mxu0 %v2119
        %5647 = vmatprep.subr.mxu0 0.0
        %5648 = vmatpush1.msra.mxu0 %v2120
        %5649 = vmatprep.subr.mxu0 0.0
        %5650 = vmatpush1.msra.mxu0 %v2121
        %5651 = vmatprep.subr.mxu0 0.0
        %5652 = vmatpush1.msra.mxu0 %v2122
        %5653 = vmatprep.subr.mxu0 0.0
        %5654 = vmatpush1.msra.mxu0 %v2123
        %5655 = vmatprep.subr.mxu0 0.0
        %5656 = vmatpush1.msra.mxu0 %v2124
        %5657 = vmatprep.subr.mxu0 0.0
        %5658 = vmatpush1.msra.mxu0 %v2125
        %5659 = vmatprep.subr.mxu0 0.0
        %5660 = vmatpush1.msra.mxu0 %v2126
        %5661 = vmatprep.subr.mxu0 0.0
        %5662 = vmatpush1.msra.mxu0 %v2127
        %5663 = vmatprep.subr.mxu0 0.0
        %5664 = vmatpush1.msra.mxu0 %v2128
        %5665 = vmatprep.subr.mxu0 0.0
        %5666 = vmatpush1.msra.mxu0 %v2129
        %5667 = vmatprep.subr.mxu0 0.0
        %5668 = vmatpush1.msra.mxu0 %v2130
        %5669 = vmatprep.subr.mxu0 0.0
        %5670 = vmatpush1.msra.mxu0 %v2131
        %5671 = vmatprep.subr.mxu0 0.0
        %5672 = vmatpush1.msra.mxu0 %v2132
        %5673 = vmatprep.subr.mxu0 0.0
        %5674 = vmatpush1.msra.mxu0 %v2133
        %5675 = vmatprep.subr.mxu0 0.0
        %5676 = vmatpush1.msra.mxu0 %v2134
        %5677 = vmatprep.subr.mxu0 0.0
        %5678 = vmatpush1.msra.mxu0 %v2135
        %5679 = vmatprep.subr.mxu0 0.0
        %5680 = vmatpush1.msra.mxu0 %v2136
        %5681 = vmatprep.subr.mxu0 0.0
        %5682 = vmatpush1.msra.mxu0 %v2137
        %5683 = vmatprep.subr.mxu0 0.0
        %5684 = vmatpush1.msra.mxu0 %v2138
        %5685 = vmatprep.subr.mxu0 0.0
        %5686 = vmatpush1.msra.mxu0 %v2139
        %5687 = vmatprep.subr.mxu0 0.0
        %5688 = vmatpush1.msra.mxu0 %v2140
        %5689 = vmatprep.subr.mxu0 0.0
        %5690 = vmatpush1.msra.mxu0 %v2141
        %5691 = vmatprep.subr.mxu0 0.0
        %5692 = vmatpush1.msra.mxu0 %v2142
        %5693 = vmatprep.subr.mxu0 0.0
        %5694 = vmatpush1.msra.mxu0 %v2143
        %5695 = vmatprep.subr.mxu0 0.0
        %5696 = vmatpush1.msra.mxu0 %v2144
        %5697 = vmatprep.subr.mxu0 0.0
        %5698 = vmatpush1.msra.mxu0 %v2145
        %5699 = vmatprep.subr.mxu0 0.0
        %5700 = vmatpush1.msra.mxu0 %v2146
        %5701 = vmatprep.subr.mxu0 0.0
        %5702 = vmatpush1.msra.mxu0 %v2147
        %5703 = vmatprep.mubr.f32.mxu0 %v5132
        %5704 = vmatmul.mubr.f32.gmra.mrb[0].mxu0 %v5125
        %v5705 = vpop.f32.mrb[0].mxu0
        %v5706 = vadd.f32 %v5636, %v5705
        %v5707 = vpop.f32.mrb[0].mxu0
        %5708 = vdwg.mxu0
        %v5709 = vld [vmem:[%s2] sm:$0x1]
        %v5711 = vlaneseq
        %v5712 = vshrl.u32 %v5711, 7
        %v5713 = vsub.s32 0, %v5712
        %v5714 = vrot.slane %v5709, %v5713
        %v5716 = vadd.f32 %v5706, %v5714
        %v5717 = vmax.f32 %v5716, 0.0
        %v5718 = vld [vmem:[%s3] sm:$0xff]
        %v5719 = vld [vmem:[%s3 + $0x8] sm:$0xff]
        %v5720 = vld [vmem:[%s4] sm:$0x1]
        %v5722 = vlaneseq
        %v5723 = vshrl.u32 %v5722, 7
        %v5724 = vsub.s32 0, %v5723
        %v5725 = vrot.slane %v5720, %v5724
        %vm5727 = vcmask 130048
        %v5729 = vsel %vm5727, %v5717, 0
        %5731 = vmatprep.subr.mxu0 0.0
        %5732 = vmatpush1.msra.mxu0 %v5718
        %5733 = vmatprep.subr.mxu0 0.0
        %5734 = vmatpush1.msra.mxu0 %v5719
        %5735 = vmatprep.subr.mxu0 0.0
        %5736 = vmatpush1.msra.mxu0 0.0
        %5737 = vmatprep.subr.mxu0 0.0
        %5738 = vmatpush1.msra.mxu0 0.0
        %5739 = vmatprep.subr.mxu0 0.0
        %5740 = vmatpush1.msra.mxu0 0.0
        %5741 = vmatprep.subr.mxu0 0.0
        %5742 = vmatpush1.msra.mxu0 0.0
        %5743 = vmatprep.subr.mxu0 0.0
        %5744 = vmatpush1.msra.mxu0 0.0
        %5745 = vmatprep.subr.mxu0 0.0
        %5746 = vmatpush1.msra.mxu0 0.0
        %5747 = vmatprep.subr.mxu0 0.0
        %5748 = vmatpush1.msra.mxu0 0.0
        %5749 = vmatprep.subr.mxu0 0.0
        %5750 = vmatpush1.msra.mxu0 0.0
        %5751 = vmatprep.subr.mxu0 0.0
        %5752 = vmatpush1.msra.mxu0 0.0
        %5753 = vmatprep.subr.mxu0 0.0
        %5754 = vmatpush1.msra.mxu0 0.0
        %5755 = vmatprep.subr.mxu0 0.0
        %5756 = vmatpush1.msra.mxu0 0.0
        %5757 = vmatprep.subr.mxu0 0.0
        %5758 = vmatpush1.msra.mxu0 0.0
        %5759 = vmatprep.subr.mxu0 0.0
        %5760 = vmatpush1.msra.mxu0 0.0
        %5761 = vmatprep.subr.mxu0 0.0
        %5762 = vmatpush1.msra.mxu0 0.0
        %5763 = vmatprep.subr.mxu0 0.0
        %5764 = vmatpush1.msra.mxu0 0.0
        %5765 = vmatprep.subr.mxu0 0.0
        %5766 = vmatpush1.msra.mxu0 0.0
        %5767 = vmatprep.subr.mxu0 0.0
        %5768 = vmatpush1.msra.mxu0 0.0
        %5769 = vmatprep.subr.mxu0 0.0
        %5770 = vmatpush1.msra.mxu0 0.0
        %5771 = vmatprep.subr.mxu0 0.0
        %5772 = vmatpush1.msra.mxu0 0.0
        %5773 = vmatprep.subr.mxu0 0.0
        %5774 = vmatpush1.msra.mxu0 0.0
        %5775 = vmatprep.subr.mxu0 0.0
        %5776 = vmatpush1.msra.mxu0 0.0
        %5777 = vmatprep.subr.mxu0 0.0
        %5778 = vmatpush1.msra.mxu0 0.0
        %5779 = vmatprep.subr.mxu0 0.0
        %5780 = vmatpush1.msra.mxu0 0.0
        %5781 = vmatprep.subr.mxu0 0.0
        %5782 = vmatpush1.msra.mxu0 0.0
        %5783 = vmatprep.subr.mxu0 0.0
        %5784 = vmatpush1.msra.mxu0 0.0
        %5785 = vmatprep.subr.mxu0 0.0
        %5786 = vmatpush1.msra.mxu0 0.0
        %5787 = vmatprep.subr.mxu0 0.0
        %5788 = vmatpush1.msra.mxu0 0.0
        %5789 = vmatprep.subr.mxu0 0.0
        %5790 = vmatpush1.msra.mxu0 0.0
        %5791 = vmatprep.subr.mxu0 0.0
        %5792 = vmatpush1.msra.mxu0 0.0
        %5793 = vmatprep.subr.mxu0 0.0
        %5794 = vmatpush1.msra.mxu0 0.0
        %5795 = vmatprep.mubr.f32.mxu0 0.0
        %5796 = vmatmul.mubr.f32.gmra.mrb[0].mxu0 %v5729
        %v5797 = vpop.f32.mrb[0].mxu0
        %v5798 = vadd.f32 %v5725, %v5797
        %v5799 = vpop.f32.mrb[0].mxu0
        %5800 = vdwg.mxu0
        %v5801 = vmul.f32 %v5798, %v5798
        %v5802 = vsel %vm5727, %v5801, 0.0
        %5803 = vadd.xlane.f32.xlu0 %v5802
        %v5804 = vpop.xlane.xlu0 %5803
        %v5805 = vrsqrt.pop %v5804
        %v5806 = vmul.f32 %v5798, %v5805
        %5807 = vst.msk [vmem:[%s220] sm:$0xff] %vm5727, %v5806
        %s5808 = sand.u32 %s137, 1
        %s5809 = scalar_lea.sflag [#allocation3], %s5808
        %s5810 = sand.u32 %s137, 1
        %s5811 = smul.addr %s5810, 8
        %s5812 = scalar_lea.vmem [#allocation2], %s5811
        // Predicated region
        $region41: #{matric_layer_forward.1} parent=39 // pred_check
          %p5813 = pneg %p147
        $region42: #{matric_layer_forward.1} parent=39 // pred_check_branch
          %5815 = sbr.rel (%p5813) target = $region44
        $region43: #{matric_layer_forward.1} parent=39 // pred_region
          %s5817 = ssub.s32 128, 128
          %5818 = vsyncadd %s5809, %s5817
          %s5819 = smul.addr %s19, 128
          %s5820 = scalar_lea.hbm %s5, %s5819
          %s5822 = sshll.u32 %s5812, 4
          %s5823 = int_to_ptr.vmem [resolvable:$true] %s5822
          %5825 = dma.vmem_to_hbm [thread:$0]  %s5823, 128, %s5820, %s5809
        $region44: #{matric_layer_forward.1} parent=39 // pred_fallthru
          _
      $region40: #{matric_layer_forward.1} parent=5 // pred_fallthru
        _
      %p5826 = scmp.le.s32.totalorder 2, %s14
      // Predicated region
      $region45: #{matric_layer_forward.1} parent=5 // pred_check
        %p5827 = pneg %p5826
      $region46: #{matric_layer_forward.1} parent=5 // pred_check_branch
        %5829 = sbr.rel (%p5827) target = $region48
      $region47: #{matric_layer_forward.1} parent=5 // pred_region
        %s5830 = ssub.s32 %s14, 2
        // Predicated region
        $region49: #{matric_layer_forward.1} parent=47 // pred_check
          %p5831 = pneg %p153
        $region50: #{matric_layer_forward.1} parent=47 // pred_check_branch
          %5833 = sbr.rel (%p5831) target = $region52
        $region51: #{matric_layer_forward.1} parent=47 // pred_region
          %s5834 = sand.u32 %s138, 1
          %s5835 = scalar_lea.sflag [#allocation3], %s5834
          %s5836 = sand.u32 %s138, 1
          %s5837 = smul.addr %s5836, 8
          %s5838 = scalar_lea.vmem [#allocation2], %s5837
          %5839 = dma.done %s5835, 128
        $region52: #{matric_layer_forward.1} parent=47 // pred_fallthru
          _
      $region48: #{matric_layer_forward.1} parent=5 // pred_fallthru
        _
    $region6: #{matric_layer_forward.1} parent=1 // loop_footer
      %s18 = sadd.s32 1, %s14
    $region7: #{matric_layer_forward.1} parent=1 // loop_footer_branch
      %13 = sbr.rel target = $region3
    $region8: #{matric_layer_forward.1} parent=1 // loop_exit
      _
    %5840 = vsyncpa [#allocation3], 1
    %s5841 = scalar_lea.sflag [#allocation3], 1
    %5842 = vsyncpa %s5841, 1

</llo_original>
